<compile_context>
chip_gen: v5e
topology: v5e:2x2
jax: 0.10.0
libtpu: 0.0.40
codegen_flags: <defaults>
</compile_context>

<pallas_src>
import math
from functools import partial

import jax
import jax.numpy as jnp
from jax.experimental import pallas as pl
from jax.experimental.pallas import tpu as pltpu

_BF16 = jnp.bfloat16


# --------------------------- in-kernel helpers -------------------------------

def _mm(a, b):
    """MXU matmul: bf16 inputs, f32 accumulation."""
    return jnp.dot(a.astype(_BF16), b.astype(_BF16),
                   preferred_element_type=jnp.float32)


def _mm_nt(a, b):
    """a @ b.T without an explicit transpose (contract last dims of both)."""
    return jax.lax.dot_general(a.astype(_BF16), b.astype(_BF16),
                               (((1,), (1,)), ((), ())),
                               preferred_element_type=jnp.float32)


def _swish(x):
    # sigmoid via EUP reciprocal (approx) -- keeps the divide off the VALU.
    return x * pl.reciprocal(1.0 + jnp.exp(-x), approx=True)


# --------------------------- Pallas kernels ----------------------------------

def _conv_bias_kernel(w_ref, p_ref, b_ref, o_ref):
    """out = W @ patches + bias          (Cout, B*OH*OW), lane-dense."""
    o_ref[...] = _mm(w_ref[...], p_ref[...]) + b_ref[...]


def _conv_swish_add_kernel(w_ref, p_ref, b_ref, a_ref, o_ref):
    """out = swish(W @ patches + bias) + add
    `add` is either the broadcast time embedding (1, B*HW) or the residual
    activation (C, B*HW)."""
    h = _mm(w_ref[...], p_ref[...]) + b_ref[...]
    o_ref[...] = _swish(h) + a_ref[...]


def _swish_layernorm_kernel(x_ref, g_ref, b_ref, o_ref, *, pre_swish):
    """(optional swish) + LayerNorm over all non-batch dims.  x: (B, C*H*W)."""
    x = x_ref[...]
    if pre_swish:
        x = _swish(x)
    mean = jnp.mean(x, axis=-1, keepdims=True)
    d = x - mean
    var = jnp.mean(d * d, axis=-1, keepdims=True)
    o_ref[...] = d * jax.lax.rsqrt(var + 1e-5) * g_ref[...] + b_ref[...]


def _attention_kernel(x_ref, wqkv_ref, bqkv_ref, wo_ref, bo_ref, o_ref, *,
                      batch, seq, ch, scale):
    """Spatial self-attention + residual.  x: (B*S, C); fused QKV projection.
    Batch is a static 2-iteration unroll of pure 2-D matmuls."""
    for b in range(batch):
        xb = x_ref[b * seq:(b + 1) * seq, :]                      # (S, C) f32
        qkv = _mm(xb, wqkv_ref[...]) + bqkv_ref[...]              # (S, 3C)
        q = qkv[:, :ch]
        k = qkv[:, ch:2 * ch]
        v = qkv[:, 2 * ch:]
        s = _mm_nt(q, k) * scale                                  # (S, S)
        s = s - jnp.max(s, axis=-1, keepdims=True)
        e = jnp.exp(s)
        attn = e * pl.reciprocal(jnp.sum(e, axis=-1, keepdims=True), approx=True)
        o = _mm(attn, v)                                          # (S, C)
        o = _mm(o, wo_ref[...]) + bo_ref[...]                     # (S, C)
        o_ref[b * seq:(b + 1) * seq, :] = xb + o                  # residual (f32)


# --------------------------- pallas_call wrapper ------------------------------

def _pcall(kernel, out_shape, *args):
    """Single-block pallas_call: every operand is its own full-array VMEM block
    (no host padding, no pipelining needed at these sizes)."""
    for a in args:
        assert a.ndim == 2, a.shape
    return pl.pallas_call(
        kernel,
        grid=(1,),
        in_specs=[pl.BlockSpec(a.shape, lambda i: (0, 0)) for a in args],
        out_specs=pl.BlockSpec(out_shape, lambda i: (0, 0)),
        out_shape=jax.ShapeDtypeStruct(out_shape, jnp.float32),
        compiler_params=pltpu.CompilerParams(
            dimension_semantics=("arbitrary",),
            vmem_limit_bytes=16 * 1024 * 1024),
    )(*args)


# --------------------------- XLA glue (layout plumbing only) ------------------

def _im2col(x, kh, kw, stride, padding):
    """x: (C, B, H, W) -> patches (C*kh*kw, B*OH*OW) in bf16, K ordered
    (C, kh, kw) to match torch Conv2d weight layout; lanes ordered (B, OH, OW).
    bf16 here is lossless w.r.t. the kernel (the matmul cast happened anyway)
    and halves DMA bytes for the largest conv operand."""
    C, B, H, W = x.shape
    xp = jnp.pad(x, ((0, 0), (0, 0), (padding, padding), (padding, padding)))
    Hp, Wp = H + 2 * padding, W + 2 * padding
    OH = (Hp - kh) // stride + 1
    OW = (Wp - kw) // stride + 1
    cols = [xp[:, :, i:i + stride * (OH - 1) + 1:stride,
                     j:j + stride * (OW - 1) + 1:stride]
            for i in range(kh) for j in range(kw)]
    patches = jnp.stack(cols, axis=1)                 # (C, kh*kw, B, OH, OW)
    patches = patches.reshape(C * kh * kw, B * OH * OW).astype(_BF16)
    return patches, B, OH, OW


def _wflat(w):
    """Torch conv weight (Cout,Cin,kh,kw) -> bf16 (Cout, Cin*kh*kw) matmul LHS."""
    Cout = w.shape[0]
    return w.reshape(Cout, -1).astype(_BF16)


def conv2d(w, b, x, stride=1, padding=0):
    """nn.Conv2d on activations in (Cin, B, H, W) layout -> (Cout, B, OH, OW)."""
    Cout = w.shape[0]
    kh, kw = w.shape[2], w.shape[3]
    patches, B, OH, OW = _im2col(x, kh, kw, stride, padding)
    out = _pcall(_conv_bias_kernel, (Cout, B * OH * OW),
                 _wflat(w), patches, b)
    return out.reshape(Cout, B, OH, OW)


def resnet_block(p, x, t):
    """h = swish(conv1(x)) + temb(t); out = x + swish(conv2(h)).  Shape-preserving."""
    C, B, H, W = x.shape
    HW = H * W
    Cout = p['c1_w'].shape[0]
    # Linear(1, H*W) time embedding: tiny outer product (XLA-fused), the add is
    # fused into the conv kernel epilogue.  Lanes of the conv output are ordered
    # (B, H, W), so (B, HW) row-major flattening matches.
    temb = (t * p['t_w'] + p['t_b']).reshape(1, B * HW)           # (1, B*HW) f32

    kh = p['c1_w'].shape[2]
    patches1, _, _, _ = _im2col(x, kh, kh, 1, kh // 2)
    h = _pcall(_conv_swish_add_kernel, (Cout, B * HW),
               _wflat(p['c1_w']), patches1, p['c1_b'], temb)
    h = h.reshape(Cout, B, H, W)

    patches2, _, _, _ = _im2col(h, kh, kh, 1, kh // 2)
    out = _pcall(_conv_swish_add_kernel, (Cout, B * HW),
                 _wflat(p['c2_w']), patches2, p['c2_b'],
                 x.reshape(C, B * HW))
    return out.reshape(Cout, B, H, W)


def attention(p, x):
    """Self-attention over spatial positions, channels as embedding dim."""
    C, B, H, W = x.shape
    S = H * W
    xs = x.reshape(C, B * S).T                                    # (B*S, C) f32
    out = _pcall(partial(_attention_kernel, batch=B, seq=S, ch=C,
                         scale=1.0 / math.sqrt(C)),
                 (B * S, C),
                 xs,
                 p['wqkv'].astype(_BF16), p['bqkv'],
                 p['wo'].astype(_BF16), p['bo'])
    return out.T.reshape(C, B, H, W)


def swish_layernorm(g, b, x, pre_swish=False):
    """nn.LayerNorm([C,H,W]) (optionally preceded by swish), x in (C,B,H,W)."""
    C, B, H, W = x.shape
    N = C * H * W
    xf = x.reshape(C, B, H * W).transpose(1, 0, 2).reshape(B, N)
    out = _pcall(partial(_swish_layernorm_kernel, pre_swish=pre_swish),
                 (B, N), xf, g, b)
    return out.reshape(B, C, H, W).transpose(1, 0, 2, 3)


def upsample_nearest_2x(x):
    return jnp.repeat(jnp.repeat(x, 2, axis=2), 2, axis=3)


# --------------------------- parameters --------------------------------------

def init_params(key):
    keys = iter(jax.random.split(key, 64))

    def nrm(shape, scale=0.05):
        return (scale * jax.random.normal(next(keys), shape)).astype(jnp.float32)

    def conv_p(cin, cout, k):
        return nrm((cout, cin, k, k)), nrm((cout, 1))

    def res_p(cin, cout, npix):
        c1_w, c1_b = conv_p(cin, cout, 3)
        c2_w, c2_b = conv_p(cout, cout, 3)
        return dict(c1_w=c1_w, c1_b=c1_b, c2_w=c2_w, c2_b=c2_b,
                    t_w=nrm((1, npix)), t_b=nrm((1, npix)))

    def attn_p(dim):
        return dict(wqkv=nrm((dim, 3 * dim)), bqkv=nrm((1, 3 * dim)),
                    wo=nrm((dim, dim)), bo=nrm((1, dim)))

    p = {}
    p['conv1_w'], p['conv1_b'] = conv_p(1, 4, 5)
    p['res1'] = res_p(4, 4, 26 * 26)
    p['down1_w'], p['down1_b'] = conv_p(4, 4, 3)
    p['conv2_w'], p['conv2_b'] = conv_p(4, 8, 5)
    p['norm1_g'] = jnp.ones((1, 8 * 10 * 10), jnp.float32)
    p['norm1_b'] = jnp.zeros((1, 8 * 10 * 10), jnp.float32)
    p['res2'] = res_p(8, 8, 10 * 10)
    p['down2_w'], p['down2_b'] = conv_p(8, 8, 4)
    p['attn1'] = attn_p(8)
    p['res3'] = res_p(8, 8, 5 * 5)
    p['attn2'] = attn_p(8)
    p['conv3_w'], p['conv3_b'] = conv_p(8, 4, 2)
    p['res4'] = res_p(4, 4, 13 * 13)
    p['conv4_w'], p['conv4_b'] = conv_p(4, 1, 5)
    p['res5'] = res_p(1, 1, 28 * 28)
    p['norm_g'] = jnp.ones((1, 28 * 28), jnp.float32)
    p['norm_b'] = jnp.zeros((1, 28 * 28), jnp.float32)
    return p


# --------------------------- forward ------------------------------------------

def unet_forward(p, x_nchw, t):
    x = x_nchw.transpose(1, 0, 2, 3)                               # (1,B,28,28)
    x = conv2d(p['conv1_w'], p['conv1_b'], x, 1, 1)                # (4,B,26,26)
    x = resnet_block(p['res1'], x, t); x_res1 = x                  # res1 applied twice in torch; identical -> compute once
    x = conv2d(p['down1_w'], p['down1_b'], x, 2, 0)                # (4,B,12,12)
    x = conv2d(p['conv2_w'], p['conv2_b'], x, 1, 1)                # (8,B,10,10)
    x = swish_layernorm(p['norm1_g'], p['norm1_b'], x)             # LayerNorm([8,10,10])
    x = resnet_block(p['res2'], x, t)                              # x_res2 unused downstream
    x = conv2d(p['down2_w'], p['down2_b'], x, 2, 1); x_res3 = x    # (8,B,5,5)
    x = attention(p['attn1'], x)
    x = resnet_block(p['res3'], x, t)
    x = attention(p['attn2'], x)
    x = upsample_nearest_2x(x + x_res3)                            # (8,B,10,10)
    x = conv2d(p['conv3_w'], p['conv3_b'], x, 1, 2)                # (4,B,13,13)
    x = resnet_block(p['res4'], x, t)
    x = upsample_nearest_2x(x)                                     # (4,B,26,26)
    x = conv2d(p['conv4_w'], p['conv4_b'], x + x_res1, 1, 3)       # (1,B,28,28)
    x = resnet_block(p['res5'], x, t)
    x = swish_layernorm(p['norm_g'], p['norm_b'], x, pre_swish=True)  # swish + LayerNorm([1,28,28])
    return x.transpose(1, 0, 2, 3)                                 # (B,1,28,28)


if __name__ == "__main__":
    key = jax.random.PRNGKey(0)
    kp, kx, kt = jax.random.split(key, 3)
    params = init_params(kp)
    x = jax.random.normal(kx, (2, 1, 28, 28), jnp.float32)
    t = jax.random.normal(kt, (2, 1), jnp.float32)

    fwd = jax.jit(unet_forward)
    y = fwd(params, x, t)
    jax.block_until_ready(y)

    assert y.shape == (2, 1, 28, 28), y.shape
    assert bool(jnp.all(jnp.isfinite(y)))
    print("KERNEL_OK")
</pallas_src>

<mosaic_0001>
module attributes {stable_mosaic.version = 11 : i64} {
  func.func @_conv_bias_kernel(%arg0: i32, %arg1: memref<4x25xbf16, #tpu.memory_space<vmem>>, %arg2: memref<25x1352xbf16, #tpu.memory_space<vmem>>, %arg3: memref<4x1xf32, #tpu.memory_space<vmem>>, %arg4: memref<4x1352xf32, #tpu.memory_space<vmem>>) attributes {dimension_semantics = [#tpu.dimension_semantics<arbitrary>], iteration_bounds = array<i64: 1>, scalar_prefetch = 0 : i64, scratch_operands = 0 : i64, tpu.core_type = #tpu.core_type<tc>, window_params = [{pipeline_mode = #tpu.pipeline_mode<synchronous>, transform_indices = @transform_0, window_bounds = array<i64: 4, 25>}, {pipeline_mode = #tpu.pipeline_mode<synchronous>, transform_indices = @transform_1, window_bounds = array<i64: 25, 1352>}, {pipeline_mode = #tpu.pipeline_mode<synchronous>, transform_indices = @transform_2, window_bounds = array<i64: 4, 1>}, {pipeline_mode = #tpu.pipeline_mode<synchronous>, transform_indices = @transform_3, window_bounds = array<i64: 4, 1352>}]} {
    %c0 = arith.constant 0 : index
    %c0_0 = arith.constant 0 : index
    %0 = vector.load %arg1[%c0, %c0_0] : memref<4x25xbf16, #tpu.memory_space<vmem>>, vector<4x25xbf16>
    %c0_1 = arith.constant 0 : index
    %c0_2 = arith.constant 0 : index
    %1 = vector.load %arg2[%c0_1, %c0_2] : memref<25x1352xbf16, #tpu.memory_space<vmem>>, vector<25x1352xbf16>
    %cst = arith.constant dense<0.000000e+00> : vector<4x1352xf32>
    %2 = tpu.matmul %0, %1, %cst {dimension_numbers = #tpu.dot_dimension_numbers<[1], [0], [0], [1], [0, 0, 1, 1], [], []>} : vector<4x25xbf16>, vector<25x1352xbf16>, vector<4x1352xf32> -> vector<4x1352xf32>
    %c0_3 = arith.constant 0 : index
    %c0_4 = arith.constant 0 : index
    %3 = vector.load %arg3[%c0_3, %c0_4] : memref<4x1xf32, #tpu.memory_space<vmem>>, vector<4x1xf32>
    %4 = vector.broadcast %3 : vector<4x1xf32> to vector<4x1352xf32>
    %5 = arith.addf %2, %4 : vector<4x1352xf32>
    %c0_5 = arith.constant 0 : index
    %c0_6 = arith.constant 0 : index
    %6 = vector.load %arg4[%c0_5, %c0_6] : memref<4x1352xf32, #tpu.memory_space<vmem>>, vector<4x1352xf32>
    tpu.vector_store %arg4[%c0_5, %c0_6], %5 {strides = array<i32>} : memref<4x1352xf32, #tpu.memory_space<vmem>>, vector<4x1352xf32>,
    return
  }
  func.func @transform_0(%arg0: i32) -> (i32, i32) {
    %c0_i32 = arith.constant 0 : i32
    %c0_i32_0 = arith.constant 0 : i32
    %c0_i32_1 = arith.constant 0 : i32
    return %c0_i32, %c0_i32_0 : i32, i32
  }
  func.func @transform_1(%arg0: i32) -> (i32, i32) {
    %c0_i32 = arith.constant 0 : i32
    %c0_i32_0 = arith.constant 0 : i32
    %c0_i32_1 = arith.constant 0 : i32
    return %c0_i32, %c0_i32_0 : i32, i32
  }
  func.func @transform_2(%arg0: i32) -> (i32, i32) {
    %c0_i32 = arith.constant 0 : i32
    %c0_i32_0 = arith.constant 0 : i32
    %c0_i32_1 = arith.constant 0 : i32
    return %c0_i32, %c0_i32_0 : i32, i32
  }
  func.func @transform_3(%arg0: i32) -> (i32, i32) {
    %c0_i32 = arith.constant 0 : i32
    %c0_i32_0 = arith.constant 0 : i32
    %c0_i32_1 = arith.constant 0 : i32
    return %c0_i32, %c0_i32_0 : i32, i32
  }
}

module attributes {stable_mosaic.version = 11 : i64} {
  func.func @_conv_swish_add_kernel(%arg0: i32, %arg1: memref<4x36xbf16, #tpu.memory_space<vmem>>, %arg2: memref<36x1352xbf16, #tpu.memory_space<vmem>>, %arg3: memref<4x1xf32, #tpu.memory_space<vmem>>, %arg4: memref<1x1352xf32, #tpu.memory_space<vmem>>, %arg5: memref<4x1352xf32, #tpu.memory_space<vmem>>) attributes {dimension_semantics = [#tpu.dimension_semantics<arbitrary>], iteration_bounds = array<i64: 1>, scalar_prefetch = 0 : i64, scratch_operands = 0 : i64, tpu.core_type = #tpu.core_type<tc>, window_params = [{pipeline_mode = #tpu.pipeline_mode<synchronous>, transform_indices = @transform_0, window_bounds = array<i64: 4, 36>}, {pipeline_mode = #tpu.pipeline_mode<synchronous>, transform_indices = @transform_1, window_bounds = array<i64: 36, 1352>}, {pipeline_mode = #tpu.pipeline_mode<synchronous>, transform_indices = @transform_2, window_bounds = array<i64: 4, 1>}, {pipeline_mode = #tpu.pipeline_mode<synchronous>, transform_indices = @transform_3, window_bounds = array<i64: 1, 1352>}, {pipeline_mode = #tpu.pipeline_mode<synchronous>, transform_indices = @transform_4, window_bounds = array<i64: 4, 1352>}]} {
    %c0 = arith.constant 0 : index
    %c0_0 = arith.constant 0 : index
    %0 = vector.load %arg1[%c0, %c0_0] : memref<4x36xbf16, #tpu.memory_space<vmem>>, vector<4x36xbf16>
    %c0_1 = arith.constant 0 : index
    %c0_2 = arith.constant 0 : index
    %1 = vector.load %arg2[%c0_1, %c0_2] : memref<36x1352xbf16, #tpu.memory_space<vmem>>, vector<36x1352xbf16>
    %cst = arith.constant dense<0.000000e+00> : vector<4x1352xf32>
    %2 = tpu.matmul %0, %1, %cst {dimension_numbers = #tpu.dot_dimension_numbers<[1], [0], [0], [1], [0, 0, 1, 1], [], []>} : vector<4x36xbf16>, vector<36x1352xbf16>, vector<4x1352xf32> -> vector<4x1352xf32>
    %c0_3 = arith.constant 0 : index
    %c0_4 = arith.constant 0 : index
    %3 = vector.load %arg3[%c0_3, %c0_4] : memref<4x1xf32, #tpu.memory_space<vmem>>, vector<4x1xf32>
    %4 = vector.broadcast %3 : vector<4x1xf32> to vector<4x1352xf32>
    %5 = arith.addf %2, %4 : vector<4x1352xf32>
    %cst_5 = arith.constant 0.000000e+00 : f32
    %6 = vector.broadcast %cst_5 : f32 to vector<4x1352xf32>
    %7 = arith.subf %6, %5 : vector<4x1352xf32>
    %8 = math.exp %7 : vector<4x1352xf32>
    %cst_6 = arith.constant 1.000000e+00 : f32
    %9 = vector.broadcast %cst_6 : f32 to vector<4x1352xf32>
    %10 = arith.addf %9, %8 : vector<4x1352xf32>
    %11 = tpu.reciprocal %10 {approx = true} : vector<4x1352xf32> -> vector<4x1352xf32>
    %12 = arith.mulf %5, %11 : vector<4x1352xf32>
    %c0_7 = arith.constant 0 : index
    %c0_8 = arith.constant 0 : index
    %13 = vector.load %arg4[%c0_7, %c0_8] : memref<1x1352xf32, #tpu.memory_space<vmem>>, vector<1x1352xf32>
    %14 = vector.broadcast %13 : vector<1x1352xf32> to vector<4x1352xf32>
    %15 = arith.addf %12, %14 : vector<4x1352xf32>
    %c0_9 = arith.constant 0 : index
    %c0_10 = arith.constant 0 : index
    %16 = vector.load %arg5[%c0_9, %c0_10] : memref<4x1352xf32, #tpu.memory_space<vmem>>, vector<4x1352xf32>
    tpu.vector_store %arg5[%c0_9, %c0_10], %15 {strides = array<i32>} : memref<4x1352xf32, #tpu.memory_space<vmem>>, vector<4x1352xf32>,
    return
  }
  func.func @transform_0(%arg0: i32) -> (i32, i32) {
    %c0_i32 = arith.constant 0 : i32
    %c0_i32_0 = arith.constant 0 : i32
    %c0_i32_1 = arith.constant 0 : i32
    return %c0_i32, %c0_i32_0 : i32, i32
  }
  func.func @transform_1(%arg0: i32) -> (i32, i32) {
    %c0_i32 = arith.constant 0 : i32
    %c0_i32_0 = arith.constant 0 : i32
    %c0_i32_1 = arith.constant 0 : i32
    return %c0_i32, %c0_i32_0 : i32, i32
  }
  func.func @transform_2(%arg0: i32) -> (i32, i32) {
    %c0_i32 = arith.constant 0 : i32
    %c0_i32_0 = arith.constant 0 : i32
    %c0_i32_1 = arith.constant 0 : i32
    return %c0_i32, %c0_i32_0 : i32, i32
  }
  func.func @transform_3(%arg0: i32) -> (i32, i32) {
    %c0_i32 = arith.constant 0 : i32
    %c0_i32_0 = arith.constant 0 : i32
    %c0_i32_1 = arith.constant 0 : i32
    return %c0_i32, %c0_i32_0 : i32, i32
  }
  func.func @transform_4(%arg0: i32) -> (i32, i32) {
    %c0_i32 = arith.constant 0 : i32
    %c0_i32_0 = arith.constant 0 : i32
    %c0_i32_1 = arith.constant 0 : i32
    return %c0_i32, %c0_i32_0 : i32, i32
  }
}

module attributes {stable_mosaic.version = 11 : i64} {
  func.func @_conv_swish_add_kernel(%arg0: i32, %arg1: memref<4x36xbf16, #tpu.memory_space<vmem>>, %arg2: memref<36x1352xbf16, #tpu.memory_space<vmem>>, %arg3: memref<4x1xf32, #tpu.memory_space<vmem>>, %arg4: memref<4x1352xf32, #tpu.memory_space<vmem>>, %arg5: memref<4x1352xf32, #tpu.memory_space<vmem>>) attributes {dimension_semantics = [#tpu.dimension_semantics<arbitrary>], iteration_bounds = array<i64: 1>, scalar_prefetch = 0 : i64, scratch_operands = 0 : i64, tpu.core_type = #tpu.core_type<tc>, window_params = [{pipeline_mode = #tpu.pipeline_mode<synchronous>, transform_indices = @transform_0, window_bounds = array<i64: 4, 36>}, {pipeline_mode = #tpu.pipeline_mode<synchronous>, transform_indices = @transform_1, window_bounds = array<i64: 36, 1352>}, {pipeline_mode = #tpu.pipeline_mode<synchronous>, transform_indices = @transform_2, window_bounds = array<i64: 4, 1>}, {pipeline_mode = #tpu.pipeline_mode<synchronous>, transform_indices = @transform_3, window_bounds = array<i64: 4, 1352>}, {pipeline_mode = #tpu.pipeline_mode<synchronous>, transform_indices = @transform_4, window_bounds = array<i64: 4, 1352>}]} {
    %c0 = arith.constant 0 : index
    %c0_0 = arith.constant 0 : index
    %0 = vector.load %arg1[%c0, %c0_0] : memref<4x36xbf16, #tpu.memory_space<vmem>>, vector<4x36xbf16>
    %c0_1 = arith.constant 0 : index
    %c0_2 = arith.constant 0 : index
    %1 = vector.load %arg2[%c0_1, %c0_2] : memref<36x1352xbf16, #tpu.memory_space<vmem>>, vector<36x1352xbf16>
    %cst = arith.constant dense<0.000000e+00> : vector<4x1352xf32>
    %2 = tpu.matmul %0, %1, %cst {dimension_numbers = #tpu.dot_dimension_numbers<[1], [0], [0], [1], [0, 0, 1, 1], [], []>} : vector<4x36xbf16>, vector<36x1352xbf16>, vector<4x1352xf32> -> vector<4x1352xf32>
    %c0_3 = arith.constant 0 : index
    %c0_4 = arith.constant 0 : index
    %3 = vector.load %arg3[%c0_3, %c0_4] : memref<4x1xf32, #tpu.memory_space<vmem>>, vector<4x1xf32>
    %4 = vector.broadcast %3 : vector<4x1xf32> to vector<4x1352xf32>
    %5 = arith.addf %2, %4 : vector<4x1352xf32>
    %cst_5 = arith.constant 0.000000e+00 : f32
    %6 = vector.broadcast %cst_5 : f32 to vector<4x1352xf32>
    %7 = arith.subf %6, %5 : vector<4x1352xf32>
    %8 = math.exp %7 : vector<4x1352xf32>
    %cst_6 = arith.constant 1.000000e+00 : f32
    %9 = vector.broadcast %cst_6 : f32 to vector<4x1352xf32>
    %10 = arith.addf %9, %8 : vector<4x1352xf32>
    %11 = tpu.reciprocal %10 {approx = true} : vector<4x1352xf32> -> vector<4x1352xf32>
    %12 = arith.mulf %5, %11 : vector<4x1352xf32>
    %c0_7 = arith.constant 0 : index
    %c0_8 = arith.constant 0 : index
    %13 = vector.load %arg4[%c0_7, %c0_8] : memref<4x1352xf32, #tpu.memory_space<vmem>>, vector<4x1352xf32>
    %14 = arith.addf %12, %13 : vector<4x1352xf32>
    %c0_9 = arith.constant 0 : index
    %c0_10 = arith.constant 0 : index
    %15 = vector.load %arg5[%c0_9, %c0_10] : memref<4x1352xf32, #tpu.memory_space<vmem>>, vector<4x1352xf32>
    tpu.vector_store %arg5[%c0_9, %c0_10], %14 {strides = array<i32>} : memref<4x1352xf32, #tpu.memory_space<vmem>>, vector<4x1352xf32>,
    return
  }
  func.func @transform_0(%arg0: i32) -> (i32, i32) {
    %c0_i32 = arith.constant 0 : i32
    %c0_i32_0 = arith.constant 0 : i32
    %c0_i32_1 = arith.constant 0 : i32
    return %c0_i32, %c0_i32_0 : i32, i32
  }
  func.func @transform_1(%arg0: i32) -> (i32, i32) {
    %c0_i32 = arith.constant 0 : i32
    %c0_i32_0 = arith.constant 0 : i32
    %c0_i32_1 = arith.constant 0 : i32
    return %c0_i32, %c0_i32_0 : i32, i32
  }
  func.func @transform_2(%arg0: i32) -> (i32, i32) {
    %c0_i32 = arith.constant 0 : i32
    %c0_i32_0 = arith.constant 0 : i32
    %c0_i32_1 = arith.constant 0 : i32
    return %c0_i32, %c0_i32_0 : i32, i32
  }
  func.func @transform_3(%arg0: i32) -> (i32, i32) {
    %c0_i32 = arith.constant 0 : i32
    %c0_i32_0 = arith.constant 0 : i32
    %c0_i32_1 = arith.constant 0 : i32
    return %c0_i32, %c0_i32_0 : i32, i32
  }
  func.func @transform_4(%arg0: i32) -> (i32, i32) {
    %c0_i32 = arith.constant 0 : i32
    %c0_i32_0 = arith.constant 0 : i32
    %c0_i32_1 = arith.constant 0 : i32
    return %c0_i32, %c0_i32_0 : i32, i32
  }
}

module attributes {stable_mosaic.version = 11 : i64} {
  func.func @_conv_bias_kernel(%arg0: i32, %arg1: memref<4x36xbf16, #tpu.memory_space<vmem>>, %arg2: memref<36x288xbf16, #tpu.memory_space<vmem>>, %arg3: memref<4x1xf32, #tpu.memory_space<vmem>>, %arg4: memref<4x288xf32, #tpu.memory_space<vmem>>) attributes {dimension_semantics = [#tpu.dimension_semantics<arbitrary>], iteration_bounds = array<i64: 1>, scalar_prefetch = 0 : i64, scratch_operands = 0 : i64, tpu.core_type = #tpu.core_type<tc>, window_params = [{pipeline_mode = #tpu.pipeline_mode<synchronous>, transform_indices = @transform_0, window_bounds = array<i64: 4, 36>}, {pipeline_mode = #tpu.pipeline_mode<synchronous>, transform_indices = @transform_1, window_bounds = array<i64: 36, 288>}, {pipeline_mode = #tpu.pipeline_mode<synchronous>, transform_indices = @transform_2, window_bounds = array<i64: 4, 1>}, {pipeline_mode = #tpu.pipeline_mode<synchronous>, transform_indices = @transform_3, window_bounds = array<i64: 4, 288>}]} {
    %c0 = arith.constant 0 : index
    %c0_0 = arith.constant 0 : index
    %0 = vector.load %arg1[%c0, %c0_0] : memref<4x36xbf16, #tpu.memory_space<vmem>>, vector<4x36xbf16>
    %c0_1 = arith.constant 0 : index
    %c0_2 = arith.constant 0 : index
    %1 = vector.load %arg2[%c0_1, %c0_2] : memref<36x288xbf16, #tpu.memory_space<vmem>>, vector<36x288xbf16>
    %cst = arith.constant dense<0.000000e+00> : vector<4x288xf32>
    %2 = tpu.matmul %0, %1, %cst {dimension_numbers = #tpu.dot_dimension_numbers<[1], [0], [0], [1], [0, 0, 1, 1], [], []>} : vector<4x36xbf16>, vector<36x288xbf16>, vector<4x288xf32> -> vector<4x288xf32>
    %c0_3 = arith.constant 0 : index
    %c0_4 = arith.constant 0 : index
    %3 = vector.load %arg3[%c0_3, %c0_4] : memref<4x1xf32, #tpu.memory_space<vmem>>, vector<4x1xf32>
    %4 = vector.broadcast %3 : vector<4x1xf32> to vector<4x288xf32>
    %5 = arith.addf %2, %4 : vector<4x288xf32>
    %c0_5 = arith.constant 0 : index
    %c0_6 = arith.constant 0 : index
    %6 = vector.load %arg4[%c0_5, %c0_6] : memref<4x288xf32, #tpu.memory_space<vmem>>, vector<4x288xf32>
    tpu.vector_store %arg4[%c0_5, %c0_6], %5 {strides = array<i32>} : memref<4x288xf32, #tpu.memory_space<vmem>>, vector<4x288xf32>,
    return
  }
  func.func @transform_0(%arg0: i32) -> (i32, i32) {
    %c0_i32 = arith.constant 0 : i32
    %c0_i32_0 = arith.constant 0 : i32
    %c0_i32_1 = arith.constant 0 : i32
    return %c0_i32, %c0_i32_0 : i32, i32
  }
  func.func @transform_1(%arg0: i32) -> (i32, i32) {
    %c0_i32 = arith.constant 0 : i32
    %c0_i32_0 = arith.constant 0 : i32
    %c0_i32_1 = arith.constant 0 : i32
    return %c0_i32, %c0_i32_0 : i32, i32
  }
  func.func @transform_2(%arg0: i32) -> (i32, i32) {
    %c0_i32 = arith.constant 0 : i32
    %c0_i32_0 = arith.constant 0 : i32
    %c0_i32_1 = arith.constant 0 : i32
    return %c0_i32, %c0_i32_0 : i32, i32
  }
  func.func @transform_3(%arg0: i32) -> (i32, i32) {
    %c0_i32 = arith.constant 0 : i32
    %c0_i32_0 = arith.constant 0 : i32
    %c0_i32_1 = arith.constant 0 : i32
    return %c0_i32, %c0_i32_0 : i32, i32
  }
}

module attributes {stable_mosaic.version = 11 : i64} {
  func.func @_conv_bias_kernel(%arg0: i32, %arg1: memref<8x100xbf16, #tpu.memory_space<vmem>>, %arg2: memref<100x200xbf16, #tpu.memory_space<vmem>>, %arg3: memref<8x1xf32, #tpu.memory_space<vmem>>, %arg4: memref<8x200xf32, #tpu.memory_space<vmem>>) attributes {dimension_semantics = [#tpu.dimension_semantics<arbitrary>], iteration_bounds = array<i64: 1>, scalar_prefetch = 0 : i64, scratch_operands = 0 : i64, tpu.core_type = #tpu.core_type<tc>, window_params = [{pipeline_mode = #tpu.pipeline_mode<synchronous>, transform_indices = @transform_0, window_bounds = array<i64: 8, 100>}, {pipeline_mode = #tpu.pipeline_mode<synchronous>, transform_indices = @transform_1, window_bounds = array<i64: 100, 200>}, {pipeline_mode = #tpu.pipeline_mode<synchronous>, transform_indices = @transform_2, window_bounds = array<i64: 8, 1>}, {pipeline_mode = #tpu.pipeline_mode<synchronous>, transform_indices = @transform_3, window_bounds = array<i64: 8, 200>}]} {
    %c0 = arith.constant 0 : index
    %c0_0 = arith.constant 0 : index
    %0 = vector.load %arg1[%c0, %c0_0] : memref<8x100xbf16, #tpu.memory_space<vmem>>, vector<8x100xbf16>
    %c0_1 = arith.constant 0 : index
    %c0_2 = arith.constant 0 : index
    %1 = vector.load %arg2[%c0_1, %c0_2] : memref<100x200xbf16, #tpu.memory_space<vmem>>, vector<100x200xbf16>
    %cst = arith.constant dense<0.000000e+00> : vector<8x200xf32>
    %2 = tpu.matmul %0, %1, %cst {dimension_numbers = #tpu.dot_dimension_numbers<[1], [0], [0], [1], [0, 0, 1, 1], [], []>} : vector<8x100xbf16>, vector<100x200xbf16>, vector<8x200xf32> -> vector<8x200xf32>
    %c0_3 = arith.constant 0 : index
    %c0_4 = arith.constant 0 : index
    %3 = vector.load %arg3[%c0_3, %c0_4] : memref<8x1xf32, #tpu.memory_space<vmem>>, vector<8x1xf32>
    %4 = vector.broadcast %3 : vector<8x1xf32> to vector<8x200xf32>
    %5 = arith.addf %2, %4 : vector<8x200xf32>
    %c0_5 = arith.constant 0 : index
    %c0_6 = arith.constant 0 : index
    %6 = vector.load %arg4[%c0_5, %c0_6] : memref<8x200xf32, #tpu.memory_space<vmem>>, vector<8x200xf32>
    tpu.vector_store %arg4[%c0_5, %c0_6], %5 {strides = array<i32>} : memref<8x200xf32, #tpu.memory_space<vmem>>, vector<8x200xf32>,
    return
  }
  func.func @transform_0(%arg0: i32) -> (i32, i32) {
    %c0_i32 = arith.constant 0 : i32
    %c0_i32_0 = arith.constant 0 : i32
    %c0_i32_1 = arith.constant 0 : i32
    return %c0_i32, %c0_i32_0 : i32, i32
  }
  func.func @transform_1(%arg0: i32) -> (i32, i32) {
    %c0_i32 = arith.constant 0 : i32
    %c0_i32_0 = arith.constant 0 : i32
    %c0_i32_1 = arith.constant 0 : i32
    return %c0_i32, %c0_i32_0 : i32, i32
  }
  func.func @transform_2(%arg0: i32) -> (i32, i32) {
    %c0_i32 = arith.constant 0 : i32
    %c0_i32_0 = arith.constant 0 : i32
    %c0_i32_1 = arith.constant 0 : i32
    return %c0_i32, %c0_i32_0 : i32, i32
  }
  func.func @transform_3(%arg0: i32) -> (i32, i32) {
    %c0_i32 = arith.constant 0 : i32
    %c0_i32_0 = arith.constant 0 : i32
    %c0_i32_1 = arith.constant 0 : i32
    return %c0_i32, %c0_i32_0 : i32, i32
  }
}

module attributes {stable_mosaic.version = 11 : i64} {
  func.func @_swish_layernorm_kernel(%arg0: i32, %arg1: memref<2x800xf32, #tpu.memory_space<vmem>>, %arg2: memref<1x800xf32, #tpu.memory_space<vmem>>, %arg3: memref<1x800xf32, #tpu.memory_space<vmem>>, %arg4: memref<2x800xf32, #tpu.memory_space<vmem>>) attributes {dimension_semantics = [#tpu.dimension_semantics<arbitrary>], iteration_bounds = array<i64: 1>, scalar_prefetch = 0 : i64, scratch_operands = 0 : i64, tpu.core_type = #tpu.core_type<tc>, window_params = [{pipeline_mode = #tpu.pipeline_mode<synchronous>, transform_indices = @transform_0, window_bounds = array<i64: 2, 800>}, {pipeline_mode = #tpu.pipeline_mode<synchronous>, transform_indices = @transform_1, window_bounds = array<i64: 1, 800>}, {pipeline_mode = #tpu.pipeline_mode<synchronous>, transform_indices = @transform_2, window_bounds = array<i64: 1, 800>}, {pipeline_mode = #tpu.pipeline_mode<synchronous>, transform_indices = @transform_3, window_bounds = array<i64: 2, 800>}]} {
    %c0 = arith.constant 0 : index
    %c0_0 = arith.constant 0 : index
    %0 = vector.load %arg1[%c0, %c0_0] : memref<2x800xf32, #tpu.memory_space<vmem>>, vector<2x800xf32>
    %cst = arith.constant dense<0.000000e+00> : vector<2xf32>
    %1 = vector.multi_reduction <add>, %0, %cst [1] : vector<2x800xf32> to vector<2xf32>
    %2 = vector.shape_cast %1 : vector<2xf32> to vector<2x1xf32>
    %cst_1 = arith.constant 8.000000e+02 : f32
    %3 = vector.broadcast %cst_1 : f32 to vector<2x1xf32>
    %4 = arith.divf %2, %3 : vector<2x1xf32>
    %5 = vector.broadcast %4 : vector<2x1xf32> to vector<2x800xf32>
    %6 = arith.subf %0, %5 : vector<2x800xf32>
    %7 = arith.mulf %6, %6 : vector<2x800xf32>
    %cst_2 = arith.constant dense<0.000000e+00> : vector<2xf32>
    %8 = vector.multi_reduction <add>, %7, %cst_2 [1] : vector<2x800xf32> to vector<2xf32>
    %9 = vector.shape_cast %8 : vector<2xf32> to vector<2x1xf32>
    %cst_3 = arith.constant 8.000000e+02 : f32
    %10 = vector.broadcast %cst_3 : f32 to vector<2x1xf32>
    %11 = arith.divf %9, %10 : vector<2x1xf32>
    %cst_4 = arith.constant 9.99999974E-6 : f32
    %12 = vector.broadcast %cst_4 : f32 to vector<2x1xf32>
    %13 = arith.addf %11, %12 : vector<2x1xf32>
    %14 = math.rsqrt %13 : vector<2x1xf32>
    %15 = vector.broadcast %14 : vector<2x1xf32> to vector<2x800xf32>
    %16 = arith.mulf %6, %15 : vector<2x800xf32>
    %c0_5 = arith.constant 0 : index
    %c0_6 = arith.constant 0 : index
    %17 = vector.load %arg2[%c0_5, %c0_6] : memref<1x800xf32, #tpu.memory_space<vmem>>, vector<1x800xf32>
    %18 = vector.broadcast %17 : vector<1x800xf32> to vector<2x800xf32>
    %19 = arith.mulf %16, %18 : vector<2x800xf32>
    %c0_7 = arith.constant 0 : index
    %c0_8 = arith.constant 0 : index
    %20 = vector.load %arg3[%c0_7, %c0_8] : memref<1x800xf32, #tpu.memory_space<vmem>>, vector<1x800xf32>
    %21 = vector.broadcast %20 : vector<1x800xf32> to vector<2x800xf32>
    %22 = arith.addf %19, %21 : vector<2x800xf32>
    %c0_9 = arith.constant 0 : index
    %c0_10 = arith.constant 0 : index
    %23 = vector.load %arg4[%c0_9, %c0_10] : memref<2x800xf32, #tpu.memory_space<vmem>>, vector<2x800xf32>
    tpu.vector_store %arg4[%c0_9, %c0_10], %22 {strides = array<i32>} : memref<2x800xf32, #tpu.memory_space<vmem>>, vector<2x800xf32>,
    return
  }
  func.func @transform_0(%arg0: i32) -> (i32, i32) {
    %c0_i32 = arith.constant 0 : i32
    %c0_i32_0 = arith.constant 0 : i32
    %c0_i32_1 = arith.constant 0 : i32
    return %c0_i32, %c0_i32_0 : i32, i32
  }
  func.func @transform_1(%arg0: i32) -> (i32, i32) {
    %c0_i32 = arith.constant 0 : i32
    %c0_i32_0 = arith.constant 0 : i32
    %c0_i32_1 = arith.constant 0 : i32
    return %c0_i32, %c0_i32_0 : i32, i32
  }
  func.func @transform_2(%arg0: i32) -> (i32, i32) {
    %c0_i32 = arith.constant 0 : i32
    %c0_i32_0 = arith.constant 0 : i32
    %c0_i32_1 = arith.constant 0 : i32
    return %c0_i32, %c0_i32_0 : i32, i32
  }
  func.func @transform_3(%arg0: i32) -> (i32, i32) {
    %c0_i32 = arith.constant 0 : i32
    %c0_i32_0 = arith.constant 0 : i32
    %c0_i32_1 = arith.constant 0 : i32
    return %c0_i32, %c0_i32_0 : i32, i32
  }
}

module attributes {stable_mosaic.version = 11 : i64} {
  func.func @_conv_swish_add_kernel(%arg0: i32, %arg1: memref<8x72xbf16, #tpu.memory_space<vmem>>, %arg2: memref<72x200xbf16, #tpu.memory_space<vmem>>, %arg3: memref<8x1xf32, #tpu.memory_space<vmem>>, %arg4: memref<1x200xf32, #tpu.memory_space<vmem>>, %arg5: memref<8x200xf32, #tpu.memory_space<vmem>>) attributes {dimension_semantics = [#tpu.dimension_semantics<arbitrary>], iteration_bounds = array<i64: 1>, scalar_prefetch = 0 : i64, scratch_operands = 0 : i64, tpu.core_type = #tpu.core_type<tc>, window_params = [{pipeline_mode = #tpu.pipeline_mode<synchronous>, transform_indices = @transform_0, window_bounds = array<i64: 8, 72>}, {pipeline_mode = #tpu.pipeline_mode<synchronous>, transform_indices = @transform_1, window_bounds = array<i64: 72, 200>}, {pipeline_mode = #tpu.pipeline_mode<synchronous>, transform_indices = @transform_2, window_bounds = array<i64: 8, 1>}, {pipeline_mode = #tpu.pipeline_mode<synchronous>, transform_indices = @transform_3, window_bounds = array<i64: 1, 200>}, {pipeline_mode = #tpu.pipeline_mode<synchronous>, transform_indices = @transform_4, window_bounds = array<i64: 8, 200>}]} {
    %c0 = arith.constant 0 : index
    %c0_0 = arith.constant 0 : index
    %0 = vector.load %arg1[%c0, %c0_0] : memref<8x72xbf16, #tpu.memory_space<vmem>>, vector<8x72xbf16>
    %c0_1 = arith.constant 0 : index
    %c0_2 = arith.constant 0 : index
    %1 = vector.load %arg2[%c0_1, %c0_2] : memref<72x200xbf16, #tpu.memory_space<vmem>>, vector<72x200xbf16>
    %cst = arith.constant dense<0.000000e+00> : vector<8x200xf32>
    %2 = tpu.matmul %0, %1, %cst {dimension_numbers = #tpu.dot_dimension_numbers<[1], [0], [0], [1], [0, 0, 1, 1], [], []>} : vector<8x72xbf16>, vector<72x200xbf16>, vector<8x200xf32> -> vector<8x200xf32>
    %c0_3 = arith.constant 0 : index
    %c0_4 = arith.constant 0 : index
    %3 = vector.load %arg3[%c0_3, %c0_4] : memref<8x1xf32, #tpu.memory_space<vmem>>, vector<8x1xf32>
    %4 = vector.broadcast %3 : vector<8x1xf32> to vector<8x200xf32>
    %5 = arith.addf %2, %4 : vector<8x200xf32>
    %cst_5 = arith.constant 0.000000e+00 : f32
    %6 = vector.broadcast %cst_5 : f32 to vector<8x200xf32>
    %7 = arith.subf %6, %5 : vector<8x200xf32>
    %8 = math.exp %7 : vector<8x200xf32>
    %cst_6 = arith.constant 1.000000e+00 : f32
    %9 = vector.broadcast %cst_6 : f32 to vector<8x200xf32>
    %10 = arith.addf %9, %8 : vector<8x200xf32>
    %11 = tpu.reciprocal %10 {approx = true} : vector<8x200xf32> -> vector<8x200xf32>
    %12 = arith.mulf %5, %11 : vector<8x200xf32>
    %c0_7 = arith.constant 0 : index
    %c0_8 = arith.constant 0 : index
    %13 = vector.load %arg4[%c0_7, %c0_8] : memref<1x200xf32, #tpu.memory_space<vmem>>, vector<1x200xf32>
    %14 = vector.broadcast %13 : vector<1x200xf32> to vector<8x200xf32>
    %15 = arith.addf %12, %14 : vector<8x200xf32>
    %c0_9 = arith.constant 0 : index
    %c0_10 = arith.constant 0 : index
    %16 = vector.load %arg5[%c0_9, %c0_10] : memref<8x200xf32, #tpu.memory_space<vmem>>, vector<8x200xf32>
    tpu.vector_store %arg5[%c0_9, %c0_10], %15 {strides = array<i32>} : memref<8x200xf32, #tpu.memory_space<vmem>>, vector<8x200xf32>,
    return
  }
  func.func @transform_0(%arg0: i32) -> (i32, i32) {
    %c0_i32 = arith.constant 0 : i32
    %c0_i32_0 = arith.constant 0 : i32
    %c0_i32_1 = arith.constant 0 : i32
    return %c0_i32, %c0_i32_0 : i32, i32
  }
  func.func @transform_1(%arg0: i32) -> (i32, i32) {
    %c0_i32 = arith.constant 0 : i32
    %c0_i32_0 = arith.constant 0 : i32
    %c0_i32_1 = arith.constant 0 : i32
    return %c0_i32, %c0_i32_0 : i32, i32
  }
  func.func @transform_2(%arg0: i32) -> (i32, i32) {
    %c0_i32 = arith.constant 0 : i32
    %c0_i32_0 = arith.constant 0 : i32
    %c0_i32_1 = arith.constant 0 : i32
    return %c0_i32, %c0_i32_0 : i32, i32
  }
  func.func @transform_3(%arg0: i32) -> (i32, i32) {
    %c0_i32 = arith.constant 0 : i32
    %c0_i32_0 = arith.constant 0 : i32
    %c0_i32_1 = arith.constant 0 : i32
    return %c0_i32, %c0_i32_0 : i32, i32
  }
  func.func @transform_4(%arg0: i32) -> (i32, i32) {
    %c0_i32 = arith.constant 0 : i32
    %c0_i32_0 = arith.constant 0 : i32
    %c0_i32_1 = arith.constant 0 : i32
    return %c0_i32, %c0_i32_0 : i32, i32
  }
}

module attributes {stable_mosaic.version = 11 : i64} {
  func.func @_conv_swish_add_kernel(%arg0: i32, %arg1: memref<8x72xbf16, #tpu.memory_space<vmem>>, %arg2: memref<72x200xbf16, #tpu.memory_space<vmem>>, %arg3: memref<8x1xf32, #tpu.memory_space<vmem>>, %arg4: memref<8x200xf32, #tpu.memory_space<vmem>>, %arg5: memref<8x200xf32, #tpu.memory_space<vmem>>) attributes {dimension_semantics = [#tpu.dimension_semantics<arbitrary>], iteration_bounds = array<i64: 1>, scalar_prefetch = 0 : i64, scratch_operands = 0 : i64, tpu.core_type = #tpu.core_type<tc>, window_params = [{pipeline_mode = #tpu.pipeline_mode<synchronous>, transform_indices = @transform_0, window_bounds = array<i64: 8, 72>}, {pipeline_mode = #tpu.pipeline_mode<synchronous>, transform_indices = @transform_1, window_bounds = array<i64: 72, 200>}, {pipeline_mode = #tpu.pipeline_mode<synchronous>, transform_indices = @transform_2, window_bounds = array<i64: 8, 1>}, {pipeline_mode = #tpu.pipeline_mode<synchronous>, transform_indices = @transform_3, window_bounds = array<i64: 8, 200>}, {pipeline_mode = #tpu.pipeline_mode<synchronous>, transform_indices = @transform_4, window_bounds = array<i64: 8, 200>}]} {
    %c0 = arith.constant 0 : index
    %c0_0 = arith.constant 0 : index
    %0 = vector.load %arg1[%c0, %c0_0] : memref<8x72xbf16, #tpu.memory_space<vmem>>, vector<8x72xbf16>
    %c0_1 = arith.constant 0 : index
    %c0_2 = arith.constant 0 : index
    %1 = vector.load %arg2[%c0_1, %c0_2] : memref<72x200xbf16, #tpu.memory_space<vmem>>, vector<72x200xbf16>
    %cst = arith.constant dense<0.000000e+00> : vector<8x200xf32>
    %2 = tpu.matmul %0, %1, %cst {dimension_numbers = #tpu.dot_dimension_numbers<[1], [0], [0], [1], [0, 0, 1, 1], [], []>} : vector<8x72xbf16>, vector<72x200xbf16>, vector<8x200xf32> -> vector<8x200xf32>
    %c0_3 = arith.constant 0 : index
    %c0_4 = arith.constant 0 : index
    %3 = vector.load %arg3[%c0_3, %c0_4] : memref<8x1xf32, #tpu.memory_space<vmem>>, vector<8x1xf32>
    %4 = vector.broadcast %3 : vector<8x1xf32> to vector<8x200xf32>
    %5 = arith.addf %2, %4 : vector<8x200xf32>
    %cst_5 = arith.constant 0.000000e+00 : f32
    %6 = vector.broadcast %cst_5 : f32 to vector<8x200xf32>
    %7 = arith.subf %6, %5 : vector<8x200xf32>
    %8 = math.exp %7 : vector<8x200xf32>
    %cst_6 = arith.constant 1.000000e+00 : f32
    %9 = vector.broadcast %cst_6 : f32 to vector<8x200xf32>
    %10 = arith.addf %9, %8 : vector<8x200xf32>
    %11 = tpu.reciprocal %10 {approx = true} : vector<8x200xf32> -> vector<8x200xf32>
    %12 = arith.mulf %5, %11 : vector<8x200xf32>
    %c0_7 = arith.constant 0 : index
    %c0_8 = arith.constant 0 : index
    %13 = vector.load %arg4[%c0_7, %c0_8] : memref<8x200xf32, #tpu.memory_space<vmem>>, vector<8x200xf32>
    %14 = arith.addf %12, %13 : vector<8x200xf32>
    %c0_9 = arith.constant 0 : index
    %c0_10 = arith.constant 0 : index
    %15 = vector.load %arg5[%c0_9, %c0_10] : memref<8x200xf32, #tpu.memory_space<vmem>>, vector<8x200xf32>
    tpu.vector_store %arg5[%c0_9, %c0_10], %14 {strides = array<i32>} : memref<8x200xf32, #tpu.memory_space<vmem>>, vector<8x200xf32>,
    return
  }
  func.func @transform_0(%arg0: i32) -> (i32, i32) {
    %c0_i32 = arith.constant 0 : i32
    %c0_i32_0 = arith.constant 0 : i32
    %c0_i32_1 = arith.constant 0 : i32
    return %c0_i32, %c0_i32_0 : i32, i32
  }
  func.func @transform_1(%arg0: i32) -> (i32, i32) {
    %c0_i32 = arith.constant 0 : i32
    %c0_i32_0 = arith.constant 0 : i32
    %c0_i32_1 = arith.constant 0 : i32
    return %c0_i32, %c0_i32_0 : i32, i32
  }
  func.func @transform_2(%arg0: i32) -> (i32, i32) {
    %c0_i32 = arith.constant 0 : i32
    %c0_i32_0 = arith.constant 0 : i32
    %c0_i32_1 = arith.constant 0 : i32
    return %c0_i32, %c0_i32_0 : i32, i32
  }
  func.func @transform_3(%arg0: i32) -> (i32, i32) {
    %c0_i32 = arith.constant 0 : i32
    %c0_i32_0 = arith.constant 0 : i32
    %c0_i32_1 = arith.constant 0 : i32
    return %c0_i32, %c0_i32_0 : i32, i32
  }
  func.func @transform_4(%arg0: i32) -> (i32, i32) {
    %c0_i32 = arith.constant 0 : i32
    %c0_i32_0 = arith.constant 0 : i32
    %c0_i32_1 = arith.constant 0 : i32
    return %c0_i32, %c0_i32_0 : i32, i32
  }
}

module attributes {stable_mosaic.version = 11 : i64} {
  func.func @_conv_bias_kernel(%arg0: i32, %arg1: memref<8x128xbf16, #tpu.memory_space<vmem>>, %arg2: memref<128x50xbf16, #tpu.memory_space<vmem>>, %arg3: memref<8x1xf32, #tpu.memory_space<vmem>>, %arg4: memref<8x50xf32, #tpu.memory_space<vmem>>) attributes {dimension_semantics = [#tpu.dimension_semantics<arbitrary>], iteration_bounds = array<i64: 1>, scalar_prefetch = 0 : i64, scratch_operands = 0 : i64, tpu.core_type = #tpu.core_type<tc>, window_params = [{pipeline_mode = #tpu.pipeline_mode<synchronous>, transform_indices = @transform_0, window_bounds = array<i64: 8, 128>}, {pipeline_mode = #tpu.pipeline_mode<synchronous>, transform_indices = @transform_1, window_bounds = array<i64: 128, 50>}, {pipeline_mode = #tpu.pipeline_mode<synchronous>, transform_indices = @transform_2, window_bounds = array<i64: 8, 1>}, {pipeline_mode = #tpu.pipeline_mode<synchronous>, transform_indices = @transform_3, window_bounds = array<i64: 8, 50>}]} {
    %c0 = arith.constant 0 : index
    %c0_0 = arith.constant 0 : index
    %0 = vector.load %arg1[%c0, %c0_0] : memref<8x128xbf16, #tpu.memory_space<vmem>>, vector<8x128xbf16>
    %c0_1 = arith.constant 0 : index
    %c0_2 = arith.constant 0 : index
    %1 = vector.load %arg2[%c0_1, %c0_2] : memref<128x50xbf16, #tpu.memory_space<vmem>>, vector<128x50xbf16>
    %cst = arith.constant dense<0.000000e+00> : vector<8x50xf32>
    %2 = tpu.matmul %0, %1, %cst {dimension_numbers = #tpu.dot_dimension_numbers<[1], [0], [0], [1], [0, 0, 1, 1], [], []>} : vector<8x128xbf16>, vector<128x50xbf16>, vector<8x50xf32> -> vector<8x50xf32>
    %c0_3 = arith.constant 0 : index
    %c0_4 = arith.constant 0 : index
    %3 = vector.load %arg3[%c0_3, %c0_4] : memref<8x1xf32, #tpu.memory_space<vmem>>, vector<8x1xf32>
    %4 = vector.broadcast %3 : vector<8x1xf32> to vector<8x50xf32>
    %5 = arith.addf %2, %4 : vector<8x50xf32>
    %c0_5 = arith.constant 0 : index
    %c0_6 = arith.constant 0 : index
    %6 = vector.load %arg4[%c0_5, %c0_6] : memref<8x50xf32, #tpu.memory_space<vmem>>, vector<8x50xf32>
    tpu.vector_store %arg4[%c0_5, %c0_6], %5 {strides = array<i32>} : memref<8x50xf32, #tpu.memory_space<vmem>>, vector<8x50xf32>,
    return
  }
  func.func @transform_0(%arg0: i32) -> (i32, i32) {
    %c0_i32 = arith.constant 0 : i32
    %c0_i32_0 = arith.constant 0 : i32
    %c0_i32_1 = arith.constant 0 : i32
    return %c0_i32, %c0_i32_0 : i32, i32
  }
  func.func @transform_1(%arg0: i32) -> (i32, i32) {
    %c0_i32 = arith.constant 0 : i32
    %c0_i32_0 = arith.constant 0 : i32
    %c0_i32_1 = arith.constant 0 : i32
    return %c0_i32, %c0_i32_0 : i32, i32
  }
  func.func @transform_2(%arg0: i32) -> (i32, i32) {
    %c0_i32 = arith.constant 0 : i32
    %c0_i32_0 = arith.constant 0 : i32
    %c0_i32_1 = arith.constant 0 : i32
    return %c0_i32, %c0_i32_0 : i32, i32
  }
  func.func @transform_3(%arg0: i32) -> (i32, i32) {
    %c0_i32 = arith.constant 0 : i32
    %c0_i32_0 = arith.constant 0 : i32
    %c0_i32_1 = arith.constant 0 : i32
    return %c0_i32, %c0_i32_0 : i32, i32
  }
}

module attributes {stable_mosaic.version = 11 : i64} {
  func.func @_attention_kernel(%arg0: i32, %arg1: memref<50x8xf32, #tpu.memory_space<vmem>>, %arg2: memref<8x24xbf16, #tpu.memory_space<vmem>>, %arg3: memref<1x24xf32, #tpu.memory_space<vmem>>, %arg4: memref<8x8xbf16, #tpu.memory_space<vmem>>, %arg5: memref<1x8xf32, #tpu.memory_space<vmem>>, %arg6: memref<50x8xf32, #tpu.memory_space<vmem>>) attributes {dimension_semantics = [#tpu.dimension_semantics<arbitrary>], iteration_bounds = array<i64: 1>, scalar_prefetch = 0 : i64, scratch_operands = 0 : i64, tpu.core_type = #tpu.core_type<tc>, window_params = [{pipeline_mode = #tpu.pipeline_mode<synchronous>, transform_indices = @transform_0, window_bounds = array<i64: 50, 8>}, {pipeline_mode = #tpu.pipeline_mode<synchronous>, transform_indices = @transform_1, window_bounds = array<i64: 8, 24>}, {pipeline_mode = #tpu.pipeline_mode<synchronous>, transform_indices = @transform_2, window_bounds = array<i64: 1, 24>}, {pipeline_mode = #tpu.pipeline_mode<synchronous>, transform_indices = @transform_3, window_bounds = array<i64: 8, 8>}, {pipeline_mode = #tpu.pipeline_mode<synchronous>, transform_indices = @transform_4, window_bounds = array<i64: 1, 8>}, {pipeline_mode = #tpu.pipeline_mode<synchronous>, transform_indices = @transform_5, window_bounds = array<i64: 50, 8>}]} {
    %c0 = arith.constant 0 : index
    %c0_0 = arith.constant 0 : index
    %0 = vector.load %arg1[%c0, %c0_0] : memref<50x8xf32, #tpu.memory_space<vmem>>, vector<25x8xf32>
    %c0_1 = arith.constant 0 : index
    %c0_2 = arith.constant 0 : index
    %1 = vector.load %arg2[%c0_1, %c0_2] : memref<8x24xbf16, #tpu.memory_space<vmem>>, vector<8x24xbf16>
    %2 = arith.truncf %0 : vector<25x8xf32> to vector<25x8xbf16>
    %cst = arith.constant dense<0.000000e+00> : vector<25x24xf32>
    %3 = tpu.matmul %2, %1, %cst {dimension_numbers = #tpu.dot_dimension_numbers<[1], [0], [0], [1], [0, 0, 1, 1], [], []>} : vector<25x8xbf16>, vector<8x24xbf16>, vector<25x24xf32> -> vector<25x24xf32>
    %c0_3 = arith.constant 0 : index
    %c0_4 = arith.constant 0 : index
    %4 = vector.load %arg3[%c0_3, %c0_4] : memref<1x24xf32, #tpu.memory_space<vmem>>, vector<1x24xf32>
    %5 = vector.broadcast %4 : vector<1x24xf32> to vector<25x24xf32>
    %6 = arith.addf %3, %5 : vector<25x24xf32>
    %7 = vector.extract_strided_slice %6 {offsets = [0, 0], sizes = [25, 8], strides = [1, 1]} : vector<25x24xf32> to vector<25x8xf32>
    %8 = vector.extract_strided_slice %6 {offsets = [0, 8], sizes = [25, 8], strides = [1, 1]} : vector<25x24xf32> to vector<25x8xf32>
    %9 = vector.extract_strided_slice %6 {offsets = [0, 16], sizes = [25, 8], strides = [1, 1]} : vector<25x24xf32> to vector<25x8xf32>
    %10 = arith.truncf %7 : vector<25x8xf32> to vector<25x8xbf16>
    %11 = arith.truncf %8 : vector<25x8xf32> to vector<25x8xbf16>
    %cst_5 = arith.constant dense<0.000000e+00> : vector<25x25xf32>
    %12 = tpu.matmul %10, %11, %cst_5 {dimension_numbers = #tpu.dot_dimension_numbers<[1], [1], [0], [0], [0, 0, 1, 0], [], []>} : vector<25x8xbf16>, vector<25x8xbf16>, vector<25x25xf32> -> vector<25x25xf32>
    %cst_6 = arith.constant 0.353553385 : f32
    %13 = vector.broadcast %cst_6 : f32 to vector<25x25xf32>
    %14 = arith.mulf %12, %13 : vector<25x25xf32>
    %cst_7 = arith.constant dense<0xFF800000> : vector<25xf32>
    %15 = vector.multi_reduction <maximumf>, %14, %cst_7 [1] : vector<25x25xf32> to vector<25xf32>
    %16 = vector.shape_cast %15 : vector<25xf32> to vector<25x1xf32>
    %17 = vector.broadcast %16 : vector<25x1xf32> to vector<25x25xf32>
    %18 = arith.subf %14, %17 : vector<25x25xf32>
    %19 = math.exp %18 : vector<25x25xf32>
    %cst_8 = arith.constant dense<0.000000e+00> : vector<25xf32>
    %20 = vector.multi_reduction <add>, %19, %cst_8 [1] : vector<25x25xf32> to vector<25xf32>
    %21 = vector.shape_cast %20 : vector<25xf32> to vector<25x1xf32>
    %22 = tpu.reciprocal %21 {approx = true} : vector<25x1xf32> -> vector<25x1xf32>
    %23 = vector.broadcast %22 : vector<25x1xf32> to vector<25x25xf32>
    %24 = arith.mulf %19, %23 : vector<25x25xf32>
    %25 = arith.truncf %24 : vector<25x25xf32> to vector<25x25xbf16>
    %26 = arith.truncf %9 : vector<25x8xf32> to vector<25x8xbf16>
    %cst_9 = arith.constant dense<0.000000e+00> : vector<25x8xf32>
    %27 = tpu.matmul %25, %26, %cst_9 {dimension_numbers = #tpu.dot_dimension_numbers<[1], [0], [0], [1], [0, 0, 1, 1], [], []>} : vector<25x25xbf16>, vector<25x8xbf16>, vector<25x8xf32> -> vector<25x8xf32>
    %c0_10 = arith.constant 0 : index
    %c0_11 = arith.constant 0 : index
    %28 = vector.load %arg4[%c0_10, %c0_11] : memref<8x8xbf16, #tpu.memory_space<vmem>>, vector<8x8xbf16>
    %29 = arith.truncf %27 : vector<25x8xf32> to vector<25x8xbf16>
    %cst_12 = arith.constant dense<0.000000e+00> : vector<25x8xf32>
    %30 = tpu.matmul %29, %28, %cst_12 {dimension_numbers = #tpu.dot_dimension_numbers<[1], [0], [0], [1], [0, 0, 1, 1], [], []>} : vector<25x8xbf16>, vector<8x8xbf16>, vector<25x8xf32> -> vector<25x8xf32>
    %c0_13 = arith.constant 0 : index
    %c0_14 = arith.constant 0 : index
    %31 = vector.load %arg5[%c0_13, %c0_14] : memref<1x8xf32, #tpu.memory_space<vmem>>, vector<1x8xf32>
    %32 = vector.broadcast %31 : vector<1x8xf32> to vector<25x8xf32>
    %33 = arith.addf %30, %32 : vector<25x8xf32>
    %34 = arith.addf %0, %33 : vector<25x8xf32>
    %c0_15 = arith.constant 0 : index
    %c0_16 = arith.constant 0 : index
    %35 = vector.load %arg6[%c0_15, %c0_16] : memref<50x8xf32, #tpu.memory_space<vmem>>, vector<25x8xf32>
    tpu.vector_store %arg6[%c0_15, %c0_16], %34 {strides = array<i32>} : memref<50x8xf32, #tpu.memory_space<vmem>>, vector<25x8xf32>,
    %c25 = arith.constant 25 : index
    %c0_17 = arith.constant 0 : index
    %36 = vector.load %arg1[%c25, %c0_17] : memref<50x8xf32, #tpu.memory_space<vmem>>, vector<25x8xf32>
    %c0_18 = arith.constant 0 : index
    %c0_19 = arith.constant 0 : index
    %37 = vector.load %arg2[%c0_18, %c0_19] : memref<8x24xbf16, #tpu.memory_space<vmem>>, vector<8x24xbf16>
    %38 = arith.truncf %36 : vector<25x8xf32> to vector<25x8xbf16>
    %cst_20 = arith.constant dense<0.000000e+00> : vector<25x24xf32>
    %39 = tpu.matmul %38, %37, %cst_20 {dimension_numbers = #tpu.dot_dimension_numbers<[1], [0], [0], [1], [0, 0, 1, 1], [], []>} : vector<25x8xbf16>, vector<8x24xbf16>, vector<25x24xf32> -> vector<25x24xf32>
    %c0_21 = arith.constant 0 : index
    %c0_22 = arith.constant 0 : index
    %40 = vector.load %arg3[%c0_21, %c0_22] : memref<1x24xf32, #tpu.memory_space<vmem>>, vector<1x24xf32>
    %41 = vector.broadcast %40 : vector<1x24xf32> to vector<25x24xf32>
    %42 = arith.addf %39, %41 : vector<25x24xf32>
    %43 = vector.extract_strided_slice %42 {offsets = [0, 0], sizes = [25, 8], strides = [1, 1]} : vector<25x24xf32> to vector<25x8xf32>
    %44 = vector.extract_strided_slice %42 {offsets = [0, 8], sizes = [25, 8], strides = [1, 1]} : vector<25x24xf32> to vector<25x8xf32>
    %45 = vector.extract_strided_slice %42 {offsets = [0, 16], sizes = [25, 8], strides = [1, 1]} : vector<25x24xf32> to vector<25x8xf32>
    %46 = arith.truncf %43 : vector<25x8xf32> to vector<25x8xbf16>
    %47 = arith.truncf %44 : vector<25x8xf32> to vector<25x8xbf16>
    %cst_23 = arith.constant dense<0.000000e+00> : vector<25x25xf32>
    %48 = tpu.matmul %46, %47, %cst_23 {dimension_numbers = #tpu.dot_dimension_numbers<[1], [1], [0], [0], [0, 0, 1, 0], [], []>} : vector<25x8xbf16>, vector<25x8xbf16>, vector<25x25xf32> -> vector<25x25xf32>
    %cst_24 = arith.constant 0.353553385 : f32
    %49 = vector.broadcast %cst_24 : f32 to vector<25x25xf32>
    %50 = arith.mulf %48, %49 : vector<25x25xf32>
    %cst_25 = arith.constant dense<0xFF800000> : vector<25xf32>
    %51 = vector.multi_reduction <maximumf>, %50, %cst_25 [1] : vector<25x25xf32> to vector<25xf32>
    %52 = vector.shape_cast %51 : vector<25xf32> to vector<25x1xf32>
    %53 = vector.broadcast %52 : vector<25x1xf32> to vector<25x25xf32>
    %54 = arith.subf %50, %53 : vector<25x25xf32>
    %55 = math.exp %54 : vector<25x25xf32>
    %cst_26 = arith.constant dense<0.000000e+00> : vector<25xf32>
    %56 = vector.multi_reduction <add>, %55, %cst_26 [1] : vector<25x25xf32> to vector<25xf32>
    %57 = vector.shape_cast %56 : vector<25xf32> to vector<25x1xf32>
    %58 = tpu.reciprocal %57 {approx = true} : vector<25x1xf32> -> vector<25x1xf32>
    %59 = vector.broadcast %58 : vector<25x1xf32> to vector<25x25xf32>
    %60 = arith.mulf %55, %59 : vector<25x25xf32>
    %61 = arith.truncf %60 : vector<25x25xf32> to vector<25x25xbf16>
    %62 = arith.truncf %45 : vector<25x8xf32> to vector<25x8xbf16>
    %cst_27 = arith.constant dense<0.000000e+00> : vector<25x8xf32>
    %63 = tpu.matmul %61, %62, %cst_27 {dimension_numbers = #tpu.dot_dimension_numbers<[1], [0], [0], [1], [0, 0, 1, 1], [], []>} : vector<25x25xbf16>, vector<25x8xbf16>, vector<25x8xf32> -> vector<25x8xf32>
    %c0_28 = arith.constant 0 : index
    %c0_29 = arith.constant 0 : index
    %64 = vector.load %arg4[%c0_28, %c0_29] : memref<8x8xbf16, #tpu.memory_space<vmem>>, vector<8x8xbf16>
    %65 = arith.truncf %63 : vector<25x8xf32> to vector<25x8xbf16>
    %cst_30 = arith.constant dense<0.000000e+00> : vector<25x8xf32>
    %66 = tpu.matmul %65, %64, %cst_30 {dimension_numbers = #tpu.dot_dimension_numbers<[1], [0], [0], [1], [0, 0, 1, 1], [], []>} : vector<25x8xbf16>, vector<8x8xbf16>, vector<25x8xf32> -> vector<25x8xf32>
    %c0_31 = arith.constant 0 : index
    %c0_32 = arith.constant 0 : index
    %67 = vector.load %arg5[%c0_31, %c0_32] : memref<1x8xf32, #tpu.memory_space<vmem>>, vector<1x8xf32>
    %68 = vector.broadcast %67 : vector<1x8xf32> to vector<25x8xf32>
    %69 = arith.addf %66, %68 : vector<25x8xf32>
    %70 = arith.addf %36, %69 : vector<25x8xf32>
    %c25_33 = arith.constant 25 : index
    %c0_34 = arith.constant 0 : index
    %71 = vector.load %arg6[%c25_33, %c0_34] : memref<50x8xf32, #tpu.memory_space<vmem>>, vector<25x8xf32>
    tpu.vector_store %arg6[%c25_33, %c0_34], %70 {strides = array<i32>} : memref<50x8xf32, #tpu.memory_space<vmem>>, vector<25x8xf32>,
    return
  }
  func.func @transform_0(%arg0: i32) -> (i32, i32) {
    %c0_i32 = arith.constant 0 : i32
    %c0_i32_0 = arith.constant 0 : i32
    %c0_i32_1 = arith.constant 0 : i32
    return %c0_i32, %c0_i32_0 : i32, i32
  }
  func.func @transform_1(%arg0: i32) -> (i32, i32) {
    %c0_i32 = arith.constant 0 : i32
    %c0_i32_0 = arith.constant 0 : i32
    %c0_i32_1 = arith.constant 0 : i32
    return %c0_i32, %c0_i32_0 : i32, i32
  }
  func.func @transform_2(%arg0: i32) -> (i32, i32) {
    %c0_i32 = arith.constant 0 : i32
    %c0_i32_0 = arith.constant 0 : i32
    %c0_i32_1 = arith.constant 0 : i32
    return %c0_i32, %c0_i32_0 : i32, i32
  }
  func.func @transform_3(%arg0: i32) -> (i32, i32) {
    %c0_i32 = arith.constant 0 : i32
    %c0_i32_0 = arith.constant 0 : i32
    %c0_i32_1 = arith.constant 0 : i32
    return %c0_i32, %c0_i32_0 : i32, i32
  }
  func.func @transform_4(%arg0: i32) -> (i32, i32) {
    %c0_i32 = arith.constant 0 : i32
    %c0_i32_0 = arith.constant 0 : i32
    %c0_i32_1 = arith.constant 0 : i32
    return %c0_i32, %c0_i32_0 : i32, i32
  }
  func.func @transform_5(%arg0: i32) -> (i32, i32) {
    %c0_i32 = arith.constant 0 : i32
    %c0_i32_0 = arith.constant 0 : i32
    %c0_i32_1 = arith.constant 0 : i32
    return %c0_i32, %c0_i32_0 : i32, i32
  }
}

module attributes {stable_mosaic.version = 11 : i64} {
  func.func @_conv_swish_add_kernel(%arg0: i32, %arg1: memref<8x72xbf16, #tpu.memory_space<vmem>>, %arg2: memref<72x50xbf16, #tpu.memory_space<vmem>>, %arg3: memref<8x1xf32, #tpu.memory_space<vmem>>, %arg4: memref<1x50xf32, #tpu.memory_space<vmem>>, %arg5: memref<8x50xf32, #tpu.memory_space<vmem>>) attributes {dimension_semantics = [#tpu.dimension_semantics<arbitrary>], iteration_bounds = array<i64: 1>, scalar_prefetch = 0 : i64, scratch_operands = 0 : i64, tpu.core_type = #tpu.core_type<tc>, window_params = [{pipeline_mode = #tpu.pipeline_mode<synchronous>, transform_indices = @transform_0, window_bounds = array<i64: 8, 72>}, {pipeline_mode = #tpu.pipeline_mode<synchronous>, transform_indices = @transform_1, window_bounds = array<i64: 72, 50>}, {pipeline_mode = #tpu.pipeline_mode<synchronous>, transform_indices = @transform_2, window_bounds = array<i64: 8, 1>}, {pipeline_mode = #tpu.pipeline_mode<synchronous>, transform_indices = @transform_3, window_bounds = array<i64: 1, 50>}, {pipeline_mode = #tpu.pipeline_mode<synchronous>, transform_indices = @transform_4, window_bounds = array<i64: 8, 50>}]} {
    %c0 = arith.constant 0 : index
    %c0_0 = arith.constant 0 : index
    %0 = vector.load %arg1[%c0, %c0_0] : memref<8x72xbf16, #tpu.memory_space<vmem>>, vector<8x72xbf16>
    %c0_1 = arith.constant 0 : index
    %c0_2 = arith.constant 0 : index
    %1 = vector.load %arg2[%c0_1, %c0_2] : memref<72x50xbf16, #tpu.memory_space<vmem>>, vector<72x50xbf16>
    %cst = arith.constant dense<0.000000e+00> : vector<8x50xf32>
    %2 = tpu.matmul %0, %1, %cst {dimension_numbers = #tpu.dot_dimension_numbers<[1], [0], [0], [1], [0, 0, 1, 1], [], []>} : vector<8x72xbf16>, vector<72x50xbf16>, vector<8x50xf32> -> vector<8x50xf32>
    %c0_3 = arith.constant 0 : index
    %c0_4 = arith.constant 0 : index
    %3 = vector.load %arg3[%c0_3, %c0_4] : memref<8x1xf32, #tpu.memory_space<vmem>>, vector<8x1xf32>
    %4 = vector.broadcast %3 : vector<8x1xf32> to vector<8x50xf32>
    %5 = arith.addf %2, %4 : vector<8x50xf32>
    %cst_5 = arith.constant 0.000000e+00 : f32
    %6 = vector.broadcast %cst_5 : f32 to vector<8x50xf32>
    %7 = arith.subf %6, %5 : vector<8x50xf32>
    %8 = math.exp %7 : vector<8x50xf32>
    %cst_6 = arith.constant 1.000000e+00 : f32
    %9 = vector.broadcast %cst_6 : f32 to vector<8x50xf32>
    %10 = arith.addf %9, %8 : vector<8x50xf32>
    %11 = tpu.reciprocal %10 {approx = true} : vector<8x50xf32> -> vector<8x50xf32>
    %12 = arith.mulf %5, %11 : vector<8x50xf32>
    %c0_7 = arith.constant 0 : index
    %c0_8 = arith.constant 0 : index
    %13 = vector.load %arg4[%c0_7, %c0_8] : memref<1x50xf32, #tpu.memory_space<vmem>>, vector<1x50xf32>
    %14 = vector.broadcast %13 : vector<1x50xf32> to vector<8x50xf32>
    %15 = arith.addf %12, %14 : vector<8x50xf32>
    %c0_9 = arith.constant 0 : index
    %c0_10 = arith.constant 0 : index
    %16 = vector.load %arg5[%c0_9, %c0_10] : memref<8x50xf32, #tpu.memory_space<vmem>>, vector<8x50xf32>
    tpu.vector_store %arg5[%c0_9, %c0_10], %15 {strides = array<i32>} : memref<8x50xf32, #tpu.memory_space<vmem>>, vector<8x50xf32>,
    return
  }
  func.func @transform_0(%arg0: i32) -> (i32, i32) {
    %c0_i32 = arith.constant 0 : i32
    %c0_i32_0 = arith.constant 0 : i32
    %c0_i32_1 = arith.constant 0 : i32
    return %c0_i32, %c0_i32_0 : i32, i32
  }
  func.func @transform_1(%arg0: i32) -> (i32, i32) {
    %c0_i32 = arith.constant 0 : i32
    %c0_i32_0 = arith.constant 0 : i32
    %c0_i32_1 = arith.constant 0 : i32
    return %c0_i32, %c0_i32_0 : i32, i32
  }
  func.func @transform_2(%arg0: i32) -> (i32, i32) {
    %c0_i32 = arith.constant 0 : i32
    %c0_i32_0 = arith.constant 0 : i32
    %c0_i32_1 = arith.constant 0 : i32
    return %c0_i32, %c0_i32_0 : i32, i32
  }
  func.func @transform_3(%arg0: i32) -> (i32, i32) {
    %c0_i32 = arith.constant 0 : i32
    %c0_i32_0 = arith.constant 0 : i32
    %c0_i32_1 = arith.constant 0 : i32
    return %c0_i32, %c0_i32_0 : i32, i32
  }
  func.func @transform_4(%arg0: i32) -> (i32, i32) {
    %c0_i32 = arith.constant 0 : i32
    %c0_i32_0 = arith.constant 0 : i32
    %c0_i32_1 = arith.constant 0 : i32
    return %c0_i32, %c0_i32_0 : i32, i32
  }
}

module attributes {stable_mosaic.version = 11 : i64} {
  func.func @_conv_swish_add_kernel(%arg0: i32, %arg1: memref<8x72xbf16, #tpu.memory_space<vmem>>, %arg2: memref<72x50xbf16, #tpu.memory_space<vmem>>, %arg3: memref<8x1xf32, #tpu.memory_space<vmem>>, %arg4: memref<8x50xf32, #tpu.memory_space<vmem>>, %arg5: memref<8x50xf32, #tpu.memory_space<vmem>>) attributes {dimension_semantics = [#tpu.dimension_semantics<arbitrary>], iteration_bounds = array<i64: 1>, scalar_prefetch = 0 : i64, scratch_operands = 0 : i64, tpu.core_type = #tpu.core_type<tc>, window_params = [{pipeline_mode = #tpu.pipeline_mode<synchronous>, transform_indices = @transform_0, window_bounds = array<i64: 8, 72>}, {pipeline_mode = #tpu.pipeline_mode<synchronous>, transform_indices = @transform_1, window_bounds = array<i64: 72, 50>}, {pipeline_mode = #tpu.pipeline_mode<synchronous>, transform_indices = @transform_2, window_bounds = array<i64: 8, 1>}, {pipeline_mode = #tpu.pipeline_mode<synchronous>, transform_indices = @transform_3, window_bounds = array<i64: 8, 50>}, {pipeline_mode = #tpu.pipeline_mode<synchronous>, transform_indices = @transform_4, window_bounds = array<i64: 8, 50>}]} {
    %c0 = arith.constant 0 : index
    %c0_0 = arith.constant 0 : index
    %0 = vector.load %arg1[%c0, %c0_0] : memref<8x72xbf16, #tpu.memory_space<vmem>>, vector<8x72xbf16>
    %c0_1 = arith.constant 0 : index
    %c0_2 = arith.constant 0 : index
    %1 = vector.load %arg2[%c0_1, %c0_2] : memref<72x50xbf16, #tpu.memory_space<vmem>>, vector<72x50xbf16>
    %cst = arith.constant dense<0.000000e+00> : vector<8x50xf32>
    %2 = tpu.matmul %0, %1, %cst {dimension_numbers = #tpu.dot_dimension_numbers<[1], [0], [0], [1], [0, 0, 1, 1], [], []>} : vector<8x72xbf16>, vector<72x50xbf16>, vector<8x50xf32> -> vector<8x50xf32>
    %c0_3 = arith.constant 0 : index
    %c0_4 = arith.constant 0 : index
    %3 = vector.load %arg3[%c0_3, %c0_4] : memref<8x1xf32, #tpu.memory_space<vmem>>, vector<8x1xf32>
    %4 = vector.broadcast %3 : vector<8x1xf32> to vector<8x50xf32>
    %5 = arith.addf %2, %4 : vector<8x50xf32>
    %cst_5 = arith.constant 0.000000e+00 : f32
    %6 = vector.broadcast %cst_5 : f32 to vector<8x50xf32>
    %7 = arith.subf %6, %5 : vector<8x50xf32>
    %8 = math.exp %7 : vector<8x50xf32>
    %cst_6 = arith.constant 1.000000e+00 : f32
    %9 = vector.broadcast %cst_6 : f32 to vector<8x50xf32>
    %10 = arith.addf %9, %8 : vector<8x50xf32>
    %11 = tpu.reciprocal %10 {approx = true} : vector<8x50xf32> -> vector<8x50xf32>
    %12 = arith.mulf %5, %11 : vector<8x50xf32>
    %c0_7 = arith.constant 0 : index
    %c0_8 = arith.constant 0 : index
    %13 = vector.load %arg4[%c0_7, %c0_8] : memref<8x50xf32, #tpu.memory_space<vmem>>, vector<8x50xf32>
    %14 = arith.addf %12, %13 : vector<8x50xf32>
    %c0_9 = arith.constant 0 : index
    %c0_10 = arith.constant 0 : index
    %15 = vector.load %arg5[%c0_9, %c0_10] : memref<8x50xf32, #tpu.memory_space<vmem>>, vector<8x50xf32>
    tpu.vector_store %arg5[%c0_9, %c0_10], %14 {strides = array<i32>} : memref<8x50xf32, #tpu.memory_space<vmem>>, vector<8x50xf32>,
    return
  }
  func.func @transform_0(%arg0: i32) -> (i32, i32) {
    %c0_i32 = arith.constant 0 : i32
    %c0_i32_0 = arith.constant 0 : i32
    %c0_i32_1 = arith.constant 0 : i32
    return %c0_i32, %c0_i32_0 : i32, i32
  }
  func.func @transform_1(%arg0: i32) -> (i32, i32) {
    %c0_i32 = arith.constant 0 : i32
    %c0_i32_0 = arith.constant 0 : i32
    %c0_i32_1 = arith.constant 0 : i32
    return %c0_i32, %c0_i32_0 : i32, i32
  }
  func.func @transform_2(%arg0: i32) -> (i32, i32) {
    %c0_i32 = arith.constant 0 : i32
    %c0_i32_0 = arith.constant 0 : i32
    %c0_i32_1 = arith.constant 0 : i32
    return %c0_i32, %c0_i32_0 : i32, i32
  }
  func.func @transform_3(%arg0: i32) -> (i32, i32) {
    %c0_i32 = arith.constant 0 : i32
    %c0_i32_0 = arith.constant 0 : i32
    %c0_i32_1 = arith.constant 0 : i32
    return %c0_i32, %c0_i32_0 : i32, i32
  }
  func.func @transform_4(%arg0: i32) -> (i32, i32) {
    %c0_i32 = arith.constant 0 : i32
    %c0_i32_0 = arith.constant 0 : i32
    %c0_i32_1 = arith.constant 0 : i32
    return %c0_i32, %c0_i32_0 : i32, i32
  }
}

module attributes {stable_mosaic.version = 11 : i64} {
  func.func @_conv_bias_kernel(%arg0: i32, %arg1: memref<4x32xbf16, #tpu.memory_space<vmem>>, %arg2: memref<32x338xbf16, #tpu.memory_space<vmem>>, %arg3: memref<4x1xf32, #tpu.memory_space<vmem>>, %arg4: memref<4x338xf32, #tpu.memory_space<vmem>>) attributes {dimension_semantics = [#tpu.dimension_semantics<arbitrary>], iteration_bounds = array<i64: 1>, scalar_prefetch = 0 : i64, scratch_operands = 0 : i64, tpu.core_type = #tpu.core_type<tc>, window_params = [{pipeline_mode = #tpu.pipeline_mode<synchronous>, transform_indices = @transform_0, window_bounds = array<i64: 4, 32>}, {pipeline_mode = #tpu.pipeline_mode<synchronous>, transform_indices = @transform_1, window_bounds = array<i64: 32, 338>}, {pipeline_mode = #tpu.pipeline_mode<synchronous>, transform_indices = @transform_2, window_bounds = array<i64: 4, 1>}, {pipeline_mode = #tpu.pipeline_mode<synchronous>, transform_indices = @transform_3, window_bounds = array<i64: 4, 338>}]} {
    %c0 = arith.constant 0 : index
    %c0_0 = arith.constant 0 : index
    %0 = vector.load %arg1[%c0, %c0_0] : memref<4x32xbf16, #tpu.memory_space<vmem>>, vector<4x32xbf16>
    %c0_1 = arith.constant 0 : index
    %c0_2 = arith.constant 0 : index
    %1 = vector.load %arg2[%c0_1, %c0_2] : memref<32x338xbf16, #tpu.memory_space<vmem>>, vector<32x338xbf16>
    %cst = arith.constant dense<0.000000e+00> : vector<4x338xf32>
    %2 = tpu.matmul %0, %1, %cst {dimension_numbers = #tpu.dot_dimension_numbers<[1], [0], [0], [1], [0, 0, 1, 1], [], []>} : vector<4x32xbf16>, vector<32x338xbf16>, vector<4x338xf32> -> vector<4x338xf32>
    %c0_3 = arith.constant 0 : index
    %c0_4 = arith.constant 0 : index
    %3 = vector.load %arg3[%c0_3, %c0_4] : memref<4x1xf32, #tpu.memory_space<vmem>>, vector<4x1xf32>
    %4 = vector.broadcast %3 : vector<4x1xf32> to vector<4x338xf32>
    %5 = arith.addf %2, %4 : vector<4x338xf32>
    %c0_5 = arith.constant 0 : index
    %c0_6 = arith.constant 0 : index
    %6 = vector.load %arg4[%c0_5, %c0_6] : memref<4x338xf32, #tpu.memory_space<vmem>>, vector<4x338xf32>
    tpu.vector_store %arg4[%c0_5, %c0_6], %5 {strides = array<i32>} : memref<4x338xf32, #tpu.memory_space<vmem>>, vector<4x338xf32>,
    return
  }
  func.func @transform_0(%arg0: i32) -> (i32, i32) {
    %c0_i32 = arith.constant 0 : i32
    %c0_i32_0 = arith.constant 0 : i32
    %c0_i32_1 = arith.constant 0 : i32
    return %c0_i32, %c0_i32_0 : i32, i32
  }
  func.func @transform_1(%arg0: i32) -> (i32, i32) {
    %c0_i32 = arith.constant 0 : i32
    %c0_i32_0 = arith.constant 0 : i32
    %c0_i32_1 = arith.constant 0 : i32
    return %c0_i32, %c0_i32_0 : i32, i32
  }
  func.func @transform_2(%arg0: i32) -> (i32, i32) {
    %c0_i32 = arith.constant 0 : i32
    %c0_i32_0 = arith.constant 0 : i32
    %c0_i32_1 = arith.constant 0 : i32
    return %c0_i32, %c0_i32_0 : i32, i32
  }
  func.func @transform_3(%arg0: i32) -> (i32, i32) {
    %c0_i32 = arith.constant 0 : i32
    %c0_i32_0 = arith.constant 0 : i32
    %c0_i32_1 = arith.constant 0 : i32
    return %c0_i32, %c0_i32_0 : i32, i32
  }
}

module attributes {stable_mosaic.version = 11 : i64} {
  func.func @_conv_swish_add_kernel(%arg0: i32, %arg1: memref<4x36xbf16, #tpu.memory_space<vmem>>, %arg2: memref<36x338xbf16, #tpu.memory_space<vmem>>, %arg3: memref<4x1xf32, #tpu.memory_space<vmem>>, %arg4: memref<1x338xf32, #tpu.memory_space<vmem>>, %arg5: memref<4x338xf32, #tpu.memory_space<vmem>>) attributes {dimension_semantics = [#tpu.dimension_semantics<arbitrary>], iteration_bounds = array<i64: 1>, scalar_prefetch = 0 : i64, scratch_operands = 0 : i64, tpu.core_type = #tpu.core_type<tc>, window_params = [{pipeline_mode = #tpu.pipeline_mode<synchronous>, transform_indices = @transform_0, window_bounds = array<i64: 4, 36>}, {pipeline_mode = #tpu.pipeline_mode<synchronous>, transform_indices = @transform_1, window_bounds = array<i64: 36, 338>}, {pipeline_mode = #tpu.pipeline_mode<synchronous>, transform_indices = @transform_2, window_bounds = array<i64: 4, 1>}, {pipeline_mode = #tpu.pipeline_mode<synchronous>, transform_indices = @transform_3, window_bounds = array<i64: 1, 338>}, {pipeline_mode = #tpu.pipeline_mode<synchronous>, transform_indices = @transform_4, window_bounds = array<i64: 4, 338>}]} {
    %c0 = arith.constant 0 : index
    %c0_0 = arith.constant 0 : index
    %0 = vector.load %arg1[%c0, %c0_0] : memref<4x36xbf16, #tpu.memory_space<vmem>>, vector<4x36xbf16>
    %c0_1 = arith.constant 0 : index
    %c0_2 = arith.constant 0 : index
    %1 = vector.load %arg2[%c0_1, %c0_2] : memref<36x338xbf16, #tpu.memory_space<vmem>>, vector<36x338xbf16>
    %cst = arith.constant dense<0.000000e+00> : vector<4x338xf32>
    %2 = tpu.matmul %0, %1, %cst {dimension_numbers = #tpu.dot_dimension_numbers<[1], [0], [0], [1], [0, 0, 1, 1], [], []>} : vector<4x36xbf16>, vector<36x338xbf16>, vector<4x338xf32> -> vector<4x338xf32>
    %c0_3 = arith.constant 0 : index
    %c0_4 = arith.constant 0 : index
    %3 = vector.load %arg3[%c0_3, %c0_4] : memref<4x1xf32, #tpu.memory_space<vmem>>, vector<4x1xf32>
    %4 = vector.broadcast %3 : vector<4x1xf32> to vector<4x338xf32>
    %5 = arith.addf %2, %4 : vector<4x338xf32>
    %cst_5 = arith.constant 0.000000e+00 : f32
    %6 = vector.broadcast %cst_5 : f32 to vector<4x338xf32>
    %7 = arith.subf %6, %5 : vector<4x338xf32>
    %8 = math.exp %7 : vector<4x338xf32>
    %cst_6 = arith.constant 1.000000e+00 : f32
    %9 = vector.broadcast %cst_6 : f32 to vector<4x338xf32>
    %10 = arith.addf %9, %8 : vector<4x338xf32>
    %11 = tpu.reciprocal %10 {approx = true} : vector<4x338xf32> -> vector<4x338xf32>
    %12 = arith.mulf %5, %11 : vector<4x338xf32>
    %c0_7 = arith.constant 0 : index
    %c0_8 = arith.constant 0 : index
    %13 = vector.load %arg4[%c0_7, %c0_8] : memref<1x338xf32, #tpu.memory_space<vmem>>, vector<1x338xf32>
    %14 = vector.broadcast %13 : vector<1x338xf32> to vector<4x338xf32>
    %15 = arith.addf %12, %14 : vector<4x338xf32>
    %c0_9 = arith.constant 0 : index
    %c0_10 = arith.constant 0 : index
    %16 = vector.load %arg5[%c0_9, %c0_10] : memref<4x338xf32, #tpu.memory_space<vmem>>, vector<4x338xf32>
    tpu.vector_store %arg5[%c0_9, %c0_10], %15 {strides = array<i32>} : memref<4x338xf32, #tpu.memory_space<vmem>>, vector<4x338xf32>,
    return
  }
  func.func @transform_0(%arg0: i32) -> (i32, i32) {
    %c0_i32 = arith.constant 0 : i32
    %c0_i32_0 = arith.constant 0 : i32
    %c0_i32_1 = arith.constant 0 : i32
    return %c0_i32, %c0_i32_0 : i32, i32
  }
  func.func @transform_1(%arg0: i32) -> (i32, i32) {
    %c0_i32 = arith.constant 0 : i32
    %c0_i32_0 = arith.constant 0 : i32
    %c0_i32_1 = arith.constant 0 : i32
    return %c0_i32, %c0_i32_0 : i32, i32
  }
  func.func @transform_2(%arg0: i32) -> (i32, i32) {
    %c0_i32 = arith.constant 0 : i32
    %c0_i32_0 = arith.constant 0 : i32
    %c0_i32_1 = arith.constant 0 : i32
    return %c0_i32, %c0_i32_0 : i32, i32
  }
  func.func @transform_3(%arg0: i32) -> (i32, i32) {
    %c0_i32 = arith.constant 0 : i32
    %c0_i32_0 = arith.constant 0 : i32
    %c0_i32_1 = arith.constant 0 : i32
    return %c0_i32, %c0_i32_0 : i32, i32
  }
  func.func @transform_4(%arg0: i32) -> (i32, i32) {
    %c0_i32 = arith.constant 0 : i32
    %c0_i32_0 = arith.constant 0 : i32
    %c0_i32_1 = arith.constant 0 : i32
    return %c0_i32, %c0_i32_0 : i32, i32
  }
}

module attributes {stable_mosaic.version = 11 : i64} {
  func.func @_conv_swish_add_kernel(%arg0: i32, %arg1: memref<4x36xbf16, #tpu.memory_space<vmem>>, %arg2: memref<36x338xbf16, #tpu.memory_space<vmem>>, %arg3: memref<4x1xf32, #tpu.memory_space<vmem>>, %arg4: memref<4x338xf32, #tpu.memory_space<vmem>>, %arg5: memref<4x338xf32, #tpu.memory_space<vmem>>) attributes {dimension_semantics = [#tpu.dimension_semantics<arbitrary>], iteration_bounds = array<i64: 1>, scalar_prefetch = 0 : i64, scratch_operands = 0 : i64, tpu.core_type = #tpu.core_type<tc>, window_params = [{pipeline_mode = #tpu.pipeline_mode<synchronous>, transform_indices = @transform_0, window_bounds = array<i64: 4, 36>}, {pipeline_mode = #tpu.pipeline_mode<synchronous>, transform_indices = @transform_1, window_bounds = array<i64: 36, 338>}, {pipeline_mode = #tpu.pipeline_mode<synchronous>, transform_indices = @transform_2, window_bounds = array<i64: 4, 1>}, {pipeline_mode = #tpu.pipeline_mode<synchronous>, transform_indices = @transform_3, window_bounds = array<i64: 4, 338>}, {pipeline_mode = #tpu.pipeline_mode<synchronous>, transform_indices = @transform_4, window_bounds = array<i64: 4, 338>}]} {
    %c0 = arith.constant 0 : index
    %c0_0 = arith.constant 0 : index
    %0 = vector.load %arg1[%c0, %c0_0] : memref<4x36xbf16, #tpu.memory_space<vmem>>, vector<4x36xbf16>
    %c0_1 = arith.constant 0 : index
    %c0_2 = arith.constant 0 : index
    %1 = vector.load %arg2[%c0_1, %c0_2] : memref<36x338xbf16, #tpu.memory_space<vmem>>, vector<36x338xbf16>
    %cst = arith.constant dense<0.000000e+00> : vector<4x338xf32>
    %2 = tpu.matmul %0, %1, %cst {dimension_numbers = #tpu.dot_dimension_numbers<[1], [0], [0], [1], [0, 0, 1, 1], [], []>} : vector<4x36xbf16>, vector<36x338xbf16>, vector<4x338xf32> -> vector<4x338xf32>
    %c0_3 = arith.constant 0 : index
    %c0_4 = arith.constant 0 : index
    %3 = vector.load %arg3[%c0_3, %c0_4] : memref<4x1xf32, #tpu.memory_space<vmem>>, vector<4x1xf32>
    %4 = vector.broadcast %3 : vector<4x1xf32> to vector<4x338xf32>
    %5 = arith.addf %2, %4 : vector<4x338xf32>
    %cst_5 = arith.constant 0.000000e+00 : f32
    %6 = vector.broadcast %cst_5 : f32 to vector<4x338xf32>
    %7 = arith.subf %6, %5 : vector<4x338xf32>
    %8 = math.exp %7 : vector<4x338xf32>
    %cst_6 = arith.constant 1.000000e+00 : f32
    %9 = vector.broadcast %cst_6 : f32 to vector<4x338xf32>
    %10 = arith.addf %9, %8 : vector<4x338xf32>
    %11 = tpu.reciprocal %10 {approx = true} : vector<4x338xf32> -> vector<4x338xf32>
    %12 = arith.mulf %5, %11 : vector<4x338xf32>
    %c0_7 = arith.constant 0 : index
    %c0_8 = arith.constant 0 : index
    %13 = vector.load %arg4[%c0_7, %c0_8] : memref<4x338xf32, #tpu.memory_space<vmem>>, vector<4x338xf32>
    %14 = arith.addf %12, %13 : vector<4x338xf32>
    %c0_9 = arith.constant 0 : index
    %c0_10 = arith.constant 0 : index
    %15 = vector.load %arg5[%c0_9, %c0_10] : memref<4x338xf32, #tpu.memory_space<vmem>>, vector<4x338xf32>
    tpu.vector_store %arg5[%c0_9, %c0_10], %14 {strides = array<i32>} : memref<4x338xf32, #tpu.memory_space<vmem>>, vector<4x338xf32>,
    return
  }
  func.func @transform_0(%arg0: i32) -> (i32, i32) {
    %c0_i32 = arith.constant 0 : i32
    %c0_i32_0 = arith.constant 0 : i32
    %c0_i32_1 = arith.constant 0 : i32
    return %c0_i32, %c0_i32_0 : i32, i32
  }
  func.func @transform_1(%arg0: i32) -> (i32, i32) {
    %c0_i32 = arith.constant 0 : i32
    %c0_i32_0 = arith.constant 0 : i32
    %c0_i32_1 = arith.constant 0 : i32
    return %c0_i32, %c0_i32_0 : i32, i32
  }
  func.func @transform_2(%arg0: i32) -> (i32, i32) {
    %c0_i32 = arith.constant 0 : i32
    %c0_i32_0 = arith.constant 0 : i32
    %c0_i32_1 = arith.constant 0 : i32
    return %c0_i32, %c0_i32_0 : i32, i32
  }
  func.func @transform_3(%arg0: i32) -> (i32, i32) {
    %c0_i32 = arith.constant 0 : i32
    %c0_i32_0 = arith.constant 0 : i32
    %c0_i32_1 = arith.constant 0 : i32
    return %c0_i32, %c0_i32_0 : i32, i32
  }
  func.func @transform_4(%arg0: i32) -> (i32, i32) {
    %c0_i32 = arith.constant 0 : i32
    %c0_i32_0 = arith.constant 0 : i32
    %c0_i32_1 = arith.constant 0 : i32
    return %c0_i32, %c0_i32_0 : i32, i32
  }
}

module attributes {stable_mosaic.version = 11 : i64} {
  func.func @_conv_bias_kernel(%arg0: i32, %arg1: memref<1x100xbf16, #tpu.memory_space<vmem>>, %arg2: memref<100x1568xbf16, #tpu.memory_space<vmem>>, %arg3: memref<1x1xf32, #tpu.memory_space<vmem>>, %arg4: memref<1x1568xf32, #tpu.memory_space<vmem>>) attributes {dimension_semantics = [#tpu.dimension_semantics<arbitrary>], iteration_bounds = array<i64: 1>, scalar_prefetch = 0 : i64, scratch_operands = 0 : i64, tpu.core_type = #tpu.core_type<tc>, window_params = [{pipeline_mode = #tpu.pipeline_mode<synchronous>, transform_indices = @transform_0, window_bounds = array<i64: 1, 100>}, {pipeline_mode = #tpu.pipeline_mode<synchronous>, transform_indices = @transform_1, window_bounds = array<i64: 100, 1568>}, {pipeline_mode = #tpu.pipeline_mode<synchronous>, transform_indices = @transform_2, window_bounds = array<i64: 1, 1>}, {pipeline_mode = #tpu.pipeline_mode<synchronous>, transform_indices = @transform_3, window_bounds = array<i64: 1, 1568>}]} {
    %c0 = arith.constant 0 : index
    %c0_0 = arith.constant 0 : index
    %0 = vector.load %arg1[%c0, %c0_0] : memref<1x100xbf16, #tpu.memory_space<vmem>>, vector<1x100xbf16>
    %c0_1 = arith.constant 0 : index
    %c0_2 = arith.constant 0 : index
    %1 = vector.load %arg2[%c0_1, %c0_2] : memref<100x1568xbf16, #tpu.memory_space<vmem>>, vector<100x1568xbf16>
    %cst = arith.constant dense<0.000000e+00> : vector<1x1568xf32>
    %2 = tpu.matmul %0, %1, %cst {dimension_numbers = #tpu.dot_dimension_numbers<[1], [0], [0], [1], [0, 0, 1, 1], [], []>} : vector<1x100xbf16>, vector<100x1568xbf16>, vector<1x1568xf32> -> vector<1x1568xf32>
    %c0_3 = arith.constant 0 : index
    %c0_4 = arith.constant 0 : index
    %3 = vector.load %arg3[%c0_3, %c0_4] : memref<1x1xf32, #tpu.memory_space<vmem>>, vector<1x1xf32>
    %4 = vector.broadcast %3 : vector<1x1xf32> to vector<1x1568xf32>
    %5 = arith.addf %2, %4 : vector<1x1568xf32>
    %c0_5 = arith.constant 0 : index
    %c0_6 = arith.constant 0 : index
    %6 = vector.load %arg4[%c0_5, %c0_6] : memref<1x1568xf32, #tpu.memory_space<vmem>>, vector<1x1568xf32>
    tpu.vector_store %arg4[%c0_5, %c0_6], %5 {strides = array<i32>} : memref<1x1568xf32, #tpu.memory_space<vmem>>, vector<1x1568xf32>,
    return
  }
  func.func @transform_0(%arg0: i32) -> (i32, i32) {
    %c0_i32 = arith.constant 0 : i32
    %c0_i32_0 = arith.constant 0 : i32
    %c0_i32_1 = arith.constant 0 : i32
    return %c0_i32, %c0_i32_0 : i32, i32
  }
  func.func @transform_1(%arg0: i32) -> (i32, i32) {
    %c0_i32 = arith.constant 0 : i32
    %c0_i32_0 = arith.constant 0 : i32
    %c0_i32_1 = arith.constant 0 : i32
    return %c0_i32, %c0_i32_0 : i32, i32
  }
  func.func @transform_2(%arg0: i32) -> (i32, i32) {
    %c0_i32 = arith.constant 0 : i32
    %c0_i32_0 = arith.constant 0 : i32
    %c0_i32_1 = arith.constant 0 : i32
    return %c0_i32, %c0_i32_0 : i32, i32
  }
  func.func @transform_3(%arg0: i32) -> (i32, i32) {
    %c0_i32 = arith.constant 0 : i32
    %c0_i32_0 = arith.constant 0 : i32
    %c0_i32_1 = arith.constant 0 : i32
    return %c0_i32, %c0_i32_0 : i32, i32
  }
}

module attributes {stable_mosaic.version = 11 : i64} {
  func.func @_conv_swish_add_kernel(%arg0: i32, %arg1: memref<1x9xbf16, #tpu.memory_space<vmem>>, %arg2: memref<9x1568xbf16, #tpu.memory_space<vmem>>, %arg3: memref<1x1xf32, #tpu.memory_space<vmem>>, %arg4: memref<1x1568xf32, #tpu.memory_space<vmem>>, %arg5: memref<1x1568xf32, #tpu.memory_space<vmem>>) attributes {dimension_semantics = [#tpu.dimension_semantics<arbitrary>], iteration_bounds = array<i64: 1>, scalar_prefetch = 0 : i64, scratch_operands = 0 : i64, tpu.core_type = #tpu.core_type<tc>, window_params = [{pipeline_mode = #tpu.pipeline_mode<synchronous>, transform_indices = @transform_0, window_bounds = array<i64: 1, 9>}, {pipeline_mode = #tpu.pipeline_mode<synchronous>, transform_indices = @transform_1, window_bounds = array<i64: 9, 1568>}, {pipeline_mode = #tpu.pipeline_mode<synchronous>, transform_indices = @transform_2, window_bounds = array<i64: 1, 1>}, {pipeline_mode = #tpu.pipeline_mode<synchronous>, transform_indices = @transform_3, window_bounds = array<i64: 1, 1568>}, {pipeline_mode = #tpu.pipeline_mode<synchronous>, transform_indices = @transform_4, window_bounds = array<i64: 1, 1568>}]} {
    %c0 = arith.constant 0 : index
    %c0_0 = arith.constant 0 : index
    %0 = vector.load %arg1[%c0, %c0_0] : memref<1x9xbf16, #tpu.memory_space<vmem>>, vector<1x9xbf16>
    %c0_1 = arith.constant 0 : index
    %c0_2 = arith.constant 0 : index
    %1 = vector.load %arg2[%c0_1, %c0_2] : memref<9x1568xbf16, #tpu.memory_space<vmem>>, vector<9x1568xbf16>
    %cst = arith.constant dense<0.000000e+00> : vector<1x1568xf32>
    %2 = tpu.matmul %0, %1, %cst {dimension_numbers = #tpu.dot_dimension_numbers<[1], [0], [0], [1], [0, 0, 1, 1], [], []>} : vector<1x9xbf16>, vector<9x1568xbf16>, vector<1x1568xf32> -> vector<1x1568xf32>
    %c0_3 = arith.constant 0 : index
    %c0_4 = arith.constant 0 : index
    %3 = vector.load %arg3[%c0_3, %c0_4] : memref<1x1xf32, #tpu.memory_space<vmem>>, vector<1x1xf32>
    %4 = vector.broadcast %3 : vector<1x1xf32> to vector<1x1568xf32>
    %5 = arith.addf %2, %4 : vector<1x1568xf32>
    %cst_5 = arith.constant 0.000000e+00 : f32
    %6 = vector.broadcast %cst_5 : f32 to vector<1x1568xf32>
    %7 = arith.subf %6, %5 : vector<1x1568xf32>
    %8 = math.exp %7 : vector<1x1568xf32>
    %cst_6 = arith.constant 1.000000e+00 : f32
    %9 = vector.broadcast %cst_6 : f32 to vector<1x1568xf32>
    %10 = arith.addf %9, %8 : vector<1x1568xf32>
    %11 = tpu.reciprocal %10 {approx = true} : vector<1x1568xf32> -> vector<1x1568xf32>
    %12 = arith.mulf %5, %11 : vector<1x1568xf32>
    %c0_7 = arith.constant 0 : index
    %c0_8 = arith.constant 0 : index
    %13 = vector.load %arg4[%c0_7, %c0_8] : memref<1x1568xf32, #tpu.memory_space<vmem>>, vector<1x1568xf32>
    %14 = arith.addf %12, %13 : vector<1x1568xf32>
    %c0_9 = arith.constant 0 : index
    %c0_10 = arith.constant 0 : index
    %15 = vector.load %arg5[%c0_9, %c0_10] : memref<1x1568xf32, #tpu.memory_space<vmem>>, vector<1x1568xf32>
    tpu.vector_store %arg5[%c0_9, %c0_10], %14 {strides = array<i32>} : memref<1x1568xf32, #tpu.memory_space<vmem>>, vector<1x1568xf32>,
    return
  }
  func.func @transform_0(%arg0: i32) -> (i32, i32) {
    %c0_i32 = arith.constant 0 : i32
    %c0_i32_0 = arith.constant 0 : i32
    %c0_i32_1 = arith.constant 0 : i32
    return %c0_i32, %c0_i32_0 : i32, i32
  }
  func.func @transform_1(%arg0: i32) -> (i32, i32) {
    %c0_i32 = arith.constant 0 : i32
    %c0_i32_0 = arith.constant 0 : i32
    %c0_i32_1 = arith.constant 0 : i32
    return %c0_i32, %c0_i32_0 : i32, i32
  }
  func.func @transform_2(%arg0: i32) -> (i32, i32) {
    %c0_i32 = arith.constant 0 : i32
    %c0_i32_0 = arith.constant 0 : i32
    %c0_i32_1 = arith.constant 0 : i32
    return %c0_i32, %c0_i32_0 : i32, i32
  }
  func.func @transform_3(%arg0: i32) -> (i32, i32) {
    %c0_i32 = arith.constant 0 : i32
    %c0_i32_0 = arith.constant 0 : i32
    %c0_i32_1 = arith.constant 0 : i32
    return %c0_i32, %c0_i32_0 : i32, i32
  }
  func.func @transform_4(%arg0: i32) -> (i32, i32) {
    %c0_i32 = arith.constant 0 : i32
    %c0_i32_0 = arith.constant 0 : i32
    %c0_i32_1 = arith.constant 0 : i32
    return %c0_i32, %c0_i32_0 : i32, i32
  }
}

module attributes {stable_mosaic.version = 11 : i64} {
  func.func @_swish_layernorm_kernel(%arg0: i32, %arg1: memref<2x784xf32, #tpu.memory_space<vmem>>, %arg2: memref<1x784xf32, #tpu.memory_space<vmem>>, %arg3: memref<1x784xf32, #tpu.memory_space<vmem>>, %arg4: memref<2x784xf32, #tpu.memory_space<vmem>>) attributes {dimension_semantics = [#tpu.dimension_semantics<arbitrary>], iteration_bounds = array<i64: 1>, scalar_prefetch = 0 : i64, scratch_operands = 0 : i64, tpu.core_type = #tpu.core_type<tc>, window_params = [{pipeline_mode = #tpu.pipeline_mode<synchronous>, transform_indices = @transform_0, window_bounds = array<i64: 2, 784>}, {pipeline_mode = #tpu.pipeline_mode<synchronous>, transform_indices = @transform_1, window_bounds = array<i64: 1, 784>}, {pipeline_mode = #tpu.pipeline_mode<synchronous>, transform_indices = @transform_2, window_bounds = array<i64: 1, 784>}, {pipeline_mode = #tpu.pipeline_mode<synchronous>, transform_indices = @transform_3, window_bounds = array<i64: 2, 784>}]} {
    %c0 = arith.constant 0 : index
    %c0_0 = arith.constant 0 : index
    %0 = vector.load %arg1[%c0, %c0_0] : memref<2x784xf32, #tpu.memory_space<vmem>>, vector<2x784xf32>
    %cst = arith.constant 0.000000e+00 : f32
    %1 = vector.broadcast %cst : f32 to vector<2x784xf32>
    %2 = arith.subf %1, %0 : vector<2x784xf32>
    %3 = math.exp %2 : vector<2x784xf32>
    %cst_1 = arith.constant 1.000000e+00 : f32
    %4 = vector.broadcast %cst_1 : f32 to vector<2x784xf32>
    %5 = arith.addf %4, %3 : vector<2x784xf32>
    %6 = tpu.reciprocal %5 {approx = true} : vector<2x784xf32> -> vector<2x784xf32>
    %7 = arith.mulf %0, %6 : vector<2x784xf32>
    %cst_2 = arith.constant dense<0.000000e+00> : vector<2xf32>
    %8 = vector.multi_reduction <add>, %7, %cst_2 [1] : vector<2x784xf32> to vector<2xf32>
    %9 = vector.shape_cast %8 : vector<2xf32> to vector<2x1xf32>
    %cst_3 = arith.constant 7.840000e+02 : f32
    %10 = vector.broadcast %cst_3 : f32 to vector<2x1xf32>
    %11 = arith.divf %9, %10 : vector<2x1xf32>
    %12 = vector.broadcast %11 : vector<2x1xf32> to vector<2x784xf32>
    %13 = arith.subf %7, %12 : vector<2x784xf32>
    %14 = arith.mulf %13, %13 : vector<2x784xf32>
    %cst_4 = arith.constant dense<0.000000e+00> : vector<2xf32>
    %15 = vector.multi_reduction <add>, %14, %cst_4 [1] : vector<2x784xf32> to vector<2xf32>
    %16 = vector.shape_cast %15 : vector<2xf32> to vector<2x1xf32>
    %cst_5 = arith.constant 7.840000e+02 : f32
    %17 = vector.broadcast %cst_5 : f32 to vector<2x1xf32>
    %18 = arith.divf %16, %17 : vector<2x1xf32>
    %cst_6 = arith.constant 9.99999974E-6 : f32
    %19 = vector.broadcast %cst_6 : f32 to vector<2x1xf32>
    %20 = arith.addf %18, %19 : vector<2x1xf32>
    %21 = math.rsqrt %20 : vector<2x1xf32>
    %22 = vector.broadcast %21 : vector<2x1xf32> to vector<2x784xf32>
    %23 = arith.mulf %13, %22 : vector<2x784xf32>
    %c0_7 = arith.constant 0 : index
    %c0_8 = arith.constant 0 : index
    %24 = vector.load %arg2[%c0_7, %c0_8] : memref<1x784xf32, #tpu.memory_space<vmem>>, vector<1x784xf32>
    %25 = vector.broadcast %24 : vector<1x784xf32> to vector<2x784xf32>
    %26 = arith.mulf %23, %25 : vector<2x784xf32>
    %c0_9 = arith.constant 0 : index
    %c0_10 = arith.constant 0 : index
    %27 = vector.load %arg3[%c0_9, %c0_10] : memref<1x784xf32, #tpu.memory_space<vmem>>, vector<1x784xf32>
    %28 = vector.broadcast %27 : vector<1x784xf32> to vector<2x784xf32>
    %29 = arith.addf %26, %28 : vector<2x784xf32>
    %c0_11 = arith.constant 0 : index
    %c0_12 = arith.constant 0 : index
    %30 = vector.load %arg4[%c0_11, %c0_12] : memref<2x784xf32, #tpu.memory_space<vmem>>, vector<2x784xf32>
    tpu.vector_store %arg4[%c0_11, %c0_12], %29 {strides = array<i32>} : memref<2x784xf32, #tpu.memory_space<vmem>>, vector<2x784xf32>,
    return
  }
  func.func @transform_0(%arg0: i32) -> (i32, i32) {
    %c0_i32 = arith.constant 0 : i32
    %c0_i32_0 = arith.constant 0 : i32
    %c0_i32_1 = arith.constant 0 : i32
    return %c0_i32, %c0_i32_0 : i32, i32
  }
  func.func @transform_1(%arg0: i32) -> (i32, i32) {
    %c0_i32 = arith.constant 0 : i32
    %c0_i32_0 = arith.constant 0 : i32
    %c0_i32_1 = arith.constant 0 : i32
    return %c0_i32, %c0_i32_0 : i32, i32
  }
  func.func @transform_2(%arg0: i32) -> (i32, i32) {
    %c0_i32 = arith.constant 0 : i32
    %c0_i32_0 = arith.constant 0 : i32
    %c0_i32_1 = arith.constant 0 : i32
    return %c0_i32, %c0_i32_0 : i32, i32
  }
  func.func @transform_3(%arg0: i32) -> (i32, i32) {
    %c0_i32 = arith.constant 0 : i32
    %c0_i32_0 = arith.constant 0 : i32
    %c0_i32_1 = arith.constant 0 : i32
    return %c0_i32, %c0_i32_0 : i32, i32
  }
}

</mosaic_0001>

<llo_original>
// kernel: unet_forward.20
$region0: #{unet_forward.20}
  #allocation0 [shape = 'u32[]', space=smem, size = 0x4, offset = 0x4, fixed_abs, tag = 'smem constant byte address 0x4 - core index']
  #allocation1 [shape = 'u32[72,128]{1,0:T(1,128)}', space=vmem, size = 0x9000, scoped, tag = 'internal scratch']
  %s0 = inlined_call_operand.vmem [shape: bf16[4,25], index: 0, kind: input, shape index: {}]
  %s1 = inlined_call_operand.vmem [shape: bf16[25,1352], index: 1, kind: input, shape index: {}]
  %s2 = inlined_call_operand.vmem [shape: f32[4,1], index: 2, kind: input, shape index: {}]
  %s3 = inlined_call_operand.vmem [shape: f32[4,1352], index: 3, kind: output, shape index: {}]
  %s4 = sld [smem:[#allocation0]]
  $region22: #{unet_forward.20} parent=0
    _
  %s6 = ssub.s32 1, %s4
  %s7 = scalar_select 0, %s6, %s4
  // Predicated region
  $region2: #{unet_forward.20} parent=0 // pred_check
    _
  $region3: #{unet_forward.20} parent=0 // pred_check_branch
    %9 = sbr.rel (0) target = $region5
  $region4: #{unet_forward.20} parent=0 // pred_region
    _
  $region5: #{unet_forward.20} parent=0 // pred_fallthru
    _
  // Predicated region
  $region6: #{unet_forward.20} parent=0 // pred_check
    _
  $region7: #{unet_forward.20} parent=0 // pred_check_branch
    %11 = sbr.rel (0) target = $region9
  $region8: #{unet_forward.20} parent=0 // pred_region
    _
  $region9: #{unet_forward.20} parent=0 // pred_fallthru
    _
  // Predicated region
  $region10: #{unet_forward.20} parent=0 // pred_check
    _
  $region11: #{unet_forward.20} parent=0 // pred_check_branch
    %13 = sbr.rel (0) target = $region13
  $region12: #{unet_forward.20} parent=0 // pred_region
    _
  $region13: #{unet_forward.20} parent=0 // pred_fallthru
    _
  %v15 = vld [vmem:[%s0] sm:$0x3]
  %v16 = vld [vmem:[%s1] sm:$0xff]
  %v17 = vld [vmem:[%s1 + $0x8] sm:$0xff]
  %v18 = vld [vmem:[%s1 + $0x10] sm:$0xff]
  %v19 = vld [vmem:[%s1 + $0x18] sm:$0xff]
  %v20 = vld [vmem:[%s1 + $0x20] sm:$0xff]
  %v21 = vld [vmem:[%s1 + $0x28] sm:$0xf]
  %v22 = vld [vmem:[%s1 + $0x2c] sm:$0xff]
  %v23 = vld [vmem:[%s1 + $0x34] sm:$0xff]
  %v24 = vld [vmem:[%s1 + $0x3c] sm:$0xff]
  %v25 = vld [vmem:[%s1 + $0x44] sm:$0xff]
  %v26 = vld [vmem:[%s1 + $0x4c] sm:$0xff]
  %v27 = vld [vmem:[%s1 + $0x54] sm:$0xf]
  %v28 = vld [vmem:[%s1 + $0x58] sm:$0xff]
  %v29 = vld [vmem:[%s1 + $0x60] sm:$0xff]
  %v30 = vld [vmem:[%s1 + $0x68] sm:$0xff]
  %v31 = vld [vmem:[%s1 + $0x70] sm:$0xff]
  %v32 = vld [vmem:[%s1 + $0x78] sm:$0xff]
  %v33 = vld [vmem:[%s1 + $0x80] sm:$0xf]
  %v34 = vld [vmem:[%s1 + $0x84] sm:$0x11]
  %v35 = vld [vmem:[%s1 + $0x8c] sm:$0x11]
  %v36 = vld [vmem:[%s1 + $0x94] sm:$0x11]
  %v37 = vld [vmem:[%s1 + $0x9c] sm:$0x11]
  %v38 = vld [vmem:[%s1 + $0xa4] sm:$0x11]
  %v39 = vld [vmem:[%s1 + $0xac] sm:$0x1]
  %v40 = vld [vmem:[%s2] sm:$0xf]
  %42 = vset.pattern.permute.xlu0 0
  %43 = vperm.xlu0 %42, %v40
  %v44 = vpop.permute.xlu0 %43
  %v70 = vunpack.c.l.b16 %v16
  %v71 = vunpack.c.h.b16 %v16
  %v72 = vunpack.c.l.b16 %v17
  %v73 = vunpack.c.h.b16 %v17
  %v74 = vunpack.c.l.b16 %v18
  %v75 = vunpack.c.h.b16 %v18
  %v76 = vunpack.c.l.b16 %v19
  %v77 = vunpack.c.h.b16 %v19
  %v78 = vunpack.c.l.b16 %v20
  %v79 = vunpack.c.h.b16 %v20
  %v80 = vunpack.c.l.b16 %v21
  %v81 = vunpack.c.l.b16 %v22
  %v82 = vunpack.c.h.b16 %v22
  %v83 = vunpack.c.l.b16 %v23
  %v84 = vunpack.c.h.b16 %v23
  %v85 = vunpack.c.l.b16 %v24
  %v86 = vunpack.c.h.b16 %v24
  %v87 = vunpack.c.l.b16 %v25
  %v88 = vunpack.c.h.b16 %v25
  %v89 = vunpack.c.l.b16 %v26
  %v90 = vunpack.c.h.b16 %v26
  %v91 = vunpack.c.l.b16 %v27
  %v92 = vunpack.c.l.b16 %v28
  %v93 = vunpack.c.h.b16 %v28
  %v94 = vunpack.c.l.b16 %v29
  %v95 = vunpack.c.h.b16 %v29
  %v96 = vunpack.c.l.b16 %v30
  %v97 = vunpack.c.h.b16 %v30
  %v98 = vunpack.c.l.b16 %v31
  %v99 = vunpack.c.h.b16 %v31
  %v100 = vunpack.c.l.b16 %v32
  %v101 = vunpack.c.h.b16 %v32
  %v102 = vunpack.c.l.b16 %v33
  %v103 = vunpack.c.l.b16 %v34
  %v104 = vunpack.c.h.b16 %v34
  %v105 = vunpack.c.l.b16 %v35
  %v106 = vunpack.c.h.b16 %v35
  %v107 = vunpack.c.l.b16 %v36
  %v108 = vunpack.c.h.b16 %v36
  %v109 = vunpack.c.l.b16 %v37
  %v110 = vunpack.c.h.b16 %v37
  %v111 = vunpack.c.l.b16 %v38
  %v112 = vunpack.c.h.b16 %v38
  %v113 = vunpack.c.l.b16 %v39
  %v114 = vpack.c.b16 %v81, %v70
  %v115 = vpack.c.b16 %v82, %v71
  %v116 = vpack.c.b16 %v83, %v72
  %v117 = vpack.c.b16 %v84, %v73
  %v118 = vpack.c.b16 %v85, %v74
  %v119 = vpack.c.b16 %v86, %v75
  %v120 = vpack.c.b16 %v87, %v76
  %v121 = vpack.c.b16 %v88, %v77
  %v122 = vpack.c.b16 %v89, %v78
  %v123 = vpack.c.b16 %v90, %v79
  %v124 = vpack.c.b16 %v91, %v80
  %v125 = vpack.c.b16 %v103, %v92
  %v126 = vpack.c.b16 %v104, %v93
  %v127 = vpack.c.b16 %v105, %v94
  %v128 = vpack.c.b16 %v106, %v95
  %v129 = vpack.c.b16 %v107, %v96
  %v130 = vpack.c.b16 %v108, %v97
  %v131 = vpack.c.b16 %v109, %v98
  %v132 = vpack.c.b16 %v110, %v99
  %v133 = vpack.c.b16 %v111, %v100
  %v134 = vpack.c.b16 %v112, %v101
  %v135 = vpack.c.b16 %v113, %v102
  %vm147 = vcmask 203776
  %v149 = vsel %vm147, %v15, 0
  %vm151 = vcmask 1043456
  %vm152 = vcmask 1044480
  %v153 = vsel %vm151, 4294967295, 65535
  %v154 = vsel %vm152, %v153, 0
  %v156 = vand.u32 %v125, %v154
  %v159 = vand.u32 %v126, %v154
  %v162 = vand.u32 %v127, %v154
  %v165 = vand.u32 %v128, %v154
  %v168 = vand.u32 %v129, %v154
  %v171 = vand.u32 %v130, %v154
  %v174 = vand.u32 %v131, %v154
  %v177 = vand.u32 %v132, %v154
  %v180 = vand.u32 %v133, %v154
  %v183 = vand.u32 %v134, %v154
  %v186 = vand.u32 %v135, %v154
  %188 = vmatpush.bf16.msra.mxu0 0
  %189 = vmatpush.bf16.msra.mxu0 0
  %190 = vmatpush.bf16.msra.mxu0 0
  %191 = vmatpush.bf16.msra.mxu0 0
  %192 = vmatpush.bf16.msra.mxu0 0
  %193 = vmatpush.bf16.msra.mxu0 0
  %194 = vmatpush.bf16.msra.mxu0 %v156
  %195 = vmatpush.bf16.msra.mxu0 %v114
  %196 = vmatmul.bf16.gmra.mxu0 %v149
  %v197 = vpop.f32.mrf.mxu0
  %v198 = vadd.f32 %v44, %v197
  %v199 = vpop.f32.mrf.mxu0
  %200 = vdwg.mxu0
  %201 = vmatpush.bf16.msra.mxu0 0
  %202 = vmatpush.bf16.msra.mxu0 0
  %203 = vmatpush.bf16.msra.mxu0 0
  %204 = vmatpush.bf16.msra.mxu0 0
  %205 = vmatpush.bf16.msra.mxu0 0
  %206 = vmatpush.bf16.msra.mxu0 0
  %207 = vmatpush.bf16.msra.mxu0 %v159
  %208 = vmatpush.bf16.msra.mxu0 %v115
  %209 = vmatmul.bf16.gmra.mxu0 %v149
  %v210 = vpop.f32.mrf.mxu0
  %v211 = vadd.f32 %v44, %v210
  %v212 = vpop.f32.mrf.mxu0
  %213 = vdwg.mxu0
  %214 = vmatpush.bf16.msra.mxu0 0
  %215 = vmatpush.bf16.msra.mxu0 0
  %216 = vmatpush.bf16.msra.mxu0 0
  %217 = vmatpush.bf16.msra.mxu0 0
  %218 = vmatpush.bf16.msra.mxu0 0
  %219 = vmatpush.bf16.msra.mxu0 0
  %220 = vmatpush.bf16.msra.mxu0 %v162
  %221 = vmatpush.bf16.msra.mxu0 %v116
  %222 = vmatmul.bf16.gmra.mxu0 %v149
  %v223 = vpop.f32.mrf.mxu0
  %v224 = vadd.f32 %v44, %v223
  %v225 = vpop.f32.mrf.mxu0
  %226 = vdwg.mxu0
  %227 = vmatpush.bf16.msra.mxu0 0
  %228 = vmatpush.bf16.msra.mxu0 0
  %229 = vmatpush.bf16.msra.mxu0 0
  %230 = vmatpush.bf16.msra.mxu0 0
  %231 = vmatpush.bf16.msra.mxu0 0
  %232 = vmatpush.bf16.msra.mxu0 0
  %233 = vmatpush.bf16.msra.mxu0 %v165
  %234 = vmatpush.bf16.msra.mxu0 %v117
  %235 = vmatmul.bf16.gmra.mxu0 %v149
  %v236 = vpop.f32.mrf.mxu0
  %v237 = vadd.f32 %v44, %v236
  %v238 = vpop.f32.mrf.mxu0
  %239 = vdwg.mxu0
  %240 = vmatpush.bf16.msra.mxu0 0
  %241 = vmatpush.bf16.msra.mxu0 0
  %242 = vmatpush.bf16.msra.mxu0 0
  %243 = vmatpush.bf16.msra.mxu0 0
  %244 = vmatpush.bf16.msra.mxu0 0
  %245 = vmatpush.bf16.msra.mxu0 0
  %246 = vmatpush.bf16.msra.mxu0 %v168
  %247 = vmatpush.bf16.msra.mxu0 %v118
  %248 = vmatmul.bf16.gmra.mxu0 %v149
  %v249 = vpop.f32.mrf.mxu0
  %v250 = vadd.f32 %v44, %v249
  %v251 = vpop.f32.mrf.mxu0
  %252 = vdwg.mxu0
  %253 = vmatpush.bf16.msra.mxu0 0
  %254 = vmatpush.bf16.msra.mxu0 0
  %255 = vmatpush.bf16.msra.mxu0 0
  %256 = vmatpush.bf16.msra.mxu0 0
  %257 = vmatpush.bf16.msra.mxu0 0
  %258 = vmatpush.bf16.msra.mxu0 0
  %259 = vmatpush.bf16.msra.mxu0 %v171
  %260 = vmatpush.bf16.msra.mxu0 %v119
  %261 = vmatmul.bf16.gmra.mxu0 %v149
  %v262 = vpop.f32.mrf.mxu0
  %v263 = vadd.f32 %v44, %v262
  %v264 = vpop.f32.mrf.mxu0
  %265 = vdwg.mxu0
  %266 = vmatpush.bf16.msra.mxu0 0
  %267 = vmatpush.bf16.msra.mxu0 0
  %268 = vmatpush.bf16.msra.mxu0 0
  %269 = vmatpush.bf16.msra.mxu0 0
  %270 = vmatpush.bf16.msra.mxu0 0
  %271 = vmatpush.bf16.msra.mxu0 0
  %272 = vmatpush.bf16.msra.mxu0 %v174
  %273 = vmatpush.bf16.msra.mxu0 %v120
  %274 = vmatmul.bf16.gmra.mxu0 %v149
  %v275 = vpop.f32.mrf.mxu0
  %v276 = vadd.f32 %v44, %v275
  %v277 = vpop.f32.mrf.mxu0
  %278 = vdwg.mxu0
  %279 = vmatpush.bf16.msra.mxu0 0
  %280 = vmatpush.bf16.msra.mxu0 0
  %281 = vmatpush.bf16.msra.mxu0 0
  %282 = vmatpush.bf16.msra.mxu0 0
  %283 = vmatpush.bf16.msra.mxu0 0
  %284 = vmatpush.bf16.msra.mxu0 0
  %285 = vmatpush.bf16.msra.mxu0 %v177
  %286 = vmatpush.bf16.msra.mxu0 %v121
  %287 = vmatmul.bf16.gmra.mxu0 %v149
  %v288 = vpop.f32.mrf.mxu0
  %v289 = vadd.f32 %v44, %v288
  %v290 = vpop.f32.mrf.mxu0
  %291 = vdwg.mxu0
  %292 = vmatpush.bf16.msra.mxu0 0
  %293 = vmatpush.bf16.msra.mxu0 0
  %294 = vmatpush.bf16.msra.mxu0 0
  %295 = vmatpush.bf16.msra.mxu0 0
  %296 = vmatpush.bf16.msra.mxu0 0
  %297 = vmatpush.bf16.msra.mxu0 0
  %298 = vmatpush.bf16.msra.mxu0 %v180
  %299 = vmatpush.bf16.msra.mxu0 %v122
  %300 = vmatmul.bf16.gmra.mxu0 %v149
  %v301 = vpop.f32.mrf.mxu0
  %v302 = vadd.f32 %v44, %v301
  %v303 = vpop.f32.mrf.mxu0
  %304 = vdwg.mxu0
  %305 = vmatpush.bf16.msra.mxu0 0
  %306 = vmatpush.bf16.msra.mxu0 0
  %307 = vmatpush.bf16.msra.mxu0 0
  %308 = vmatpush.bf16.msra.mxu0 0
  %309 = vmatpush.bf16.msra.mxu0 0
  %310 = vmatpush.bf16.msra.mxu0 0
  %311 = vmatpush.bf16.msra.mxu0 %v183
  %312 = vmatpush.bf16.msra.mxu0 %v123
  %313 = vmatmul.bf16.gmra.mxu0 %v149
  %v314 = vpop.f32.mrf.mxu0
  %v315 = vadd.f32 %v44, %v314
  %v316 = vpop.f32.mrf.mxu0
  %317 = vdwg.mxu0
  %318 = vmatpush.bf16.msra.mxu0 0
  %319 = vmatpush.bf16.msra.mxu0 0
  %320 = vmatpush.bf16.msra.mxu0 0
  %321 = vmatpush.bf16.msra.mxu0 0
  %322 = vmatpush.bf16.msra.mxu0 0
  %323 = vmatpush.bf16.msra.mxu0 0
  %324 = vmatpush.bf16.msra.mxu0 %v186
  %325 = vmatpush.bf16.msra.mxu0 %v124
  %326 = vmatmul.bf16.gmra.mxu0 %v149
  %v327 = vpop.f32.mrf.mxu0
  %v328 = vadd.f32 %v44, %v327
  %v329 = vpop.f32.mrf.mxu0
  %330 = vdwg.mxu0
  %v341 = vrot.slane %v211, 4
  %v342 = vrot.slane %v237, 4
  %v343 = vrot.slane %v263, 4
  %v344 = vrot.slane %v289, 4
  %v345 = vrot.slane %v315, 4
  %v346 = vsel %vm151, %v198, %v341
  %v347 = vsel %vm151, %v224, %v342
  %v348 = vsel %vm151, %v250, %v343
  %v349 = vsel %vm151, %v276, %v344
  %v350 = vsel %vm151, %v302, %v345
  %356 = vst [vmem:[%s3] sm:$0xff] %v346
  %357 = vst [vmem:[%s3 + $0x8] sm:$0xff] %v347
  %358 = vst [vmem:[%s3 + $0x10] sm:$0xff] %v348
  %359 = vst [vmem:[%s3 + $0x18] sm:$0xff] %v349
  %360 = vst [vmem:[%s3 + $0x20] sm:$0xff] %v350
  %vm361 = vcmask 584704
  %362 = vst.msk [vmem:[%s3 + $0x28] sm:$0xf] %vm361, %v328
  // Predicated region
  $region14: #{unet_forward.20} parent=0 // pred_check
    _
  $region15: #{unet_forward.20} parent=0 // pred_check_branch
    %364 = sbr.rel (0) target = $region17
  $region16: #{unet_forward.20} parent=0 // pred_region
    _
  $region17: #{unet_forward.20} parent=0 // pred_fallthru
    _
  // Predicated region
  $region18: #{unet_forward.20} parent=0 // pred_check
    _
  $region19: #{unet_forward.20} parent=0 // pred_check_branch
    %366 = sbr.rel (0) target = $region21
  $region20: #{unet_forward.20} parent=0 // pred_region
    _
  $region21: #{unet_forward.20} parent=0 // pred_fallthru
    _

// kernel: unet_forward.21
$region0: #{unet_forward.21}
  #allocation0 [shape = 'u32[]', space=smem, size = 0x4, offset = 0x4, fixed_abs, tag = 'smem constant byte address 0x4 - core index']
  #allocation1 [shape = 'u32[72,128]{1,0:T(1,128)}', space=vmem, size = 0x9000, scoped, tag = 'internal scratch']
  %s0 = inlined_call_operand.vmem [shape: bf16[4,36], index: 0, kind: input, shape index: {}]
  %s1 = inlined_call_operand.vmem [shape: bf16[36,1352], index: 1, kind: input, shape index: {}]
  %s2 = inlined_call_operand.vmem [shape: f32[4,1], index: 2, kind: input, shape index: {}]
  %s3 = inlined_call_operand.vmem [shape: f32[1,1352], index: 3, kind: input, shape index: {}]
  %s4 = inlined_call_operand.vmem [shape: f32[4,1352], index: 4, kind: output, shape index: {}]
  %s5 = sld [smem:[#allocation0]]
  $region26: #{unet_forward.21} parent=0
    _
  %s7 = ssub.s32 1, %s5
  %s8 = scalar_select 0, %s7, %s5
  // Predicated region
  $region2: #{unet_forward.21} parent=0 // pred_check
    _
  $region3: #{unet_forward.21} parent=0 // pred_check_branch
    %10 = sbr.rel (0) target = $region5
  $region4: #{unet_forward.21} parent=0 // pred_region
    _
  $region5: #{unet_forward.21} parent=0 // pred_fallthru
    _
  // Predicated region
  $region6: #{unet_forward.21} parent=0 // pred_check
    _
  $region7: #{unet_forward.21} parent=0 // pred_check_branch
    %12 = sbr.rel (0) target = $region9
  $region8: #{unet_forward.21} parent=0 // pred_region
    _
  $region9: #{unet_forward.21} parent=0 // pred_fallthru
    _
  // Predicated region
  $region10: #{unet_forward.21} parent=0 // pred_check
    _
  $region11: #{unet_forward.21} parent=0 // pred_check_branch
    %14 = sbr.rel (0) target = $region13
  $region12: #{unet_forward.21} parent=0 // pred_region
    _
  $region13: #{unet_forward.21} parent=0 // pred_fallthru
    _
  // Predicated region
  $region14: #{unet_forward.21} parent=0 // pred_check
    _
  $region15: #{unet_forward.21} parent=0 // pred_check_branch
    %16 = sbr.rel (0) target = $region17
  $region16: #{unet_forward.21} parent=0 // pred_region
    _
  $region17: #{unet_forward.21} parent=0 // pred_fallthru
    _
  %v18 = vld [vmem:[%s0] sm:$0x3]
  %v19 = vld [vmem:[%s1] sm:$0xff]
  %v20 = vld [vmem:[%s1 + $0x8] sm:$0xff]
  %v21 = vld [vmem:[%s1 + $0x10] sm:$0xff]
  %v22 = vld [vmem:[%s1 + $0x18] sm:$0xff]
  %v23 = vld [vmem:[%s1 + $0x20] sm:$0xff]
  %v24 = vld [vmem:[%s1 + $0x28] sm:$0xf]
  %v25 = vld [vmem:[%s1 + $0x2c] sm:$0xff]
  %v26 = vld [vmem:[%s1 + $0x34] sm:$0xff]
  %v27 = vld [vmem:[%s1 + $0x3c] sm:$0xff]
  %v28 = vld [vmem:[%s1 + $0x44] sm:$0xff]
  %v29 = vld [vmem:[%s1 + $0x4c] sm:$0xff]
  %v30 = vld [vmem:[%s1 + $0x54] sm:$0xf]
  %v31 = vld [vmem:[%s1 + $0x58] sm:$0xff]
  %v32 = vld [vmem:[%s1 + $0x60] sm:$0xff]
  %v33 = vld [vmem:[%s1 + $0x68] sm:$0xff]
  %v34 = vld [vmem:[%s1 + $0x70] sm:$0xff]
  %v35 = vld [vmem:[%s1 + $0x78] sm:$0xff]
  %v36 = vld [vmem:[%s1 + $0x80] sm:$0xf]
  %v37 = vld [vmem:[%s1 + $0x84] sm:$0xff]
  %v38 = vld [vmem:[%s1 + $0x8c] sm:$0xff]
  %v39 = vld [vmem:[%s1 + $0x94] sm:$0xff]
  %v40 = vld [vmem:[%s1 + $0x9c] sm:$0xff]
  %v41 = vld [vmem:[%s1 + $0xa4] sm:$0xff]
  %v42 = vld [vmem:[%s1 + $0xac] sm:$0xf]
  %v43 = vld [vmem:[%s1 + $0xb0] sm:$0x33]
  %v44 = vld [vmem:[%s1 + $0xb8] sm:$0x33]
  %v45 = vld [vmem:[%s1 + $0xc0] sm:$0x33]
  %v46 = vld [vmem:[%s1 + $0xc8] sm:$0x33]
  %v47 = vld [vmem:[%s1 + $0xd0] sm:$0x33]
  %v48 = vld [vmem:[%s1 + $0xd8] sm:$0x3]
  %v49 = vld [vmem:[%s2] sm:$0xf]
  %51 = vset.pattern.permute.xlu0 0
  %52 = vperm.xlu0 %51, %v49
  %v53 = vpop.permute.xlu0 %52
  %v85 = vunpack.c.l.b16 %v19
  %v86 = vunpack.c.h.b16 %v19
  %v87 = vunpack.c.l.b16 %v20
  %v88 = vunpack.c.h.b16 %v20
  %v89 = vunpack.c.l.b16 %v21
  %v90 = vunpack.c.h.b16 %v21
  %v91 = vunpack.c.l.b16 %v22
  %v92 = vunpack.c.h.b16 %v22
  %v93 = vunpack.c.l.b16 %v23
  %v94 = vunpack.c.h.b16 %v23
  %v95 = vunpack.c.l.b16 %v24
  %v96 = vunpack.c.l.b16 %v25
  %v97 = vunpack.c.h.b16 %v25
  %v98 = vunpack.c.l.b16 %v26
  %v99 = vunpack.c.h.b16 %v26
  %v100 = vunpack.c.l.b16 %v27
  %v101 = vunpack.c.h.b16 %v27
  %v102 = vunpack.c.l.b16 %v28
  %v103 = vunpack.c.h.b16 %v28
  %v104 = vunpack.c.l.b16 %v29
  %v105 = vunpack.c.h.b16 %v29
  %v106 = vunpack.c.l.b16 %v30
  %v107 = vunpack.c.l.b16 %v31
  %v108 = vunpack.c.h.b16 %v31
  %v109 = vunpack.c.l.b16 %v32
  %v110 = vunpack.c.h.b16 %v32
  %v111 = vunpack.c.l.b16 %v33
  %v112 = vunpack.c.h.b16 %v33
  %v113 = vunpack.c.l.b16 %v34
  %v114 = vunpack.c.h.b16 %v34
  %v115 = vunpack.c.l.b16 %v35
  %v116 = vunpack.c.h.b16 %v35
  %v117 = vunpack.c.l.b16 %v36
  %v118 = vunpack.c.l.b16 %v37
  %v119 = vunpack.c.h.b16 %v37
  %v120 = vunpack.c.l.b16 %v38
  %v121 = vunpack.c.h.b16 %v38
  %v122 = vunpack.c.l.b16 %v39
  %v123 = vunpack.c.h.b16 %v39
  %v124 = vunpack.c.l.b16 %v40
  %v125 = vunpack.c.h.b16 %v40
  %v126 = vunpack.c.l.b16 %v41
  %v127 = vunpack.c.h.b16 %v41
  %v128 = vunpack.c.l.b16 %v42
  %v129 = vunpack.c.l.b16 %v43
  %v130 = vunpack.c.h.b16 %v43
  %v131 = vunpack.c.l.b16 %v44
  %v132 = vunpack.c.h.b16 %v44
  %v133 = vunpack.c.l.b16 %v45
  %v134 = vunpack.c.h.b16 %v45
  %v135 = vunpack.c.l.b16 %v46
  %v136 = vunpack.c.h.b16 %v46
  %v137 = vunpack.c.l.b16 %v47
  %v138 = vunpack.c.h.b16 %v47
  %v139 = vunpack.c.l.b16 %v48
  %v140 = vpack.c.b16 %v96, %v85
  %v141 = vpack.c.b16 %v97, %v86
  %v142 = vpack.c.b16 %v98, %v87
  %v143 = vpack.c.b16 %v99, %v88
  %v144 = vpack.c.b16 %v100, %v89
  %v145 = vpack.c.b16 %v101, %v90
  %v146 = vpack.c.b16 %v102, %v91
  %v147 = vpack.c.b16 %v103, %v92
  %v148 = vpack.c.b16 %v104, %v93
  %v149 = vpack.c.b16 %v105, %v94
  %v150 = vpack.c.b16 %v106, %v95
  %v151 = vpack.c.b16 %v118, %v107
  %v152 = vpack.c.b16 %v119, %v108
  %v153 = vpack.c.b16 %v120, %v109
  %v154 = vpack.c.b16 %v121, %v110
  %v155 = vpack.c.b16 %v122, %v111
  %v156 = vpack.c.b16 %v123, %v112
  %v157 = vpack.c.b16 %v124, %v113
  %v158 = vpack.c.b16 %v125, %v114
  %v159 = vpack.c.b16 %v126, %v115
  %v160 = vpack.c.b16 %v127, %v116
  %v161 = vpack.c.b16 %v128, %v117
  %v162 = vpack.c.b16 %v129, %v129
  %v163 = vpack.c.b16 %v130, %v130
  %v164 = vpack.c.b16 %v131, %v131
  %v165 = vpack.c.b16 %v132, %v132
  %v166 = vpack.c.b16 %v133, %v133
  %v167 = vpack.c.b16 %v134, %v134
  %v168 = vpack.c.b16 %v135, %v135
  %v169 = vpack.c.b16 %v136, %v136
  %v170 = vpack.c.b16 %v137, %v137
  %v171 = vpack.c.b16 %v138, %v138
  %v172 = vpack.c.b16 %v139, %v139
  %vm195 = vcmask 293888
  %v197 = vsel %vm195, %v18, 0
  %vm199 = vcmask 1041408
  %v201 = vsel %vm199, %v162, 0
  %v204 = vsel %vm199, %v163, 0
  %v207 = vsel %vm199, %v164, 0
  %v210 = vsel %vm199, %v165, 0
  %v213 = vsel %vm199, %v166, 0
  %v216 = vsel %vm199, %v167, 0
  %v219 = vsel %vm199, %v168, 0
  %v222 = vsel %vm199, %v169, 0
  %v225 = vsel %vm199, %v170, 0
  %v228 = vsel %vm199, %v171, 0
  %v231 = vsel %vm199, %v172, 0
  %233 = vmatpush.bf16.msra.mxu0 0
  %234 = vmatpush.bf16.msra.mxu0 0
  %235 = vmatpush.bf16.msra.mxu0 0
  %236 = vmatpush.bf16.msra.mxu0 0
  %237 = vmatpush.bf16.msra.mxu0 0
  %238 = vmatpush.bf16.msra.mxu0 %v201
  %239 = vmatpush.bf16.msra.mxu0 %v151
  %240 = vmatpush.bf16.msra.mxu0 %v140
  %241 = vmatmul.bf16.gmra.mxu0 %v197
  %v242 = vpop.f32.mrf.mxu0
  %v243 = vadd.f32 %v53, %v242
  %v244 = vpop.f32.mrf.mxu0
  %245 = vdwg.mxu0
  %246 = vmatpush.bf16.msra.mxu0 0
  %247 = vmatpush.bf16.msra.mxu0 0
  %248 = vmatpush.bf16.msra.mxu0 0
  %249 = vmatpush.bf16.msra.mxu0 0
  %250 = vmatpush.bf16.msra.mxu0 0
  %251 = vmatpush.bf16.msra.mxu0 %v204
  %252 = vmatpush.bf16.msra.mxu0 %v152
  %253 = vmatpush.bf16.msra.mxu0 %v141
  %254 = vmatmul.bf16.gmra.mxu0 %v197
  %v255 = vpop.f32.mrf.mxu0
  %v256 = vadd.f32 %v53, %v255
  %v257 = vpop.f32.mrf.mxu0
  %258 = vdwg.mxu0
  %259 = vmatpush.bf16.msra.mxu0 0
  %260 = vmatpush.bf16.msra.mxu0 0
  %261 = vmatpush.bf16.msra.mxu0 0
  %262 = vmatpush.bf16.msra.mxu0 0
  %263 = vmatpush.bf16.msra.mxu0 0
  %264 = vmatpush.bf16.msra.mxu0 %v207
  %265 = vmatpush.bf16.msra.mxu0 %v153
  %266 = vmatpush.bf16.msra.mxu0 %v142
  %267 = vmatmul.bf16.gmra.mxu0 %v197
  %v268 = vpop.f32.mrf.mxu0
  %v269 = vadd.f32 %v53, %v268
  %v270 = vpop.f32.mrf.mxu0
  %271 = vdwg.mxu0
  %272 = vmatpush.bf16.msra.mxu0 0
  %273 = vmatpush.bf16.msra.mxu0 0
  %274 = vmatpush.bf16.msra.mxu0 0
  %275 = vmatpush.bf16.msra.mxu0 0
  %276 = vmatpush.bf16.msra.mxu0 0
  %277 = vmatpush.bf16.msra.mxu0 %v210
  %278 = vmatpush.bf16.msra.mxu0 %v154
  %279 = vmatpush.bf16.msra.mxu0 %v143
  %280 = vmatmul.bf16.gmra.mxu0 %v197
  %v281 = vpop.f32.mrf.mxu0
  %v282 = vadd.f32 %v53, %v281
  %v283 = vpop.f32.mrf.mxu0
  %284 = vdwg.mxu0
  %285 = vmatpush.bf16.msra.mxu0 0
  %286 = vmatpush.bf16.msra.mxu0 0
  %287 = vmatpush.bf16.msra.mxu0 0
  %288 = vmatpush.bf16.msra.mxu0 0
  %289 = vmatpush.bf16.msra.mxu0 0
  %290 = vmatpush.bf16.msra.mxu0 %v213
  %291 = vmatpush.bf16.msra.mxu0 %v155
  %292 = vmatpush.bf16.msra.mxu0 %v144
  %293 = vmatmul.bf16.gmra.mxu0 %v197
  %v294 = vpop.f32.mrf.mxu0
  %v295 = vadd.f32 %v53, %v294
  %v296 = vpop.f32.mrf.mxu0
  %297 = vdwg.mxu0
  %298 = vmatpush.bf16.msra.mxu0 0
  %299 = vmatpush.bf16.msra.mxu0 0
  %300 = vmatpush.bf16.msra.mxu0 0
  %301 = vmatpush.bf16.msra.mxu0 0
  %302 = vmatpush.bf16.msra.mxu0 0
  %303 = vmatpush.bf16.msra.mxu0 %v216
  %304 = vmatpush.bf16.msra.mxu0 %v156
  %305 = vmatpush.bf16.msra.mxu0 %v145
  %306 = vmatmul.bf16.gmra.mxu0 %v197
  %v307 = vpop.f32.mrf.mxu0
  %v308 = vadd.f32 %v53, %v307
  %v309 = vpop.f32.mrf.mxu0
  %310 = vdwg.mxu0
  %311 = vmatpush.bf16.msra.mxu0 0
  %312 = vmatpush.bf16.msra.mxu0 0
  %313 = vmatpush.bf16.msra.mxu0 0
  %314 = vmatpush.bf16.msra.mxu0 0
  %315 = vmatpush.bf16.msra.mxu0 0
  %316 = vmatpush.bf16.msra.mxu0 %v219
  %317 = vmatpush.bf16.msra.mxu0 %v157
  %318 = vmatpush.bf16.msra.mxu0 %v146
  %319 = vmatmul.bf16.gmra.mxu0 %v197
  %v320 = vpop.f32.mrf.mxu0
  %v321 = vadd.f32 %v53, %v320
  %v322 = vpop.f32.mrf.mxu0
  %323 = vdwg.mxu0
  %324 = vmatpush.bf16.msra.mxu0 0
  %325 = vmatpush.bf16.msra.mxu0 0
  %326 = vmatpush.bf16.msra.mxu0 0
  %327 = vmatpush.bf16.msra.mxu0 0
  %328 = vmatpush.bf16.msra.mxu0 0
  %329 = vmatpush.bf16.msra.mxu0 %v222
  %330 = vmatpush.bf16.msra.mxu0 %v158
  %331 = vmatpush.bf16.msra.mxu0 %v147
  %332 = vmatmul.bf16.gmra.mxu0 %v197
  %v333 = vpop.f32.mrf.mxu0
  %v334 = vadd.f32 %v53, %v333
  %v335 = vpop.f32.mrf.mxu0
  %336 = vdwg.mxu0
  %337 = vmatpush.bf16.msra.mxu0 0
  %338 = vmatpush.bf16.msra.mxu0 0
  %339 = vmatpush.bf16.msra.mxu0 0
  %340 = vmatpush.bf16.msra.mxu0 0
  %341 = vmatpush.bf16.msra.mxu0 0
  %342 = vmatpush.bf16.msra.mxu0 %v225
  %343 = vmatpush.bf16.msra.mxu0 %v159
  %344 = vmatpush.bf16.msra.mxu0 %v148
  %345 = vmatmul.bf16.gmra.mxu0 %v197
  %v346 = vpop.f32.mrf.mxu0
  %v347 = vadd.f32 %v53, %v346
  %v348 = vpop.f32.mrf.mxu0
  %349 = vdwg.mxu0
  %350 = vmatpush.bf16.msra.mxu0 0
  %351 = vmatpush.bf16.msra.mxu0 0
  %352 = vmatpush.bf16.msra.mxu0 0
  %353 = vmatpush.bf16.msra.mxu0 0
  %354 = vmatpush.bf16.msra.mxu0 0
  %355 = vmatpush.bf16.msra.mxu0 %v228
  %356 = vmatpush.bf16.msra.mxu0 %v160
  %357 = vmatpush.bf16.msra.mxu0 %v149
  %358 = vmatmul.bf16.gmra.mxu0 %v197
  %v359 = vpop.f32.mrf.mxu0
  %v360 = vadd.f32 %v53, %v359
  %v361 = vpop.f32.mrf.mxu0
  %362 = vdwg.mxu0
  %363 = vmatpush.bf16.msra.mxu0 0
  %364 = vmatpush.bf16.msra.mxu0 0
  %365 = vmatpush.bf16.msra.mxu0 0
  %366 = vmatpush.bf16.msra.mxu0 0
  %367 = vmatpush.bf16.msra.mxu0 0
  %368 = vmatpush.bf16.msra.mxu0 %v231
  %369 = vmatpush.bf16.msra.mxu0 %v161
  %370 = vmatpush.bf16.msra.mxu0 %v150
  %371 = vmatmul.bf16.gmra.mxu0 %v197
  %v372 = vpop.f32.mrf.mxu0
  %v373 = vadd.f32 %v53, %v372
  %v374 = vpop.f32.mrf.mxu0
  %375 = vdwg.mxu0
  %v376 = vsub.f32 0.0, %v243
  %v377 = vsub.f32 0.0, %v256
  %v378 = vsub.f32 0.0, %v269
  %v379 = vsub.f32 0.0, %v282
  %v380 = vsub.f32 0.0, %v295
  %v381 = vsub.f32 0.0, %v308
  %v382 = vsub.f32 0.0, %v321
  %v383 = vsub.f32 0.0, %v334
  %v384 = vsub.f32 0.0, %v347
  %v385 = vsub.f32 0.0, %v360
  %v386 = vsub.f32 0.0, %v373
  %v387 = vmul.f32 %v376, 1.442695
  %v388 = vpow.pop %v387
  %v389 = vmul.f32 %v377, 1.442695
  %v390 = vpow.pop %v389
  %v391 = vmul.f32 %v378, 1.442695
  %v392 = vpow.pop %v391
  %v393 = vmul.f32 %v379, 1.442695
  %v394 = vpow.pop %v393
  %v395 = vmul.f32 %v380, 1.442695
  %v396 = vpow.pop %v395
  %v397 = vmul.f32 %v381, 1.442695
  %v398 = vpow.pop %v397
  %v399 = vmul.f32 %v382, 1.442695
  %v400 = vpow.pop %v399
  %v401 = vmul.f32 %v383, 1.442695
  %v402 = vpow.pop %v401
  %v403 = vmul.f32 %v384, 1.442695
  %v404 = vpow.pop %v403
  %v405 = vmul.f32 %v385, 1.442695
  %v406 = vpow.pop %v405
  %v407 = vmul.f32 %v386, 1.442695
  %v408 = vpow.pop %v407
  %v409 = vadd.f32 %v388, 1.0
  %v410 = vadd.f32 %v390, 1.0
  %v411 = vadd.f32 %v392, 1.0
  %v412 = vadd.f32 %v394, 1.0
  %v413 = vadd.f32 %v396, 1.0
  %v414 = vadd.f32 %v398, 1.0
  %v415 = vadd.f32 %v400, 1.0
  %v416 = vadd.f32 %v402, 1.0
  %v417 = vadd.f32 %v404, 1.0
  %v418 = vadd.f32 %v406, 1.0
  %v419 = vadd.f32 %v408, 1.0
  %v420 = vrcp.pop %v409
  %v421 = vrcp.pop %v410
  %v422 = vrcp.pop %v411
  %v423 = vrcp.pop %v412
  %v424 = vrcp.pop %v413
  %v425 = vrcp.pop %v414
  %v426 = vrcp.pop %v415
  %v427 = vrcp.pop %v416
  %v428 = vrcp.pop %v417
  %v429 = vrcp.pop %v418
  %v430 = vrcp.pop %v419
  %v431 = vmul.f32 %v243, %v420
  %v432 = vmul.f32 %v256, %v421
  %v433 = vmul.f32 %v269, %v422
  %v434 = vmul.f32 %v282, %v423
  %v435 = vmul.f32 %v295, %v424
  %v436 = vmul.f32 %v308, %v425
  %v437 = vmul.f32 %v321, %v426
  %v438 = vmul.f32 %v334, %v427
  %v439 = vmul.f32 %v347, %v428
  %v440 = vmul.f32 %v360, %v429
  %v441 = vmul.f32 %v373, %v430
  %v442 = vld [vmem:[%s3] sm:$0xff]
  %v443 = vld [vmem:[%s3 + $0x8] sm:$0x7]
  %v446 = vperm.slane %v442, 0
  %v447 = vperm.slane %v442, 1
  %v448 = vperm.slane %v442, 2
  %v449 = vperm.slane %v442, 3
  %v450 = vperm.slane %v442, 4
  %v451 = vperm.slane %v442, 5
  %v452 = vperm.slane %v442, 6
  %v453 = vperm.slane %v442, 7
  %v454 = vperm.slane %v443, 0
  %v455 = vperm.slane %v443, 1
  %v456 = vperm.slane %v443, 2
  %v468 = vadd.f32 %v431, %v446
  %v469 = vadd.f32 %v432, %v447
  %v470 = vadd.f32 %v433, %v448
  %v471 = vadd.f32 %v434, %v449
  %v472 = vadd.f32 %v435, %v450
  %v473 = vadd.f32 %v436, %v451
  %v474 = vadd.f32 %v437, %v452
  %v475 = vadd.f32 %v438, %v453
  %v476 = vadd.f32 %v439, %v454
  %v477 = vadd.f32 %v440, %v455
  %v478 = vadd.f32 %v441, %v456
  %v489 = vrot.slane %v469, 4
  %v490 = vrot.slane %v471, 4
  %v491 = vrot.slane %v473, 4
  %v492 = vrot.slane %v475, 4
  %v493 = vrot.slane %v477, 4
  %vm494 = vcmask 1043456
  %v495 = vsel %vm494, %v468, %v489
  %v496 = vsel %vm494, %v470, %v490
  %v497 = vsel %vm494, %v472, %v491
  %v498 = vsel %vm494, %v474, %v492
  %v499 = vsel %vm494, %v476, %v493
  %505 = vst [vmem:[%s4] sm:$0xff] %v495
  %506 = vst [vmem:[%s4 + $0x8] sm:$0xff] %v496
  %507 = vst [vmem:[%s4 + $0x10] sm:$0xff] %v497
  %508 = vst [vmem:[%s4 + $0x18] sm:$0xff] %v498
  %509 = vst [vmem:[%s4 + $0x20] sm:$0xff] %v499
  %vm510 = vcmask 584704
  %511 = vst.msk [vmem:[%s4 + $0x28] sm:$0xf] %vm510, %v478
  // Predicated region
  $region18: #{unet_forward.21} parent=0 // pred_check
    _
  $region19: #{unet_forward.21} parent=0 // pred_check_branch
    %513 = sbr.rel (0) target = $region21
  $region20: #{unet_forward.21} parent=0 // pred_region
    _
  $region21: #{unet_forward.21} parent=0 // pred_fallthru
    _
  // Predicated region
  $region22: #{unet_forward.21} parent=0 // pred_check
    _
  $region23: #{unet_forward.21} parent=0 // pred_check_branch
    %515 = sbr.rel (0) target = $region25
  $region24: #{unet_forward.21} parent=0 // pred_region
    _
  $region25: #{unet_forward.21} parent=0 // pred_fallthru
    _

// kernel: unet_forward.22
$region0: #{unet_forward.22}
  #allocation0 [shape = 'u32[]', space=smem, size = 0x4, offset = 0x4, fixed_abs, tag = 'smem constant byte address 0x4 - core index']
  #allocation1 [shape = 'u32[72,128]{1,0:T(1,128)}', space=vmem, size = 0x9000, scoped, tag = 'internal scratch']
  %s0 = inlined_call_operand.vmem [shape: bf16[4,36], index: 0, kind: input, shape index: {}]
  %s1 = inlined_call_operand.vmem [shape: bf16[36,1352], index: 1, kind: input, shape index: {}]
  %s2 = inlined_call_operand.vmem [shape: f32[4,1], index: 2, kind: input, shape index: {}]
  %s3 = inlined_call_operand.vmem [shape: f32[4,1352], index: 3, kind: input, shape index: {}]
  %s4 = inlined_call_operand.vmem [shape: f32[4,1352], index: 4, kind: output, shape index: {}]
  %s5 = sld [smem:[#allocation0]]
  $region26: #{unet_forward.22} parent=0
    _
  %s7 = ssub.s32 1, %s5
  %s8 = scalar_select 0, %s7, %s5
  // Predicated region
  $region2: #{unet_forward.22} parent=0 // pred_check
    _
  $region3: #{unet_forward.22} parent=0 // pred_check_branch
    %10 = sbr.rel (0) target = $region5
  $region4: #{unet_forward.22} parent=0 // pred_region
    _
  $region5: #{unet_forward.22} parent=0 // pred_fallthru
    _
  // Predicated region
  $region6: #{unet_forward.22} parent=0 // pred_check
    _
  $region7: #{unet_forward.22} parent=0 // pred_check_branch
    %12 = sbr.rel (0) target = $region9
  $region8: #{unet_forward.22} parent=0 // pred_region
    _
  $region9: #{unet_forward.22} parent=0 // pred_fallthru
    _
  // Predicated region
  $region10: #{unet_forward.22} parent=0 // pred_check
    _
  $region11: #{unet_forward.22} parent=0 // pred_check_branch
    %14 = sbr.rel (0) target = $region13
  $region12: #{unet_forward.22} parent=0 // pred_region
    _
  $region13: #{unet_forward.22} parent=0 // pred_fallthru
    _
  // Predicated region
  $region14: #{unet_forward.22} parent=0 // pred_check
    _
  $region15: #{unet_forward.22} parent=0 // pred_check_branch
    %16 = sbr.rel (0) target = $region17
  $region16: #{unet_forward.22} parent=0 // pred_region
    _
  $region17: #{unet_forward.22} parent=0 // pred_fallthru
    _
  %v18 = vld [vmem:[%s0] sm:$0x3]
  %v19 = vld [vmem:[%s1] sm:$0xff]
  %v20 = vld [vmem:[%s1 + $0x8] sm:$0xff]
  %v21 = vld [vmem:[%s1 + $0x10] sm:$0xff]
  %v22 = vld [vmem:[%s1 + $0x18] sm:$0xff]
  %v23 = vld [vmem:[%s1 + $0x20] sm:$0xff]
  %v24 = vld [vmem:[%s1 + $0x28] sm:$0xf]
  %v25 = vld [vmem:[%s1 + $0x2c] sm:$0xff]
  %v26 = vld [vmem:[%s1 + $0x34] sm:$0xff]
  %v27 = vld [vmem:[%s1 + $0x3c] sm:$0xff]
  %v28 = vld [vmem:[%s1 + $0x44] sm:$0xff]
  %v29 = vld [vmem:[%s1 + $0x4c] sm:$0xff]
  %v30 = vld [vmem:[%s1 + $0x54] sm:$0xf]
  %v31 = vld [vmem:[%s1 + $0x58] sm:$0xff]
  %v32 = vld [vmem:[%s1 + $0x60] sm:$0xff]
  %v33 = vld [vmem:[%s1 + $0x68] sm:$0xff]
  %v34 = vld [vmem:[%s1 + $0x70] sm:$0xff]
  %v35 = vld [vmem:[%s1 + $0x78] sm:$0xff]
  %v36 = vld [vmem:[%s1 + $0x80] sm:$0xf]
  %v37 = vld [vmem:[%s1 + $0x84] sm:$0xff]
  %v38 = vld [vmem:[%s1 + $0x8c] sm:$0xff]
  %v39 = vld [vmem:[%s1 + $0x94] sm:$0xff]
  %v40 = vld [vmem:[%s1 + $0x9c] sm:$0xff]
  %v41 = vld [vmem:[%s1 + $0xa4] sm:$0xff]
  %v42 = vld [vmem:[%s1 + $0xac] sm:$0xf]
  %v43 = vld [vmem:[%s1 + $0xb0] sm:$0x33]
  %v44 = vld [vmem:[%s1 + $0xb8] sm:$0x33]
  %v45 = vld [vmem:[%s1 + $0xc0] sm:$0x33]
  %v46 = vld [vmem:[%s1 + $0xc8] sm:$0x33]
  %v47 = vld [vmem:[%s1 + $0xd0] sm:$0x33]
  %v48 = vld [vmem:[%s1 + $0xd8] sm:$0x3]
  %v49 = vld [vmem:[%s2] sm:$0xf]
  %51 = vset.pattern.permute.xlu0 0
  %52 = vperm.xlu0 %51, %v49
  %v53 = vpop.permute.xlu0 %52
  %v85 = vunpack.c.l.b16 %v19
  %v86 = vunpack.c.h.b16 %v19
  %v87 = vunpack.c.l.b16 %v20
  %v88 = vunpack.c.h.b16 %v20
  %v89 = vunpack.c.l.b16 %v21
  %v90 = vunpack.c.h.b16 %v21
  %v91 = vunpack.c.l.b16 %v22
  %v92 = vunpack.c.h.b16 %v22
  %v93 = vunpack.c.l.b16 %v23
  %v94 = vunpack.c.h.b16 %v23
  %v95 = vunpack.c.l.b16 %v24
  %v96 = vunpack.c.l.b16 %v25
  %v97 = vunpack.c.h.b16 %v25
  %v98 = vunpack.c.l.b16 %v26
  %v99 = vunpack.c.h.b16 %v26
  %v100 = vunpack.c.l.b16 %v27
  %v101 = vunpack.c.h.b16 %v27
  %v102 = vunpack.c.l.b16 %v28
  %v103 = vunpack.c.h.b16 %v28
  %v104 = vunpack.c.l.b16 %v29
  %v105 = vunpack.c.h.b16 %v29
  %v106 = vunpack.c.l.b16 %v30
  %v107 = vunpack.c.l.b16 %v31
  %v108 = vunpack.c.h.b16 %v31
  %v109 = vunpack.c.l.b16 %v32
  %v110 = vunpack.c.h.b16 %v32
  %v111 = vunpack.c.l.b16 %v33
  %v112 = vunpack.c.h.b16 %v33
  %v113 = vunpack.c.l.b16 %v34
  %v114 = vunpack.c.h.b16 %v34
  %v115 = vunpack.c.l.b16 %v35
  %v116 = vunpack.c.h.b16 %v35
  %v117 = vunpack.c.l.b16 %v36
  %v118 = vunpack.c.l.b16 %v37
  %v119 = vunpack.c.h.b16 %v37
  %v120 = vunpack.c.l.b16 %v38
  %v121 = vunpack.c.h.b16 %v38
  %v122 = vunpack.c.l.b16 %v39
  %v123 = vunpack.c.h.b16 %v39
  %v124 = vunpack.c.l.b16 %v40
  %v125 = vunpack.c.h.b16 %v40
  %v126 = vunpack.c.l.b16 %v41
  %v127 = vunpack.c.h.b16 %v41
  %v128 = vunpack.c.l.b16 %v42
  %v129 = vunpack.c.l.b16 %v43
  %v130 = vunpack.c.h.b16 %v43
  %v131 = vunpack.c.l.b16 %v44
  %v132 = vunpack.c.h.b16 %v44
  %v133 = vunpack.c.l.b16 %v45
  %v134 = vunpack.c.h.b16 %v45
  %v135 = vunpack.c.l.b16 %v46
  %v136 = vunpack.c.h.b16 %v46
  %v137 = vunpack.c.l.b16 %v47
  %v138 = vunpack.c.h.b16 %v47
  %v139 = vunpack.c.l.b16 %v48
  %v140 = vpack.c.b16 %v96, %v85
  %v141 = vpack.c.b16 %v97, %v86
  %v142 = vpack.c.b16 %v98, %v87
  %v143 = vpack.c.b16 %v99, %v88
  %v144 = vpack.c.b16 %v100, %v89
  %v145 = vpack.c.b16 %v101, %v90
  %v146 = vpack.c.b16 %v102, %v91
  %v147 = vpack.c.b16 %v103, %v92
  %v148 = vpack.c.b16 %v104, %v93
  %v149 = vpack.c.b16 %v105, %v94
  %v150 = vpack.c.b16 %v106, %v95
  %v151 = vpack.c.b16 %v118, %v107
  %v152 = vpack.c.b16 %v119, %v108
  %v153 = vpack.c.b16 %v120, %v109
  %v154 = vpack.c.b16 %v121, %v110
  %v155 = vpack.c.b16 %v122, %v111
  %v156 = vpack.c.b16 %v123, %v112
  %v157 = vpack.c.b16 %v124, %v113
  %v158 = vpack.c.b16 %v125, %v114
  %v159 = vpack.c.b16 %v126, %v115
  %v160 = vpack.c.b16 %v127, %v116
  %v161 = vpack.c.b16 %v128, %v117
  %v162 = vpack.c.b16 %v129, %v129
  %v163 = vpack.c.b16 %v130, %v130
  %v164 = vpack.c.b16 %v131, %v131
  %v165 = vpack.c.b16 %v132, %v132
  %v166 = vpack.c.b16 %v133, %v133
  %v167 = vpack.c.b16 %v134, %v134
  %v168 = vpack.c.b16 %v135, %v135
  %v169 = vpack.c.b16 %v136, %v136
  %v170 = vpack.c.b16 %v137, %v137
  %v171 = vpack.c.b16 %v138, %v138
  %v172 = vpack.c.b16 %v139, %v139
  %vm195 = vcmask 293888
  %v197 = vsel %vm195, %v18, 0
  %vm199 = vcmask 1041408
  %v201 = vsel %vm199, %v162, 0
  %v204 = vsel %vm199, %v163, 0
  %v207 = vsel %vm199, %v164, 0
  %v210 = vsel %vm199, %v165, 0
  %v213 = vsel %vm199, %v166, 0
  %v216 = vsel %vm199, %v167, 0
  %v219 = vsel %vm199, %v168, 0
  %v222 = vsel %vm199, %v169, 0
  %v225 = vsel %vm199, %v170, 0
  %v228 = vsel %vm199, %v171, 0
  %v231 = vsel %vm199, %v172, 0
  %233 = vmatpush.bf16.msra.mxu0 0
  %234 = vmatpush.bf16.msra.mxu0 0
  %235 = vmatpush.bf16.msra.mxu0 0
  %236 = vmatpush.bf16.msra.mxu0 0
  %237 = vmatpush.bf16.msra.mxu0 0
  %238 = vmatpush.bf16.msra.mxu0 %v201
  %239 = vmatpush.bf16.msra.mxu0 %v151
  %240 = vmatpush.bf16.msra.mxu0 %v140
  %241 = vmatmul.bf16.gmra.mxu0 %v197
  %v242 = vpop.f32.mrf.mxu0
  %v243 = vadd.f32 %v53, %v242
  %v244 = vpop.f32.mrf.mxu0
  %245 = vdwg.mxu0
  %246 = vmatpush.bf16.msra.mxu0 0
  %247 = vmatpush.bf16.msra.mxu0 0
  %248 = vmatpush.bf16.msra.mxu0 0
  %249 = vmatpush.bf16.msra.mxu0 0
  %250 = vmatpush.bf16.msra.mxu0 0
  %251 = vmatpush.bf16.msra.mxu0 %v204
  %252 = vmatpush.bf16.msra.mxu0 %v152
  %253 = vmatpush.bf16.msra.mxu0 %v141
  %254 = vmatmul.bf16.gmra.mxu0 %v197
  %v255 = vpop.f32.mrf.mxu0
  %v256 = vadd.f32 %v53, %v255
  %v257 = vpop.f32.mrf.mxu0
  %258 = vdwg.mxu0
  %259 = vmatpush.bf16.msra.mxu0 0
  %260 = vmatpush.bf16.msra.mxu0 0
  %261 = vmatpush.bf16.msra.mxu0 0
  %262 = vmatpush.bf16.msra.mxu0 0
  %263 = vmatpush.bf16.msra.mxu0 0
  %264 = vmatpush.bf16.msra.mxu0 %v207
  %265 = vmatpush.bf16.msra.mxu0 %v153
  %266 = vmatpush.bf16.msra.mxu0 %v142
  %267 = vmatmul.bf16.gmra.mxu0 %v197
  %v268 = vpop.f32.mrf.mxu0
  %v269 = vadd.f32 %v53, %v268
  %v270 = vpop.f32.mrf.mxu0
  %271 = vdwg.mxu0
  %272 = vmatpush.bf16.msra.mxu0 0
  %273 = vmatpush.bf16.msra.mxu0 0
  %274 = vmatpush.bf16.msra.mxu0 0
  %275 = vmatpush.bf16.msra.mxu0 0
  %276 = vmatpush.bf16.msra.mxu0 0
  %277 = vmatpush.bf16.msra.mxu0 %v210
  %278 = vmatpush.bf16.msra.mxu0 %v154
  %279 = vmatpush.bf16.msra.mxu0 %v143
  %280 = vmatmul.bf16.gmra.mxu0 %v197
  %v281 = vpop.f32.mrf.mxu0
  %v282 = vadd.f32 %v53, %v281
  %v283 = vpop.f32.mrf.mxu0
  %284 = vdwg.mxu0
  %285 = vmatpush.bf16.msra.mxu0 0
  %286 = vmatpush.bf16.msra.mxu0 0
  %287 = vmatpush.bf16.msra.mxu0 0
  %288 = vmatpush.bf16.msra.mxu0 0
  %289 = vmatpush.bf16.msra.mxu0 0
  %290 = vmatpush.bf16.msra.mxu0 %v213
  %291 = vmatpush.bf16.msra.mxu0 %v155
  %292 = vmatpush.bf16.msra.mxu0 %v144
  %293 = vmatmul.bf16.gmra.mxu0 %v197
  %v294 = vpop.f32.mrf.mxu0
  %v295 = vadd.f32 %v53, %v294
  %v296 = vpop.f32.mrf.mxu0
  %297 = vdwg.mxu0
  %298 = vmatpush.bf16.msra.mxu0 0
  %299 = vmatpush.bf16.msra.mxu0 0
  %300 = vmatpush.bf16.msra.mxu0 0
  %301 = vmatpush.bf16.msra.mxu0 0
  %302 = vmatpush.bf16.msra.mxu0 0
  %303 = vmatpush.bf16.msra.mxu0 %v216
  %304 = vmatpush.bf16.msra.mxu0 %v156
  %305 = vmatpush.bf16.msra.mxu0 %v145
  %306 = vmatmul.bf16.gmra.mxu0 %v197
  %v307 = vpop.f32.mrf.mxu0
  %v308 = vadd.f32 %v53, %v307
  %v309 = vpop.f32.mrf.mxu0
  %310 = vdwg.mxu0
  %311 = vmatpush.bf16.msra.mxu0 0
  %312 = vmatpush.bf16.msra.mxu0 0
  %313 = vmatpush.bf16.msra.mxu0 0
  %314 = vmatpush.bf16.msra.mxu0 0
  %315 = vmatpush.bf16.msra.mxu0 0
  %316 = vmatpush.bf16.msra.mxu0 %v219
  %317 = vmatpush.bf16.msra.mxu0 %v157
  %318 = vmatpush.bf16.msra.mxu0 %v146
  %319 = vmatmul.bf16.gmra.mxu0 %v197
  %v320 = vpop.f32.mrf.mxu0
  %v321 = vadd.f32 %v53, %v320
  %v322 = vpop.f32.mrf.mxu0
  %323 = vdwg.mxu0
  %324 = vmatpush.bf16.msra.mxu0 0
  %325 = vmatpush.bf16.msra.mxu0 0
  %326 = vmatpush.bf16.msra.mxu0 0
  %327 = vmatpush.bf16.msra.mxu0 0
  %328 = vmatpush.bf16.msra.mxu0 0
  %329 = vmatpush.bf16.msra.mxu0 %v222
  %330 = vmatpush.bf16.msra.mxu0 %v158
  %331 = vmatpush.bf16.msra.mxu0 %v147
  %332 = vmatmul.bf16.gmra.mxu0 %v197
  %v333 = vpop.f32.mrf.mxu0
  %v334 = vadd.f32 %v53, %v333
  %v335 = vpop.f32.mrf.mxu0
  %336 = vdwg.mxu0
  %337 = vmatpush.bf16.msra.mxu0 0
  %338 = vmatpush.bf16.msra.mxu0 0
  %339 = vmatpush.bf16.msra.mxu0 0
  %340 = vmatpush.bf16.msra.mxu0 0
  %341 = vmatpush.bf16.msra.mxu0 0
  %342 = vmatpush.bf16.msra.mxu0 %v225
  %343 = vmatpush.bf16.msra.mxu0 %v159
  %344 = vmatpush.bf16.msra.mxu0 %v148
  %345 = vmatmul.bf16.gmra.mxu0 %v197
  %v346 = vpop.f32.mrf.mxu0
  %v347 = vadd.f32 %v53, %v346
  %v348 = vpop.f32.mrf.mxu0
  %349 = vdwg.mxu0
  %350 = vmatpush.bf16.msra.mxu0 0
  %351 = vmatpush.bf16.msra.mxu0 0
  %352 = vmatpush.bf16.msra.mxu0 0
  %353 = vmatpush.bf16.msra.mxu0 0
  %354 = vmatpush.bf16.msra.mxu0 0
  %355 = vmatpush.bf16.msra.mxu0 %v228
  %356 = vmatpush.bf16.msra.mxu0 %v160
  %357 = vmatpush.bf16.msra.mxu0 %v149
  %358 = vmatmul.bf16.gmra.mxu0 %v197
  %v359 = vpop.f32.mrf.mxu0
  %v360 = vadd.f32 %v53, %v359
  %v361 = vpop.f32.mrf.mxu0
  %362 = vdwg.mxu0
  %363 = vmatpush.bf16.msra.mxu0 0
  %364 = vmatpush.bf16.msra.mxu0 0
  %365 = vmatpush.bf16.msra.mxu0 0
  %366 = vmatpush.bf16.msra.mxu0 0
  %367 = vmatpush.bf16.msra.mxu0 0
  %368 = vmatpush.bf16.msra.mxu0 %v231
  %369 = vmatpush.bf16.msra.mxu0 %v161
  %370 = vmatpush.bf16.msra.mxu0 %v150
  %371 = vmatmul.bf16.gmra.mxu0 %v197
  %v372 = vpop.f32.mrf.mxu0
  %v373 = vadd.f32 %v53, %v372
  %v374 = vpop.f32.mrf.mxu0
  %375 = vdwg.mxu0
  %v376 = vsub.f32 0.0, %v243
  %v377 = vsub.f32 0.0, %v256
  %v378 = vsub.f32 0.0, %v269
  %v379 = vsub.f32 0.0, %v282
  %v380 = vsub.f32 0.0, %v295
  %v381 = vsub.f32 0.0, %v308
  %v382 = vsub.f32 0.0, %v321
  %v383 = vsub.f32 0.0, %v334
  %v384 = vsub.f32 0.0, %v347
  %v385 = vsub.f32 0.0, %v360
  %v386 = vsub.f32 0.0, %v373
  %v387 = vmul.f32 %v376, 1.442695
  %v388 = vpow.pop %v387
  %v389 = vmul.f32 %v377, 1.442695
  %v390 = vpow.pop %v389
  %v391 = vmul.f32 %v378, 1.442695
  %v392 = vpow.pop %v391
  %v393 = vmul.f32 %v379, 1.442695
  %v394 = vpow.pop %v393
  %v395 = vmul.f32 %v380, 1.442695
  %v396 = vpow.pop %v395
  %v397 = vmul.f32 %v381, 1.442695
  %v398 = vpow.pop %v397
  %v399 = vmul.f32 %v382, 1.442695
  %v400 = vpow.pop %v399
  %v401 = vmul.f32 %v383, 1.442695
  %v402 = vpow.pop %v401
  %v403 = vmul.f32 %v384, 1.442695
  %v404 = vpow.pop %v403
  %v405 = vmul.f32 %v385, 1.442695
  %v406 = vpow.pop %v405
  %v407 = vmul.f32 %v386, 1.442695
  %v408 = vpow.pop %v407
  %v409 = vadd.f32 %v388, 1.0
  %v410 = vadd.f32 %v390, 1.0
  %v411 = vadd.f32 %v392, 1.0
  %v412 = vadd.f32 %v394, 1.0
  %v413 = vadd.f32 %v396, 1.0
  %v414 = vadd.f32 %v398, 1.0
  %v415 = vadd.f32 %v400, 1.0
  %v416 = vadd.f32 %v402, 1.0
  %v417 = vadd.f32 %v404, 1.0
  %v418 = vadd.f32 %v406, 1.0
  %v419 = vadd.f32 %v408, 1.0
  %v420 = vrcp.pop %v409
  %v421 = vrcp.pop %v410
  %v422 = vrcp.pop %v411
  %v423 = vrcp.pop %v412
  %v424 = vrcp.pop %v413
  %v425 = vrcp.pop %v414
  %v426 = vrcp.pop %v415
  %v427 = vrcp.pop %v416
  %v428 = vrcp.pop %v417
  %v429 = vrcp.pop %v418
  %v430 = vrcp.pop %v419
  %v431 = vmul.f32 %v243, %v420
  %v432 = vmul.f32 %v256, %v421
  %v433 = vmul.f32 %v269, %v422
  %v434 = vmul.f32 %v282, %v423
  %v435 = vmul.f32 %v295, %v424
  %v436 = vmul.f32 %v308, %v425
  %v437 = vmul.f32 %v321, %v426
  %v438 = vmul.f32 %v334, %v427
  %v439 = vmul.f32 %v347, %v428
  %v440 = vmul.f32 %v360, %v429
  %v441 = vmul.f32 %v373, %v430
  %v442 = vld [vmem:[%s3] sm:$0xff]
  %v443 = vld [vmem:[%s3 + $0x8] sm:$0xff]
  %v444 = vld [vmem:[%s3 + $0x10] sm:$0xff]
  %v445 = vld [vmem:[%s3 + $0x18] sm:$0xff]
  %v446 = vld [vmem:[%s3 + $0x20] sm:$0xff]
  %v447 = vld [vmem:[%s3 + $0x28] sm:$0xf]
  %454 = vst [vmem:[#allocation1] ss:$2 sm:$0xff] %v442
  %s455 = scalar_lea.vmem [#allocation1], 16
  %456 = vst [vmem:[%s455] ss:$2 sm:$0xff] %v443
  %s457 = scalar_lea.vmem [#allocation1], 32
  %458 = vst [vmem:[%s457] ss:$2 sm:$0xff] %v444
  %s459 = scalar_lea.vmem [#allocation1], 48
  %460 = vst [vmem:[%s459] ss:$2 sm:$0xff] %v445
  %v461 = vld.sshfl [vmem:[#allocation1] sm:$0xff pattern:$0x75316420]
  %v462 = vld.sshfl [vmem:[#allocation1 + $0x8] sm:$0xff pattern:$0x75316420]
  %v463 = vld.sshfl [vmem:[#allocation1 + $0x10] sm:$0xff pattern:$0x75316420]
  %v464 = vld.sshfl [vmem:[#allocation1 + $0x18] sm:$0xff pattern:$0x75316420]
  %v465 = vld.sshfl [vmem:[#allocation1 + $0x20] sm:$0xff pattern:$0x75316420]
  %v466 = vld.sshfl [vmem:[#allocation1 + $0x28] sm:$0xff pattern:$0x75316420]
  %v467 = vld.sshfl [vmem:[#allocation1 + $0x30] sm:$0xff pattern:$0x75316420]
  %v468 = vld.sshfl [vmem:[#allocation1 + $0x38] sm:$0xff pattern:$0x75316420]
  %469 = vst [vmem:[#allocation1] ss:$2 sm:$0xff] %v446
  %470 = vst [vmem:[%s455] ss:$2 sm:$0xff] %v447
  %v471 = vld.sshfl [vmem:[#allocation1] sm:$0xff pattern:$0x75316420]
  %v472 = vld.sshfl [vmem:[#allocation1 + $0x8] sm:$0xff pattern:$0x75316420]
  %v473 = vld.sshfl [vmem:[#allocation1 + $0x10] sm:$0xff pattern:$0x75316420]
  %v485 = vadd.f32 %v431, %v461
  %v486 = vadd.f32 %v432, %v462
  %v487 = vadd.f32 %v433, %v463
  %v488 = vadd.f32 %v434, %v464
  %v489 = vadd.f32 %v435, %v465
  %v490 = vadd.f32 %v436, %v466
  %v491 = vadd.f32 %v437, %v467
  %v492 = vadd.f32 %v438, %v468
  %v493 = vadd.f32 %v439, %v471
  %v494 = vadd.f32 %v440, %v472
  %v495 = vadd.f32 %v441, %v473
  %v506 = vrot.slane %v486, 4
  %v507 = vrot.slane %v488, 4
  %v508 = vrot.slane %v490, 4
  %v509 = vrot.slane %v492, 4
  %v510 = vrot.slane %v494, 4
  %vm511 = vcmask 1043456
  %v512 = vsel %vm511, %v485, %v506
  %v513 = vsel %vm511, %v487, %v507
  %v514 = vsel %vm511, %v489, %v508
  %v515 = vsel %vm511, %v491, %v509
  %v516 = vsel %vm511, %v493, %v510
  %522 = vst [vmem:[%s4] sm:$0xff] %v512
  %523 = vst [vmem:[%s4 + $0x8] sm:$0xff] %v513
  %524 = vst [vmem:[%s4 + $0x10] sm:$0xff] %v514
  %525 = vst [vmem:[%s4 + $0x18] sm:$0xff] %v515
  %526 = vst [vmem:[%s4 + $0x20] sm:$0xff] %v516
  %vm527 = vcmask 584704
  %528 = vst.msk [vmem:[%s4 + $0x28] sm:$0xf] %vm527, %v495
  // Predicated region
  $region18: #{unet_forward.22} parent=0 // pred_check
    _
  $region19: #{unet_forward.22} parent=0 // pred_check_branch
    %530 = sbr.rel (0) target = $region21
  $region20: #{unet_forward.22} parent=0 // pred_region
    _
  $region21: #{unet_forward.22} parent=0 // pred_fallthru
    _
  // Predicated region
  $region22: #{unet_forward.22} parent=0 // pred_check
    _
  $region23: #{unet_forward.22} parent=0 // pred_check_branch
    %532 = sbr.rel (0) target = $region25
  $region24: #{unet_forward.22} parent=0 // pred_region
    _
  $region25: #{unet_forward.22} parent=0 // pred_fallthru
    _

// kernel: unet_forward.23
$region0: #{unet_forward.23}
  #allocation0 [shape = 'u32[]', space=smem, size = 0x4, offset = 0x4, fixed_abs, tag = 'smem constant byte address 0x4 - core index']
  #allocation1 [shape = 'u32[72,128]{1,0:T(1,128)}', space=vmem, size = 0x9000, scoped, tag = 'internal scratch']
  %s0 = inlined_call_operand.vmem [shape: bf16[4,36], index: 0, kind: input, shape index: {}]
  %s1 = inlined_call_operand.vmem [shape: bf16[36,288], index: 1, kind: input, shape index: {}]
  %s2 = inlined_call_operand.vmem [shape: f32[4,1], index: 2, kind: input, shape index: {}]
  %s3 = inlined_call_operand.vmem [shape: f32[4,288], index: 3, kind: output, shape index: {}]
  %s4 = sld [smem:[#allocation0]]
  $region22: #{unet_forward.23} parent=0
    _
  %s6 = ssub.s32 1, %s4
  %s7 = scalar_select 0, %s6, %s4
  // Predicated region
  $region2: #{unet_forward.23} parent=0 // pred_check
    _
  $region3: #{unet_forward.23} parent=0 // pred_check_branch
    %9 = sbr.rel (0) target = $region5
  $region4: #{unet_forward.23} parent=0 // pred_region
    _
  $region5: #{unet_forward.23} parent=0 // pred_fallthru
    _
  // Predicated region
  $region6: #{unet_forward.23} parent=0 // pred_check
    _
  $region7: #{unet_forward.23} parent=0 // pred_check_branch
    %11 = sbr.rel (0) target = $region9
  $region8: #{unet_forward.23} parent=0 // pred_region
    _
  $region9: #{unet_forward.23} parent=0 // pred_fallthru
    _
  // Predicated region
  $region10: #{unet_forward.23} parent=0 // pred_check
    _
  $region11: #{unet_forward.23} parent=0 // pred_check_branch
    %13 = sbr.rel (0) target = $region13
  $region12: #{unet_forward.23} parent=0 // pred_region
    _
  $region13: #{unet_forward.23} parent=0 // pred_fallthru
    _
  %v15 = vld [vmem:[%s0] sm:$0x3]
  %v16 = vld [vmem:[%s1] sm:$0xff]
  %v17 = vld [vmem:[%s1 + $0x8] sm:$0xf]
  %v18 = vld [vmem:[%s1 + $0xc] sm:$0xff]
  %v19 = vld [vmem:[%s1 + $0x14] sm:$0xf]
  %v20 = vld [vmem:[%s1 + $0x18] sm:$0xff]
  %v21 = vld [vmem:[%s1 + $0x20] sm:$0xf]
  %v22 = vld [vmem:[%s1 + $0x24] sm:$0xff]
  %v23 = vld [vmem:[%s1 + $0x2c] sm:$0xf]
  %v24 = vld [vmem:[%s1 + $0x30] sm:$0x33]
  %v25 = vld [vmem:[%s1 + $0x38] sm:$0x3]
  %v26 = vld [vmem:[%s2] sm:$0xf]
  %28 = vset.pattern.permute.xlu0 0
  %29 = vperm.xlu0 %28, %v26
  %v30 = vpop.permute.xlu0 %29
  %v42 = vunpack.c.l.b16 %v16
  %v43 = vunpack.c.h.b16 %v16
  %v44 = vunpack.c.l.b16 %v17
  %v45 = vunpack.c.l.b16 %v18
  %v46 = vunpack.c.h.b16 %v18
  %v47 = vunpack.c.l.b16 %v19
  %v48 = vunpack.c.l.b16 %v20
  %v49 = vunpack.c.h.b16 %v20
  %v50 = vunpack.c.l.b16 %v21
  %v51 = vunpack.c.l.b16 %v22
  %v52 = vunpack.c.h.b16 %v22
  %v53 = vunpack.c.l.b16 %v23
  %v54 = vunpack.c.l.b16 %v24
  %v55 = vunpack.c.h.b16 %v24
  %v56 = vunpack.c.l.b16 %v25
  %v57 = vpack.c.b16 %v45, %v42
  %v58 = vpack.c.b16 %v46, %v43
  %v59 = vpack.c.b16 %v47, %v44
  %v60 = vpack.c.b16 %v51, %v48
  %v61 = vpack.c.b16 %v52, %v49
  %v62 = vpack.c.b16 %v53, %v50
  %v63 = vpack.c.b16 %v54, %v54
  %v64 = vpack.c.b16 %v55, %v55
  %v65 = vpack.c.b16 %v56, %v56
  %vm72 = vcmask 293888
  %v74 = vsel %vm72, %v15, 0
  %vm76 = vcmask 1041408
  %v78 = vsel %vm76, %v63, 0
  %v81 = vsel %vm76, %v64, 0
  %v84 = vsel %vm76, %v65, 0
  %86 = vmatpush.bf16.msra.mxu0 0
  %87 = vmatpush.bf16.msra.mxu0 0
  %88 = vmatpush.bf16.msra.mxu0 0
  %89 = vmatpush.bf16.msra.mxu0 0
  %90 = vmatpush.bf16.msra.mxu0 0
  %91 = vmatpush.bf16.msra.mxu0 %v78
  %92 = vmatpush.bf16.msra.mxu0 %v60
  %93 = vmatpush.bf16.msra.mxu0 %v57
  %94 = vmatmul.bf16.gmra.mxu0 %v74
  %v95 = vpop.f32.mrf.mxu0
  %v96 = vadd.f32 %v30, %v95
  %v97 = vpop.f32.mrf.mxu0
  %98 = vdwg.mxu0
  %99 = vmatpush.bf16.msra.mxu0 0
  %100 = vmatpush.bf16.msra.mxu0 0
  %101 = vmatpush.bf16.msra.mxu0 0
  %102 = vmatpush.bf16.msra.mxu0 0
  %103 = vmatpush.bf16.msra.mxu0 0
  %104 = vmatpush.bf16.msra.mxu0 %v81
  %105 = vmatpush.bf16.msra.mxu0 %v61
  %106 = vmatpush.bf16.msra.mxu0 %v58
  %107 = vmatmul.bf16.gmra.mxu0 %v74
  %v108 = vpop.f32.mrf.mxu0
  %v109 = vadd.f32 %v30, %v108
  %v110 = vpop.f32.mrf.mxu0
  %111 = vdwg.mxu0
  %112 = vmatpush.bf16.msra.mxu0 0
  %113 = vmatpush.bf16.msra.mxu0 0
  %114 = vmatpush.bf16.msra.mxu0 0
  %115 = vmatpush.bf16.msra.mxu0 0
  %116 = vmatpush.bf16.msra.mxu0 0
  %117 = vmatpush.bf16.msra.mxu0 %v84
  %118 = vmatpush.bf16.msra.mxu0 %v62
  %119 = vmatpush.bf16.msra.mxu0 %v59
  %120 = vmatmul.bf16.gmra.mxu0 %v74
  %v121 = vpop.f32.mrf.mxu0
  %v122 = vadd.f32 %v30, %v121
  %v123 = vpop.f32.mrf.mxu0
  %124 = vdwg.mxu0
  %v127 = vrot.slane %v109, 4
  %vm128 = vcmask 1043456
  %v129 = vsel %vm128, %v96, %v127
  %131 = vst [vmem:[%s3] sm:$0xff] %v129
  %vm132 = vcmask 257024
  %133 = vst.msk [vmem:[%s3 + $0x8] sm:$0xf] %vm132, %v122
  // Predicated region
  $region14: #{unet_forward.23} parent=0 // pred_check
    _
  $region15: #{unet_forward.23} parent=0 // pred_check_branch
    %135 = sbr.rel (0) target = $region17
  $region16: #{unet_forward.23} parent=0 // pred_region
    _
  $region17: #{unet_forward.23} parent=0 // pred_fallthru
    _
  // Predicated region
  $region18: #{unet_forward.23} parent=0 // pred_check
    _
  $region19: #{unet_forward.23} parent=0 // pred_check_branch
    %137 = sbr.rel (0) target = $region21
  $region20: #{unet_forward.23} parent=0 // pred_region
    _
  $region21: #{unet_forward.23} parent=0 // pred_fallthru
    _

// kernel: unet_forward.24
$region0: #{unet_forward.24}
  #allocation0 [shape = 'u32[]', space=smem, size = 0x4, offset = 0x4, fixed_abs, tag = 'smem constant byte address 0x4 - core index']
  #allocation1 [shape = 'u32[72,128]{1,0:T(1,128)}', space=vmem, size = 0x9000, scoped, tag = 'internal scratch']
  %s0 = inlined_call_operand.vmem [shape: bf16[8,100], index: 0, kind: input, shape index: {}]
  %s1 = inlined_call_operand.vmem [shape: bf16[100,200], index: 1, kind: input, shape index: {}]
  %s2 = inlined_call_operand.vmem [shape: f32[8,1], index: 2, kind: input, shape index: {}]
  %s3 = inlined_call_operand.vmem [shape: f32[8,200], index: 3, kind: output, shape index: {}]
  %s4 = sld [smem:[#allocation0]]
  $region22: #{unet_forward.24} parent=0
    _
  %s6 = ssub.s32 1, %s4
  %s7 = scalar_select 0, %s6, %s4
  // Predicated region
  $region2: #{unet_forward.24} parent=0 // pred_check
    _
  $region3: #{unet_forward.24} parent=0 // pred_check_branch
    %9 = sbr.rel (0) target = $region5
  $region4: #{unet_forward.24} parent=0 // pred_region
    _
  $region5: #{unet_forward.24} parent=0 // pred_fallthru
    _
  // Predicated region
  $region6: #{unet_forward.24} parent=0 // pred_check
    _
  $region7: #{unet_forward.24} parent=0 // pred_check_branch
    %11 = sbr.rel (0) target = $region9
  $region8: #{unet_forward.24} parent=0 // pred_region
    _
  $region9: #{unet_forward.24} parent=0 // pred_fallthru
    _
  // Predicated region
  $region10: #{unet_forward.24} parent=0 // pred_check
    _
  $region11: #{unet_forward.24} parent=0 // pred_check_branch
    %13 = sbr.rel (0) target = $region13
  $region12: #{unet_forward.24} parent=0 // pred_region
    _
  $region13: #{unet_forward.24} parent=0 // pred_fallthru
    _
  %v15 = vld [vmem:[%s0] sm:$0xf]
  %v16 = vld [vmem:[%s1] sm:$0xff]
  %v17 = vld [vmem:[%s1 + $0x8] sm:$0xff]
  %v18 = vld [vmem:[%s1 + $0x10] sm:$0xff]
  %v19 = vld [vmem:[%s1 + $0x18] sm:$0xff]
  %v20 = vld [vmem:[%s1 + $0x20] sm:$0xff]
  %v21 = vld [vmem:[%s1 + $0x28] sm:$0xff]
  %v22 = vld [vmem:[%s1 + $0x30] sm:$0xff]
  %v23 = vld [vmem:[%s1 + $0x38] sm:$0xff]
  %v24 = vld [vmem:[%s1 + $0x40] sm:$0xff]
  %v25 = vld [vmem:[%s1 + $0x48] sm:$0xff]
  %v26 = vld [vmem:[%s1 + $0x50] sm:$0xff]
  %v27 = vld [vmem:[%s1 + $0x58] sm:$0xff]
  %v28 = vld [vmem:[%s1 + $0x60] sm:$0x33]
  %v29 = vld [vmem:[%s2] sm:$0xff]
  %31 = vset.pattern.permute.xlu0 0
  %32 = vperm.xlu0 %31, %v29
  %v33 = vpop.permute.xlu0 %32
  %v48 = vunpack.c.l.b16 %v16
  %v49 = vunpack.c.h.b16 %v16
  %v50 = vunpack.c.l.b16 %v17
  %v51 = vunpack.c.h.b16 %v17
  %v52 = vunpack.c.l.b16 %v18
  %v53 = vunpack.c.h.b16 %v18
  %v54 = vunpack.c.l.b16 %v19
  %v55 = vunpack.c.h.b16 %v19
  %v56 = vunpack.c.l.b16 %v20
  %v57 = vunpack.c.h.b16 %v20
  %v58 = vunpack.c.l.b16 %v21
  %v59 = vunpack.c.h.b16 %v21
  %v60 = vunpack.c.l.b16 %v22
  %v61 = vunpack.c.h.b16 %v22
  %v62 = vunpack.c.l.b16 %v23
  %v63 = vunpack.c.h.b16 %v23
  %v64 = vunpack.c.l.b16 %v24
  %v65 = vunpack.c.h.b16 %v24
  %v66 = vunpack.c.l.b16 %v25
  %v67 = vunpack.c.h.b16 %v25
  %v68 = vunpack.c.l.b16 %v26
  %v69 = vunpack.c.h.b16 %v26
  %v70 = vunpack.c.l.b16 %v27
  %v71 = vunpack.c.h.b16 %v27
  %v72 = vunpack.c.l.b16 %v28
  %v73 = vunpack.c.h.b16 %v28
  %v74 = vpack.c.b16 %v50, %v48
  %v75 = vpack.c.b16 %v51, %v49
  %v76 = vpack.c.b16 %v54, %v52
  %v77 = vpack.c.b16 %v55, %v53
  %v78 = vpack.c.b16 %v58, %v56
  %v79 = vpack.c.b16 %v59, %v57
  %v80 = vpack.c.b16 %v62, %v60
  %v81 = vpack.c.b16 %v63, %v61
  %v82 = vpack.c.b16 %v66, %v64
  %v83 = vpack.c.b16 %v67, %v65
  %v84 = vpack.c.b16 %v70, %v68
  %v85 = vpack.c.b16 %v71, %v69
  %v86 = vpack.c.b16 %v72, %v72
  %v87 = vpack.c.b16 %v73, %v73
  %vm100 = vcmask 818176
  %v102 = vsel %vm100, %v15, 0
  %vm104 = vcmask 1041408
  %v106 = vsel %vm104, %v86, 0
  %v109 = vsel %vm104, %v87, 0
  %111 = vmatpush.bf16.msra.mxu0 0
  %112 = vmatpush.bf16.msra.mxu0 %v106
  %113 = vmatpush.bf16.msra.mxu0 %v84
  %114 = vmatpush.bf16.msra.mxu0 %v82
  %115 = vmatpush.bf16.msra.mxu0 %v80
  %116 = vmatpush.bf16.msra.mxu0 %v78
  %117 = vmatpush.bf16.msra.mxu0 %v76
  %118 = vmatpush.bf16.msra.mxu0 %v74
  %119 = vmatmul.bf16.gmra.mxu0 %v102
  %v120 = vpop.f32.mrf.mxu0
  %v121 = vadd.f32 %v33, %v120
  %v122 = vpop.f32.mrf.mxu0
  %123 = vdwg.mxu0
  %124 = vmatpush.bf16.msra.mxu0 0
  %125 = vmatpush.bf16.msra.mxu0 %v109
  %126 = vmatpush.bf16.msra.mxu0 %v85
  %127 = vmatpush.bf16.msra.mxu0 %v83
  %128 = vmatpush.bf16.msra.mxu0 %v81
  %129 = vmatpush.bf16.msra.mxu0 %v79
  %130 = vmatpush.bf16.msra.mxu0 %v77
  %131 = vmatpush.bf16.msra.mxu0 %v75
  %132 = vmatmul.bf16.gmra.mxu0 %v102
  %v133 = vpop.f32.mrf.mxu0
  %v134 = vadd.f32 %v33, %v133
  %v135 = vpop.f32.mrf.mxu0
  %136 = vdwg.mxu0
  %137 = vst [vmem:[%s3] sm:$0xff] %v121
  %vm138 = vcmask 588800
  %139 = vst.msk [vmem:[%s3 + $0x8] sm:$0xff] %vm138, %v134
  // Predicated region
  $region14: #{unet_forward.24} parent=0 // pred_check
    _
  $region15: #{unet_forward.24} parent=0 // pred_check_branch
    %141 = sbr.rel (0) target = $region17
  $region16: #{unet_forward.24} parent=0 // pred_region
    _
  $region17: #{unet_forward.24} parent=0 // pred_fallthru
    _
  // Predicated region
  $region18: #{unet_forward.24} parent=0 // pred_check
    _
  $region19: #{unet_forward.24} parent=0 // pred_check_branch
    %143 = sbr.rel (0) target = $region21
  $region20: #{unet_forward.24} parent=0 // pred_region
    _
  $region21: #{unet_forward.24} parent=0 // pred_fallthru
    _

// kernel: unet_forward.25
$region0: #{unet_forward.25}
  #allocation0 [shape = 'u32[]', space=smem, size = 0x4, offset = 0x4, fixed_abs, tag = 'smem constant byte address 0x4 - core index']
  #allocation1 [shape = 'u32[72,128]{1,0:T(1,128)}', space=vmem, size = 0x9000, scoped, tag = 'internal scratch']
  %s0 = inlined_call_operand.vmem [shape: f32[2,800], index: 0, kind: input, shape index: {}]
  %s1 = inlined_call_operand.vmem [shape: f32[1,800], index: 1, kind: input, shape index: {}]
  %s2 = inlined_call_operand.vmem [shape: f32[1,800], index: 2, kind: input, shape index: {}]
  %s3 = inlined_call_operand.vmem [shape: f32[2,800], index: 3, kind: output, shape index: {}]
  %s4 = sld [smem:[#allocation0]]
  $region22: #{unet_forward.25} parent=0
    _
  %s6 = ssub.s32 1, %s4
  %s7 = scalar_select 0, %s6, %s4
  // Predicated region
  $region2: #{unet_forward.25} parent=0 // pred_check
    _
  $region3: #{unet_forward.25} parent=0 // pred_check_branch
    %9 = sbr.rel (0) target = $region5
  $region4: #{unet_forward.25} parent=0 // pred_region
    _
  $region5: #{unet_forward.25} parent=0 // pred_fallthru
    _
  // Predicated region
  $region6: #{unet_forward.25} parent=0 // pred_check
    _
  $region7: #{unet_forward.25} parent=0 // pred_check_branch
    %11 = sbr.rel (0) target = $region9
  $region8: #{unet_forward.25} parent=0 // pred_region
    _
  $region9: #{unet_forward.25} parent=0 // pred_fallthru
    _
  // Predicated region
  $region10: #{unet_forward.25} parent=0 // pred_check
    _
  $region11: #{unet_forward.25} parent=0 // pred_check_branch
    %13 = sbr.rel (0) target = $region13
  $region12: #{unet_forward.25} parent=0 // pred_region
    _
  $region13: #{unet_forward.25} parent=0 // pred_fallthru
    _
  %v14 = vld [vmem:[%s0] sm:$0xff]
  %v15 = vld [vmem:[%s0 + $0x8] sm:$0x3f]
  %18 = vst [vmem:[#allocation1] ss:$4 sm:$0xff] %v14
  %s19 = scalar_lea.vmem [#allocation1], 32
  %20 = vst [vmem:[%s19] ss:$4 sm:$0xff] %v15
  %v21 = vld.sshfl [vmem:[#allocation1] sm:$0xff pattern:$0x73625140]
  %v22 = vld.sshfl [vmem:[#allocation1 + $0x8] sm:$0xff pattern:$0x73625140]
  %v23 = vld.sshfl [vmem:[#allocation1 + $0x10] sm:$0xff pattern:$0x73625140]
  %v24 = vld.sshfl [vmem:[#allocation1 + $0x18] sm:$0xff pattern:$0x73625140]
  %v25 = vld.sshfl [vmem:[#allocation1 + $0x20] sm:$0xff pattern:$0x73625140]
  %v26 = vld.sshfl [vmem:[#allocation1 + $0x28] sm:$0xff pattern:$0x73625140]
  %v27 = vld.sshfl [vmem:[#allocation1 + $0x30] sm:$0xff pattern:$0x73625140]
  %vm35 = vcmask 1041408
  %v36 = vsel %vm35, %v21, 0.0
  %v37 = vsel %vm35, %v22, 0.0
  %v38 = vadd.f32 %v36, %v37
  %v39 = vsel %vm35, %v23, 0.0
  %v40 = vadd.f32 %v38, %v39
  %v41 = vsel %vm35, %v24, 0.0
  %v42 = vadd.f32 %v40, %v41
  %v43 = vsel %vm35, %v25, 0.0
  %v44 = vadd.f32 %v42, %v43
  %v45 = vsel %vm35, %v26, 0.0
  %v46 = vadd.f32 %v44, %v45
  %vm47 = vcmask 254976
  %v48 = vsel %vm47, %v27, 0.0
  %v49 = vadd.f32 %v46, %v48
  %50 = vadd.xlane.f32.xlu0 %v49
  %v51 = vpop.xlane.xlu0 %50
  %v52 = vrcp.pop 800.0
  %v53 = vmul.f32 800.0, %v52
  %v54 = vsub.f32 1.0, %v53
  %v55 = vmul.f32 %v52, %v54
  %v56 = vadd.f32 %v52, %v55
  %vm57 = vweird.f32 %v52
  %v58 = vsel %vm57, %v52, %v56
  %v59 = vmul.f32 %v51, %v58
  %v62 = vunpack.c.l.s4 269488144
  %v63 = vunpack.c.0.s8 %v62
  %v64 = vperm.slane %v59, %v63
  %v66 = vsub.f32 %v14, %v64
  %v67 = vsub.f32 %v15, %v64
  %v68 = vmul.f32 %v66, %v66
  %v69 = vmul.f32 %v67, %v67
  %72 = vst [vmem:[#allocation1] ss:$4 sm:$0xff] %v68
  %s73 = scalar_lea.vmem [#allocation1], 32
  %74 = vst [vmem:[%s73] ss:$4 sm:$0xff] %v69
  %v75 = vld.sshfl [vmem:[#allocation1] sm:$0xff pattern:$0x73625140]
  %v76 = vld.sshfl [vmem:[#allocation1 + $0x8] sm:$0xff pattern:$0x73625140]
  %v77 = vld.sshfl [vmem:[#allocation1 + $0x10] sm:$0xff pattern:$0x73625140]
  %v78 = vld.sshfl [vmem:[#allocation1 + $0x18] sm:$0xff pattern:$0x73625140]
  %v79 = vld.sshfl [vmem:[#allocation1 + $0x20] sm:$0xff pattern:$0x73625140]
  %v80 = vld.sshfl [vmem:[#allocation1 + $0x28] sm:$0xff pattern:$0x73625140]
  %v81 = vld.sshfl [vmem:[#allocation1 + $0x30] sm:$0xff pattern:$0x73625140]
  %v89 = vsel %vm35, %v75, 0.0
  %v90 = vsel %vm35, %v76, 0.0
  %v91 = vadd.f32 %v89, %v90
  %v92 = vsel %vm35, %v77, 0.0
  %v93 = vadd.f32 %v91, %v92
  %v94 = vsel %vm35, %v78, 0.0
  %v95 = vadd.f32 %v93, %v94
  %v96 = vsel %vm35, %v79, 0.0
  %v97 = vadd.f32 %v95, %v96
  %v98 = vsel %vm35, %v80, 0.0
  %v99 = vadd.f32 %v97, %v98
  %v100 = vsel %vm47, %v81, 0.0
  %v101 = vadd.f32 %v99, %v100
  %102 = vadd.xlane.f32.xlu0 %v101
  %v103 = vpop.xlane.xlu0 %102
  %v104 = vmul.f32 %v103, %v58
  %v105 = vadd.f32 %v104, 1e-05
  %v106 = vrsqrt.pop %v105
  %v107 = vmul.f32 %v106, %v105
  %v108 = vmul.f32 %v107, %v106
  %v109 = vmul.f32 0.5, %v108
  %v110 = vsub.f32 1.5, %v109
  %v111 = vmul.f32 %v106, %v110
  %vm112 = vweird.f32 %v105
  %vm113 = vweird.f32 %v106
  %vm114 = vmor %vm112, %vm113
  %v115 = vsel %vm114, %v106, %v111
  %v118 = vunpack.c.l.s4 269488144
  %v119 = vunpack.c.0.s8 %v118
  %v120 = vperm.slane %v115, %v119
  %v122 = vmul.f32 %v66, %v120
  %v123 = vmul.f32 %v67, %v120
  %v124 = vld [vmem:[%s1] sm:$0x7f]
  %v126 = vperm.slane %v124, 0
  %v127 = vperm.slane %v124, 1
  %v128 = vperm.slane %v124, 2
  %v129 = vperm.slane %v124, 3
  %v130 = vperm.slane %v124, 4
  %v131 = vperm.slane %v124, 5
  %v132 = vperm.slane %v124, 6
  %v133 = vrot.slane %v127, 6
  %v134 = vrot.slane %v128, 4
  %v135 = vrot.slane %v129, 2
  %v136 = vrot.slane %v131, 6
  %v137 = vrot.slane %v132, 4
  %v138 = vsel %vm35, %v126, %v133
  %vm139 = vcmask 1045508
  %v140 = vsel %vm139, %v134, %v135
  %vm141 = vcmask 1043456
  %v142 = vsel %vm141, %v138, %v140
  %v143 = vsel %vm35, %v130, %v136
  %v144 = vsel %vm141, %v143, %v137
  %v147 = vmul.f32 %v122, %v142
  %v148 = vmul.f32 %v123, %v144
  %v149 = vld [vmem:[%s2] sm:$0x7f]
  %v151 = vperm.slane %v149, 0
  %v152 = vperm.slane %v149, 1
  %v153 = vperm.slane %v149, 2
  %v154 = vperm.slane %v149, 3
  %v155 = vperm.slane %v149, 4
  %v156 = vperm.slane %v149, 5
  %v157 = vperm.slane %v149, 6
  %v158 = vrot.slane %v152, 6
  %v159 = vrot.slane %v153, 4
  %v160 = vrot.slane %v154, 2
  %v161 = vrot.slane %v156, 6
  %v162 = vrot.slane %v157, 4
  %v163 = vsel %vm35, %v151, %v158
  %v164 = vsel %vm139, %v159, %v160
  %v165 = vsel %vm141, %v163, %v164
  %v166 = vsel %vm35, %v155, %v161
  %v167 = vsel %vm141, %v166, %v162
  %v170 = vadd.f32 %v147, %v165
  %v171 = vadd.f32 %v148, %v167
  %172 = vst [vmem:[%s3] sm:$0xff] %v170
  %vm173 = vcmask 1043458
  %vm174 = vmor %vm173, %vm35
  %vm175 = vcmask 259076
  %vm176 = vmor %vm175, %vm174
  %177 = vst.msk [vmem:[%s3 + $0x8] sm:$0x3f] %vm176, %v171
  // Predicated region
  $region14: #{unet_forward.25} parent=0 // pred_check
    _
  $region15: #{unet_forward.25} parent=0 // pred_check_branch
    %179 = sbr.rel (0) target = $region17
  $region16: #{unet_forward.25} parent=0 // pred_region
    _
  $region17: #{unet_forward.25} parent=0 // pred_fallthru
    _
  // Predicated region
  $region18: #{unet_forward.25} parent=0 // pred_check
    _
  $region19: #{unet_forward.25} parent=0 // pred_check_branch
    %181 = sbr.rel (0) target = $region21
  $region20: #{unet_forward.25} parent=0 // pred_region
    _
  $region21: #{unet_forward.25} parent=0 // pred_fallthru
    _

// kernel: unet_forward.26
$region0: #{unet_forward.26}
  #allocation0 [shape = 'u32[]', space=smem, size = 0x4, offset = 0x4, fixed_abs, tag = 'smem constant byte address 0x4 - core index']
  #allocation1 [shape = 'u32[72,128]{1,0:T(1,128)}', space=vmem, size = 0x9000, scoped, tag = 'internal scratch']
  %s0 = inlined_call_operand.vmem [shape: bf16[8,72], index: 0, kind: input, shape index: {}]
  %s1 = inlined_call_operand.vmem [shape: bf16[72,200], index: 1, kind: input, shape index: {}]
  %s2 = inlined_call_operand.vmem [shape: f32[8,1], index: 2, kind: input, shape index: {}]
  %s3 = inlined_call_operand.vmem [shape: f32[1,200], index: 3, kind: input, shape index: {}]
  %s4 = inlined_call_operand.vmem [shape: f32[8,200], index: 4, kind: output, shape index: {}]
  %s5 = sld [smem:[#allocation0]]
  $region26: #{unet_forward.26} parent=0
    _
  %s7 = ssub.s32 1, %s5
  %s8 = scalar_select 0, %s7, %s5
  // Predicated region
  $region2: #{unet_forward.26} parent=0 // pred_check
    _
  $region3: #{unet_forward.26} parent=0 // pred_check_branch
    %10 = sbr.rel (0) target = $region5
  $region4: #{unet_forward.26} parent=0 // pred_region
    _
  $region5: #{unet_forward.26} parent=0 // pred_fallthru
    _
  // Predicated region
  $region6: #{unet_forward.26} parent=0 // pred_check
    _
  $region7: #{unet_forward.26} parent=0 // pred_check_branch
    %12 = sbr.rel (0) target = $region9
  $region8: #{unet_forward.26} parent=0 // pred_region
    _
  $region9: #{unet_forward.26} parent=0 // pred_fallthru
    _
  // Predicated region
  $region10: #{unet_forward.26} parent=0 // pred_check
    _
  $region11: #{unet_forward.26} parent=0 // pred_check_branch
    %14 = sbr.rel (0) target = $region13
  $region12: #{unet_forward.26} parent=0 // pred_region
    _
  $region13: #{unet_forward.26} parent=0 // pred_fallthru
    _
  // Predicated region
  $region14: #{unet_forward.26} parent=0 // pred_check
    _
  $region15: #{unet_forward.26} parent=0 // pred_check_branch
    %16 = sbr.rel (0) target = $region17
  $region16: #{unet_forward.26} parent=0 // pred_region
    _
  $region17: #{unet_forward.26} parent=0 // pred_fallthru
    _
  %v18 = vld [vmem:[%s0] sm:$0xf]
  %v19 = vld [vmem:[%s1] sm:$0xff]
  %v20 = vld [vmem:[%s1 + $0x8] sm:$0xff]
  %v21 = vld [vmem:[%s1 + $0x10] sm:$0xff]
  %v22 = vld [vmem:[%s1 + $0x18] sm:$0xff]
  %v23 = vld [vmem:[%s1 + $0x20] sm:$0xff]
  %v24 = vld [vmem:[%s1 + $0x28] sm:$0xff]
  %v25 = vld [vmem:[%s1 + $0x30] sm:$0xff]
  %v26 = vld [vmem:[%s1 + $0x38] sm:$0xff]
  %v27 = vld [vmem:[%s1 + $0x40] sm:$0xff]
  %v28 = vld [vmem:[%s2] sm:$0xff]
  %30 = vset.pattern.permute.xlu0 0
  %31 = vperm.xlu0 %30, %v28
  %v32 = vpop.permute.xlu0 %31
  %v43 = vunpack.c.l.b16 %v19
  %v44 = vunpack.c.h.b16 %v19
  %v45 = vunpack.c.l.b16 %v20
  %v46 = vunpack.c.h.b16 %v20
  %v47 = vunpack.c.l.b16 %v21
  %v48 = vunpack.c.h.b16 %v21
  %v49 = vunpack.c.l.b16 %v22
  %v50 = vunpack.c.h.b16 %v22
  %v51 = vunpack.c.l.b16 %v23
  %v52 = vunpack.c.h.b16 %v23
  %v53 = vunpack.c.l.b16 %v24
  %v54 = vunpack.c.h.b16 %v24
  %v55 = vunpack.c.l.b16 %v25
  %v56 = vunpack.c.h.b16 %v25
  %v57 = vunpack.c.l.b16 %v26
  %v58 = vunpack.c.h.b16 %v26
  %v59 = vunpack.c.l.b16 %v27
  %v60 = vunpack.c.h.b16 %v27
  %v61 = vpack.c.b16 %v45, %v43
  %v62 = vpack.c.b16 %v46, %v44
  %v63 = vpack.c.b16 %v49, %v47
  %v64 = vpack.c.b16 %v50, %v48
  %v65 = vpack.c.b16 %v53, %v51
  %v66 = vpack.c.b16 %v54, %v52
  %v67 = vpack.c.b16 %v57, %v55
  %v68 = vpack.c.b16 %v58, %v56
  %v69 = vpack.c.b16 %v59, %v59
  %v70 = vpack.c.b16 %v60, %v60
  %vm79 = vcmask 588800
  %v81 = vsel %vm79, %v18, 0
  %vm83 = vcmask 1043456
  %v85 = vsel %vm83, %v69, 0
  %v88 = vsel %vm83, %v70, 0
  %90 = vmatpush.bf16.msra.mxu0 0
  %91 = vmatpush.bf16.msra.mxu0 0
  %92 = vmatpush.bf16.msra.mxu0 0
  %93 = vmatpush.bf16.msra.mxu0 %v85
  %94 = vmatpush.bf16.msra.mxu0 %v67
  %95 = vmatpush.bf16.msra.mxu0 %v65
  %96 = vmatpush.bf16.msra.mxu0 %v63
  %97 = vmatpush.bf16.msra.mxu0 %v61
  %98 = vmatmul.bf16.gmra.mxu0 %v81
  %v99 = vpop.f32.mrf.mxu0
  %v100 = vadd.f32 %v32, %v99
  %v101 = vpop.f32.mrf.mxu0
  %102 = vdwg.mxu0
  %103 = vmatpush.bf16.msra.mxu0 0
  %104 = vmatpush.bf16.msra.mxu0 0
  %105 = vmatpush.bf16.msra.mxu0 0
  %106 = vmatpush.bf16.msra.mxu0 %v88
  %107 = vmatpush.bf16.msra.mxu0 %v68
  %108 = vmatpush.bf16.msra.mxu0 %v66
  %109 = vmatpush.bf16.msra.mxu0 %v64
  %110 = vmatpush.bf16.msra.mxu0 %v62
  %111 = vmatmul.bf16.gmra.mxu0 %v81
  %v112 = vpop.f32.mrf.mxu0
  %v113 = vadd.f32 %v32, %v112
  %v114 = vpop.f32.mrf.mxu0
  %115 = vdwg.mxu0
  %v116 = vsub.f32 0.0, %v100
  %v117 = vsub.f32 0.0, %v113
  %v118 = vmul.f32 %v116, 1.442695
  %v119 = vpow.pop %v118
  %v120 = vmul.f32 %v117, 1.442695
  %v121 = vpow.pop %v120
  %v122 = vadd.f32 %v119, 1.0
  %v123 = vadd.f32 %v121, 1.0
  %v124 = vrcp.pop %v122
  %v125 = vrcp.pop %v123
  %v126 = vmul.f32 %v100, %v124
  %v127 = vmul.f32 %v113, %v125
  %v128 = vld [vmem:[%s3] sm:$0x3]
  %v130 = vperm.slane %v128, 0
  %v131 = vperm.slane %v128, 1
  %v134 = vadd.f32 %v126, %v130
  %v135 = vadd.f32 %v127, %v131
  %136 = vst [vmem:[%s4] sm:$0xff] %v134
  %137 = vst.msk [vmem:[%s4 + $0x8] sm:$0xff] %vm79, %v135
  // Predicated region
  $region18: #{unet_forward.26} parent=0 // pred_check
    _
  $region19: #{unet_forward.26} parent=0 // pred_check_branch
    %139 = sbr.rel (0) target = $region21
  $region20: #{unet_forward.26} parent=0 // pred_region
    _
  $region21: #{unet_forward.26} parent=0 // pred_fallthru
    _
  // Predicated region
  $region22: #{unet_forward.26} parent=0 // pred_check
    _
  $region23: #{unet_forward.26} parent=0 // pred_check_branch
    %141 = sbr.rel (0) target = $region25
  $region24: #{unet_forward.26} parent=0 // pred_region
    _
  $region25: #{unet_forward.26} parent=0 // pred_fallthru
    _

// kernel: unet_forward.27
$region0: #{unet_forward.27}
  #allocation0 [shape = 'u32[]', space=smem, size = 0x4, offset = 0x4, fixed_abs, tag = 'smem constant byte address 0x4 - core index']
  #allocation1 [shape = 'u32[72,128]{1,0:T(1,128)}', space=vmem, size = 0x9000, scoped, tag = 'internal scratch']
  %s0 = inlined_call_operand.vmem [shape: bf16[8,72], index: 0, kind: input, shape index: {}]
  %s1 = inlined_call_operand.vmem [shape: bf16[72,200], index: 1, kind: input, shape index: {}]
  %s2 = inlined_call_operand.vmem [shape: f32[8,1], index: 2, kind: input, shape index: {}]
  %s3 = inlined_call_operand.vmem [shape: f32[8,200], index: 3, kind: input, shape index: {}]
  %s4 = inlined_call_operand.vmem [shape: f32[8,200], index: 4, kind: output, shape index: {}]
  %s5 = sld [smem:[#allocation0]]
  $region26: #{unet_forward.27} parent=0
    _
  %s7 = ssub.s32 1, %s5
  %s8 = scalar_select 0, %s7, %s5
  // Predicated region
  $region2: #{unet_forward.27} parent=0 // pred_check
    _
  $region3: #{unet_forward.27} parent=0 // pred_check_branch
    %10 = sbr.rel (0) target = $region5
  $region4: #{unet_forward.27} parent=0 // pred_region
    _
  $region5: #{unet_forward.27} parent=0 // pred_fallthru
    _
  // Predicated region
  $region6: #{unet_forward.27} parent=0 // pred_check
    _
  $region7: #{unet_forward.27} parent=0 // pred_check_branch
    %12 = sbr.rel (0) target = $region9
  $region8: #{unet_forward.27} parent=0 // pred_region
    _
  $region9: #{unet_forward.27} parent=0 // pred_fallthru
    _
  // Predicated region
  $region10: #{unet_forward.27} parent=0 // pred_check
    _
  $region11: #{unet_forward.27} parent=0 // pred_check_branch
    %14 = sbr.rel (0) target = $region13
  $region12: #{unet_forward.27} parent=0 // pred_region
    _
  $region13: #{unet_forward.27} parent=0 // pred_fallthru
    _
  // Predicated region
  $region14: #{unet_forward.27} parent=0 // pred_check
    _
  $region15: #{unet_forward.27} parent=0 // pred_check_branch
    %16 = sbr.rel (0) target = $region17
  $region16: #{unet_forward.27} parent=0 // pred_region
    _
  $region17: #{unet_forward.27} parent=0 // pred_fallthru
    _
  %v18 = vld [vmem:[%s0] sm:$0xf]
  %v19 = vld [vmem:[%s1] sm:$0xff]
  %v20 = vld [vmem:[%s1 + $0x8] sm:$0xff]
  %v21 = vld [vmem:[%s1 + $0x10] sm:$0xff]
  %v22 = vld [vmem:[%s1 + $0x18] sm:$0xff]
  %v23 = vld [vmem:[%s1 + $0x20] sm:$0xff]
  %v24 = vld [vmem:[%s1 + $0x28] sm:$0xff]
  %v25 = vld [vmem:[%s1 + $0x30] sm:$0xff]
  %v26 = vld [vmem:[%s1 + $0x38] sm:$0xff]
  %v27 = vld [vmem:[%s1 + $0x40] sm:$0xff]
  %v28 = vld [vmem:[%s2] sm:$0xff]
  %30 = vset.pattern.permute.xlu0 0
  %31 = vperm.xlu0 %30, %v28
  %v32 = vpop.permute.xlu0 %31
  %v43 = vunpack.c.l.b16 %v19
  %v44 = vunpack.c.h.b16 %v19
  %v45 = vunpack.c.l.b16 %v20
  %v46 = vunpack.c.h.b16 %v20
  %v47 = vunpack.c.l.b16 %v21
  %v48 = vunpack.c.h.b16 %v21
  %v49 = vunpack.c.l.b16 %v22
  %v50 = vunpack.c.h.b16 %v22
  %v51 = vunpack.c.l.b16 %v23
  %v52 = vunpack.c.h.b16 %v23
  %v53 = vunpack.c.l.b16 %v24
  %v54 = vunpack.c.h.b16 %v24
  %v55 = vunpack.c.l.b16 %v25
  %v56 = vunpack.c.h.b16 %v25
  %v57 = vunpack.c.l.b16 %v26
  %v58 = vunpack.c.h.b16 %v26
  %v59 = vunpack.c.l.b16 %v27
  %v60 = vunpack.c.h.b16 %v27
  %v61 = vpack.c.b16 %v45, %v43
  %v62 = vpack.c.b16 %v46, %v44
  %v63 = vpack.c.b16 %v49, %v47
  %v64 = vpack.c.b16 %v50, %v48
  %v65 = vpack.c.b16 %v53, %v51
  %v66 = vpack.c.b16 %v54, %v52
  %v67 = vpack.c.b16 %v57, %v55
  %v68 = vpack.c.b16 %v58, %v56
  %v69 = vpack.c.b16 %v59, %v59
  %v70 = vpack.c.b16 %v60, %v60
  %vm79 = vcmask 588800
  %v81 = vsel %vm79, %v18, 0
  %vm83 = vcmask 1043456
  %v85 = vsel %vm83, %v69, 0
  %v88 = vsel %vm83, %v70, 0
  %90 = vmatpush.bf16.msra.mxu0 0
  %91 = vmatpush.bf16.msra.mxu0 0
  %92 = vmatpush.bf16.msra.mxu0 0
  %93 = vmatpush.bf16.msra.mxu0 %v85
  %94 = vmatpush.bf16.msra.mxu0 %v67
  %95 = vmatpush.bf16.msra.mxu0 %v65
  %96 = vmatpush.bf16.msra.mxu0 %v63
  %97 = vmatpush.bf16.msra.mxu0 %v61
  %98 = vmatmul.bf16.gmra.mxu0 %v81
  %v99 = vpop.f32.mrf.mxu0
  %v100 = vadd.f32 %v32, %v99
  %v101 = vpop.f32.mrf.mxu0
  %102 = vdwg.mxu0
  %103 = vmatpush.bf16.msra.mxu0 0
  %104 = vmatpush.bf16.msra.mxu0 0
  %105 = vmatpush.bf16.msra.mxu0 0
  %106 = vmatpush.bf16.msra.mxu0 %v88
  %107 = vmatpush.bf16.msra.mxu0 %v68
  %108 = vmatpush.bf16.msra.mxu0 %v66
  %109 = vmatpush.bf16.msra.mxu0 %v64
  %110 = vmatpush.bf16.msra.mxu0 %v62
  %111 = vmatmul.bf16.gmra.mxu0 %v81
  %v112 = vpop.f32.mrf.mxu0
  %v113 = vadd.f32 %v32, %v112
  %v114 = vpop.f32.mrf.mxu0
  %115 = vdwg.mxu0
  %v116 = vsub.f32 0.0, %v100
  %v117 = vsub.f32 0.0, %v113
  %v118 = vmul.f32 %v116, 1.442695
  %v119 = vpow.pop %v118
  %v120 = vmul.f32 %v117, 1.442695
  %v121 = vpow.pop %v120
  %v122 = vadd.f32 %v119, 1.0
  %v123 = vadd.f32 %v121, 1.0
  %v124 = vrcp.pop %v122
  %v125 = vrcp.pop %v123
  %v126 = vmul.f32 %v100, %v124
  %v127 = vmul.f32 %v113, %v125
  %v128 = vld [vmem:[%s3] sm:$0xff]
  %v129 = vld [vmem:[%s3 + $0x8] sm:$0xff]
  %v130 = vadd.f32 %v126, %v128
  %v131 = vadd.f32 %v127, %v129
  %132 = vst [vmem:[%s4] sm:$0xff] %v130
  %133 = vst.msk [vmem:[%s4 + $0x8] sm:$0xff] %vm79, %v131
  // Predicated region
  $region18: #{unet_forward.27} parent=0 // pred_check
    _
  $region19: #{unet_forward.27} parent=0 // pred_check_branch
    %135 = sbr.rel (0) target = $region21
  $region20: #{unet_forward.27} parent=0 // pred_region
    _
  $region21: #{unet_forward.27} parent=0 // pred_fallthru
    _
  // Predicated region
  $region22: #{unet_forward.27} parent=0 // pred_check
    _
  $region23: #{unet_forward.27} parent=0 // pred_check_branch
    %137 = sbr.rel (0) target = $region25
  $region24: #{unet_forward.27} parent=0 // pred_region
    _
  $region25: #{unet_forward.27} parent=0 // pred_fallthru
    _

// kernel: unet_forward.28
$region0: #{unet_forward.28}
  #allocation0 [shape = 'u32[]', space=smem, size = 0x4, offset = 0x4, fixed_abs, tag = 'smem constant byte address 0x4 - core index']
  #allocation1 [shape = 'u32[72,128]{1,0:T(1,128)}', space=vmem, size = 0x9000, scoped, tag = 'internal scratch']
  %s0 = inlined_call_operand.vmem [shape: bf16[8,128], index: 0, kind: input, shape index: {}]
  %s1 = inlined_call_operand.vmem [shape: bf16[128,50], index: 1, kind: input, shape index: {}]
  %s2 = inlined_call_operand.vmem [shape: f32[8,1], index: 2, kind: input, shape index: {}]
  %s3 = inlined_call_operand.vmem [shape: f32[8,50], index: 3, kind: output, shape index: {}]
  %s4 = sld [smem:[#allocation0]]
  $region22: #{unet_forward.28} parent=0
    _
  %s6 = ssub.s32 1, %s4
  %s7 = scalar_select 0, %s6, %s4
  // Predicated region
  $region2: #{unet_forward.28} parent=0 // pred_check
    _
  $region3: #{unet_forward.28} parent=0 // pred_check_branch
    %9 = sbr.rel (0) target = $region5
  $region4: #{unet_forward.28} parent=0 // pred_region
    _
  $region5: #{unet_forward.28} parent=0 // pred_fallthru
    _
  // Predicated region
  $region6: #{unet_forward.28} parent=0 // pred_check
    _
  $region7: #{unet_forward.28} parent=0 // pred_check_branch
    %11 = sbr.rel (0) target = $region9
  $region8: #{unet_forward.28} parent=0 // pred_region
    _
  $region9: #{unet_forward.28} parent=0 // pred_fallthru
    _
  // Predicated region
  $region10: #{unet_forward.28} parent=0 // pred_check
    _
  $region11: #{unet_forward.28} parent=0 // pred_check_branch
    %13 = sbr.rel (0) target = $region13
  $region12: #{unet_forward.28} parent=0 // pred_region
    _
  $region13: #{unet_forward.28} parent=0 // pred_fallthru
    _
  %v14 = vld [vmem:[%s0] sm:$0xf]
  %v15 = vld [vmem:[%s1] sm:$0xf]
  %v16 = vld [vmem:[%s1 + $0x4] sm:$0xf]
  %v17 = vld [vmem:[%s1 + $0x8] sm:$0xf]
  %v18 = vld [vmem:[%s1 + $0xc] sm:$0xf]
  %v19 = vld [vmem:[%s1 + $0x10] sm:$0xf]
  %v20 = vld [vmem:[%s1 + $0x14] sm:$0xf]
  %v21 = vld [vmem:[%s1 + $0x18] sm:$0xf]
  %v22 = vld [vmem:[%s1 + $0x1c] sm:$0xf]
  %v23 = vld [vmem:[%s1 + $0x20] sm:$0xf]
  %v24 = vld [vmem:[%s1 + $0x24] sm:$0xf]
  %v25 = vld [vmem:[%s1 + $0x28] sm:$0xf]
  %v26 = vld [vmem:[%s1 + $0x2c] sm:$0xf]
  %v27 = vld [vmem:[%s1 + $0x30] sm:$0xf]
  %v28 = vld [vmem:[%s1 + $0x34] sm:$0xf]
  %v29 = vld [vmem:[%s1 + $0x38] sm:$0xf]
  %v30 = vld [vmem:[%s1 + $0x3c] sm:$0xf]
  %v31 = vld [vmem:[%s2] sm:$0xff]
  %33 = vset.pattern.permute.xlu0 0
  %34 = vperm.xlu0 %33, %v31
  %v35 = vpop.permute.xlu0 %34
  %v53 = vunpack.c.l.b16 %v15
  %v54 = vunpack.c.l.b16 %v16
  %v55 = vunpack.c.l.b16 %v17
  %v56 = vunpack.c.l.b16 %v18
  %v57 = vunpack.c.l.b16 %v19
  %v58 = vunpack.c.l.b16 %v20
  %v59 = vunpack.c.l.b16 %v21
  %v60 = vunpack.c.l.b16 %v22
  %v61 = vunpack.c.l.b16 %v23
  %v62 = vunpack.c.l.b16 %v24
  %v63 = vunpack.c.l.b16 %v25
  %v64 = vunpack.c.l.b16 %v26
  %v65 = vunpack.c.l.b16 %v27
  %v66 = vunpack.c.l.b16 %v28
  %v67 = vunpack.c.l.b16 %v29
  %v68 = vunpack.c.l.b16 %v30
  %v69 = vpack.c.b16 %v54, %v53
  %v70 = vpack.c.b16 %v56, %v55
  %v71 = vpack.c.b16 %v58, %v57
  %v72 = vpack.c.b16 %v60, %v59
  %v73 = vpack.c.b16 %v62, %v61
  %v74 = vpack.c.b16 %v64, %v63
  %v75 = vpack.c.b16 %v66, %v65
  %v76 = vpack.c.b16 %v68, %v67
  %85 = vmatpush.bf16.msra.mxu0 %v76
  %86 = vmatpush.bf16.msra.mxu0 %v75
  %87 = vmatpush.bf16.msra.mxu0 %v74
  %88 = vmatpush.bf16.msra.mxu0 %v73
  %89 = vmatpush.bf16.msra.mxu0 %v72
  %90 = vmatpush.bf16.msra.mxu0 %v71
  %91 = vmatpush.bf16.msra.mxu0 %v70
  %92 = vmatpush.bf16.msra.mxu0 %v69
  %93 = vmatmul.bf16.gmra.mxu0 %v14
  %v94 = vpop.f32.mrf.mxu0
  %v95 = vadd.f32 %v35, %v94
  %v96 = vpop.f32.mrf.mxu0
  %97 = vdwg.mxu0
  %vm98 = vcmask 408576
  %99 = vst.msk [vmem:[%s3] sm:$0xff] %vm98, %v95
  // Predicated region
  $region14: #{unet_forward.28} parent=0 // pred_check
    _
  $region15: #{unet_forward.28} parent=0 // pred_check_branch
    %101 = sbr.rel (0) target = $region17
  $region16: #{unet_forward.28} parent=0 // pred_region
    _
  $region17: #{unet_forward.28} parent=0 // pred_fallthru
    _
  // Predicated region
  $region18: #{unet_forward.28} parent=0 // pred_check
    _
  $region19: #{unet_forward.28} parent=0 // pred_check_branch
    %103 = sbr.rel (0) target = $region21
  $region20: #{unet_forward.28} parent=0 // pred_region
    _
  $region21: #{unet_forward.28} parent=0 // pred_fallthru
    _

// kernel: unet_forward.29
$region0: #{unet_forward.29}
  #allocation0 [shape = 'u32[]', space=smem, size = 0x4, offset = 0x4, fixed_abs, tag = 'smem constant byte address 0x4 - core index']
  #allocation1 [shape = 'u32[72,128]{1,0:T(1,128)}', space=vmem, size = 0x9000, scoped, tag = 'internal scratch']
  %s0 = inlined_call_operand.vmem [shape: f32[50,8], index: 0, kind: input, shape index: {}]
  %s1 = inlined_call_operand.vmem [shape: bf16[8,24], index: 1, kind: input, shape index: {}]
  %s2 = inlined_call_operand.vmem [shape: f32[1,24], index: 2, kind: input, shape index: {}]
  %s3 = inlined_call_operand.vmem [shape: bf16[8,8], index: 3, kind: input, shape index: {}]
  %s4 = inlined_call_operand.vmem [shape: f32[1,8], index: 4, kind: input, shape index: {}]
  %s5 = inlined_call_operand.vmem [shape: f32[50,8], index: 5, kind: output, shape index: {}]
  %s6 = sld [smem:[#allocation0]]
  $region30: #{unet_forward.29} parent=0
    _
  %s8 = ssub.s32 1, %s6
  %s9 = scalar_select 0, %s8, %s6
  // Predicated region
  $region2: #{unet_forward.29} parent=0 // pred_check
    _
  $region3: #{unet_forward.29} parent=0 // pred_check_branch
    %11 = sbr.rel (0) target = $region5
  $region4: #{unet_forward.29} parent=0 // pred_region
    _
  $region5: #{unet_forward.29} parent=0 // pred_fallthru
    _
  // Predicated region
  $region6: #{unet_forward.29} parent=0 // pred_check
    _
  $region7: #{unet_forward.29} parent=0 // pred_check_branch
    %13 = sbr.rel (0) target = $region9
  $region8: #{unet_forward.29} parent=0 // pred_region
    _
  $region9: #{unet_forward.29} parent=0 // pred_fallthru
    _
  // Predicated region
  $region10: #{unet_forward.29} parent=0 // pred_check
    _
  $region11: #{unet_forward.29} parent=0 // pred_check_branch
    %15 = sbr.rel (0) target = $region13
  $region12: #{unet_forward.29} parent=0 // pred_region
    _
  $region13: #{unet_forward.29} parent=0 // pred_fallthru
    _
  // Predicated region
  $region14: #{unet_forward.29} parent=0 // pred_check
    _
  $region15: #{unet_forward.29} parent=0 // pred_check_branch
    %17 = sbr.rel (0) target = $region17
  $region16: #{unet_forward.29} parent=0 // pred_region
    _
  $region17: #{unet_forward.29} parent=0 // pred_fallthru
    _
  // Predicated region
  $region18: #{unet_forward.29} parent=0 // pred_check
    _
  $region19: #{unet_forward.29} parent=0 // pred_check_branch
    %19 = sbr.rel (0) target = $region21
  $region20: #{unet_forward.29} parent=0 // pred_region
    _
  $region21: #{unet_forward.29} parent=0 // pred_fallthru
    _
  %v21 = vld [vmem:[%s0] sm:$0xff]
  %v22 = vld [vmem:[%s0 + $0x8] sm:$0xff]
  %v23 = vld [vmem:[%s0 + $0x10] sm:$0xff]
  %v24 = vld [vmem:[%s0 + $0x18] sm:$0x1]
  %v25 = vld [vmem:[%s1] sm:$0xf]
  %v26 = vpack.c.bf16 %v22, %v21
  %v27 = vpack.c.bf16 %v24, %v23
  %v28 = vld [vmem:[%s2] sm:$0x1]
  %v30 = vperm.slane %v28, 0
  %vm32 = vcmask 64512
  %v34 = vsel %vm32, %v26, 0
  %v37 = vsel %vm32, %v27, 0
  %vm39 = vcmask 1043456
  %v41 = vsel %vm39, %v25, 0
  %43 = vmatpush.bf16.msra.mxu0 0
  %44 = vmatpush.bf16.msra.mxu0 0
  %45 = vmatpush.bf16.msra.mxu0 0
  %46 = vmatpush.bf16.msra.mxu0 0
  %47 = vmatpush.bf16.msra.mxu0 0
  %48 = vmatpush.bf16.msra.mxu0 0
  %49 = vmatpush.bf16.msra.mxu0 0
  %50 = vmatpush.bf16.msra.mxu0 %v41
  %51 = vmatmul.bf16.gmra.mxu0 %v34
  %v52 = vpop.f32.mrf.mxu0
  %v53 = vadd.f32 %v30, %v52
  %v54 = vpop.f32.mrf.mxu0
  %v55 = vadd.f32 %v30, %v54
  %56 = vmatmul.bf16.gmra.mxu0 %v37
  %v57 = vpop.f32.mrf.mxu0
  %v58 = vadd.f32 %v30, %v57
  %v59 = vpop.f32.mrf.mxu0
  %v60 = vadd.f32 %v30, %v59
  %61 = vdwg.mxu0
  %v62 = vpack.c.bf16 %v55, %v53
  %v63 = vpack.c.bf16 %v60, %v58
  %66 = vrot.lane.b32.xlu0 %v62, 120
  %v67 = vpop.permute.xlu0 %66
  %68 = vrot.lane.b32.xlu0 %v63, 120
  %v69 = vpop.permute.xlu0 %68
  %v71 = vsel %vm32, %v62, 0
  %v74 = vsel %vm32, %v63, 0
  %v77 = vsel %vm32, %v67, 0
  %v80 = vsel %vm32, %v69, 0
  %82 = vmatpush.bf16.xpose.msra.mxu0 0
  %83 = vmatpush.bf16.xpose.msra.mxu0 0
  %84 = vmatpush.bf16.xpose.msra.mxu0 0
  %85 = vmatpush.bf16.xpose.msra.mxu0 0
  %86 = vmatpush.bf16.xpose.msra.mxu0 0
  %87 = vmatpush.bf16.xpose.msra.mxu0 0
  %88 = vmatpush.bf16.xpose.msra.mxu0 %v80
  %89 = vmatpush.bf16.xpose.msra.mxu0 %v77
  %90 = vmatmul.bf16.gmra.mxu0 %v71
  %v91 = vpop.f32.mrf.mxu0
  %v92 = vadd.f32 0.0, %v91
  %v93 = vpop.f32.mrf.mxu0
  %v94 = vadd.f32 0.0, %v93
  %95 = vmatmul.bf16.gmra.mxu0 %v74
  %v96 = vpop.f32.mrf.mxu0
  %v97 = vadd.f32 0.0, %v96
  %v98 = vpop.f32.mrf.mxu0
  %v99 = vadd.f32 0.0, %v98
  %100 = vdwg.mxu0
  %v101 = vmul.f32 %v92, 0.35355338
  %v102 = vmul.f32 %v94, 0.35355338
  %v103 = vmul.f32 %v97, 0.35355338
  %v104 = vmul.f32 %v99, 0.35355338
  %vm105 = vcmask 203776
  %v106 = vsel %vm105, %v101, -inf
  %107 = vmax.xlane.f32.xlu0 %v106
  %v108 = vpop.xlane.xlu0 %107
  %v109 = vsel %vm105, %v102, -inf
  %110 = vmax.xlane.f32.xlu0 %v109
  %v111 = vpop.xlane.xlu0 %110
  %v112 = vsel %vm105, %v103, -inf
  %113 = vmax.xlane.f32.xlu0 %v112
  %v114 = vpop.xlane.xlu0 %113
  %vm115 = vcmask 196608
  %v116 = vsel %vm115, %v104, -inf
  %117 = vmax.xlane.f32.xlu0 %v116
  %v118 = vpop.xlane.xlu0 %117
  %v119 = vsub.f32 %v101, %v108
  %v120 = vsub.f32 %v102, %v111
  %v121 = vsub.f32 %v103, %v114
  %v122 = vsub.f32 %v104, %v118
  %v123 = vmul.f32 %v119, 1.442695
  %v124 = vpow.pop %v123
  %v125 = vmul.f32 %v120, 1.442695
  %v126 = vpow.pop %v125
  %v127 = vmul.f32 %v121, 1.442695
  %v128 = vpow.pop %v127
  %v129 = vmul.f32 %v122, 1.442695
  %v130 = vpow.pop %v129
  %v131 = vsel %vm105, %v124, 0.0
  %132 = vadd.xlane.f32.xlu0 %v131
  %v133 = vpop.xlane.xlu0 %132
  %v134 = vsel %vm105, %v126, 0.0
  %135 = vadd.xlane.f32.xlu0 %v134
  %v136 = vpop.xlane.xlu0 %135
  %v137 = vsel %vm105, %v128, 0.0
  %138 = vadd.xlane.f32.xlu0 %v137
  %v139 = vpop.xlane.xlu0 %138
  %v140 = vsel %vm115, %v130, 0.0
  %141 = vadd.xlane.f32.xlu0 %v140
  %v142 = vpop.xlane.xlu0 %141
  %v143 = vrcp.pop %v133
  %v144 = vrcp.pop %v136
  %v145 = vrcp.pop %v139
  %v146 = vrcp.pop %v142
  %v147 = vmul.f32 %v124, %v143
  %v148 = vmul.f32 %v126, %v144
  %v149 = vmul.f32 %v128, %v145
  %v150 = vmul.f32 %v130, %v146
  %v151 = vpack.c.bf16 %v148, %v147
  %v152 = vpack.c.bf16 %v150, %v149
  %153 = vrot.lane.b32.xlu0 %v62, 112
  %v154 = vpop.permute.xlu0 %153
  %155 = vrot.lane.b32.xlu0 %v63, 112
  %v156 = vpop.permute.xlu0 %155
  %v159 = vsel %vm105, %v151, 0
  %v162 = vsel %vm105, %v152, 0
  %vm164 = vcmask 1044480
  %v165 = vsel %vm39, 4294967295, 65535
  %v166 = vsel %vm164, %v165, 0
  %v168 = vand.u32 %v156, %v166
  %170 = vmatpush.bf16.msra.mxu0 0
  %171 = vmatpush.bf16.msra.mxu0 0
  %172 = vmatpush.bf16.msra.mxu0 0
  %173 = vmatpush.bf16.msra.mxu0 0
  %174 = vmatpush.bf16.msra.mxu0 0
  %175 = vmatpush.bf16.msra.mxu0 0
  %176 = vmatpush.bf16.msra.mxu0 %v168
  %177 = vmatpush.bf16.msra.mxu0 %v154
  %178 = vmatmul.bf16.gmra.mxu0 %v159
  %v179 = vpop.f32.mrf.mxu0
  %v180 = vadd.f32 0.0, %v179
  %v181 = vpop.f32.mrf.mxu0
  %v182 = vadd.f32 0.0, %v181
  %183 = vmatmul.bf16.gmra.mxu0 %v162
  %v184 = vpop.f32.mrf.mxu0
  %v185 = vadd.f32 0.0, %v184
  %v186 = vpop.f32.mrf.mxu0
  %v187 = vadd.f32 0.0, %v186
  %188 = vdwg.mxu0
  %v189 = vld [vmem:[%s3] sm:$0xf]
  %v190 = vpack.c.bf16 %v182, %v180
  %v191 = vpack.c.bf16 %v187, %v185
  %v192 = vld [vmem:[%s4] sm:$0x1]
  %v194 = vperm.slane %v192, 0
  %v197 = vsel %vm32, %v190, 0
  %v200 = vsel %vm32, %v191, 0
  %v203 = vsel %vm39, %v189, 0
  %205 = vmatpush.bf16.msra.mxu0 0
  %206 = vmatpush.bf16.msra.mxu0 0
  %207 = vmatpush.bf16.msra.mxu0 0
  %208 = vmatpush.bf16.msra.mxu0 0
  %209 = vmatpush.bf16.msra.mxu0 0
  %210 = vmatpush.bf16.msra.mxu0 0
  %211 = vmatpush.bf16.msra.mxu0 0
  %212 = vmatpush.bf16.msra.mxu0 %v203
  %213 = vmatmul.bf16.gmra.mxu0 %v197
  %v214 = vpop.f32.mrf.mxu0
  %v215 = vadd.f32 %v194, %v214
  %v216 = vpop.f32.mrf.mxu0
  %v217 = vadd.f32 %v194, %v216
  %218 = vmatmul.bf16.gmra.mxu0 %v200
  %v219 = vpop.f32.mrf.mxu0
  %v220 = vadd.f32 %v194, %v219
  %v221 = vpop.f32.mrf.mxu0
  %v222 = vadd.f32 %v194, %v221
  %223 = vdwg.mxu0
  %v224 = vadd.f32 %v21, %v215
  %v225 = vadd.f32 %v22, %v217
  %v226 = vadd.f32 %v23, %v220
  %v227 = vadd.f32 %v24, %v222
  %228 = vst.msk [vmem:[%s5] sm:$0xff] %vm32, %v224
  %229 = vst.msk [vmem:[%s5 + $0x8] sm:$0xff] %vm32, %v225
  %230 = vst.msk [vmem:[%s5 + $0x10] sm:$0xff] %vm32, %v226
  %vm231 = vcmask 57344
  %232 = vst.msk [vmem:[%s5 + $0x18] sm:$0x1] %vm231, %v227
  %v233 = vld [vmem:[%s0 + $0x19] sm:$0xff]
  %v234 = vld [vmem:[%s0 + $0x21] sm:$0xff]
  %v235 = vld [vmem:[%s0 + $0x29] sm:$0xff]
  %v236 = vld [vmem:[%s0 + $0x31] sm:$0x1]
  %v237 = vld [vmem:[%s1] sm:$0xf]
  %v238 = vpack.c.bf16 %v234, %v233
  %v239 = vpack.c.bf16 %v236, %v235
  %v240 = vld [vmem:[%s2] sm:$0x1]
  %v242 = vperm.slane %v240, 0
  %v245 = vsel %vm32, %v238, 0
  %v248 = vsel %vm32, %v239, 0
  %v251 = vsel %vm39, %v237, 0
  %253 = vmatpush.bf16.msra.mxu0 0
  %254 = vmatpush.bf16.msra.mxu0 0
  %255 = vmatpush.bf16.msra.mxu0 0
  %256 = vmatpush.bf16.msra.mxu0 0
  %257 = vmatpush.bf16.msra.mxu0 0
  %258 = vmatpush.bf16.msra.mxu0 0
  %259 = vmatpush.bf16.msra.mxu0 0
  %260 = vmatpush.bf16.msra.mxu0 %v251
  %261 = vmatmul.bf16.gmra.mxu0 %v245
  %v262 = vpop.f32.mrf.mxu0
  %v263 = vadd.f32 %v242, %v262
  %v264 = vpop.f32.mrf.mxu0
  %v265 = vadd.f32 %v242, %v264
  %266 = vmatmul.bf16.gmra.mxu0 %v248
  %v267 = vpop.f32.mrf.mxu0
  %v268 = vadd.f32 %v242, %v267
  %v269 = vpop.f32.mrf.mxu0
  %v270 = vadd.f32 %v242, %v269
  %271 = vdwg.mxu0
  %v272 = vpack.c.bf16 %v265, %v263
  %v273 = vpack.c.bf16 %v270, %v268
  %276 = vrot.lane.b32.xlu0 %v272, 120
  %v277 = vpop.permute.xlu0 %276
  %278 = vrot.lane.b32.xlu0 %v273, 120
  %v279 = vpop.permute.xlu0 %278
  %v281 = vsel %vm32, %v272, 0
  %v284 = vsel %vm32, %v273, 0
  %v287 = vsel %vm32, %v277, 0
  %v290 = vsel %vm32, %v279, 0
  %292 = vmatpush.bf16.xpose.msra.mxu0 0
  %293 = vmatpush.bf16.xpose.msra.mxu0 0
  %294 = vmatpush.bf16.xpose.msra.mxu0 0
  %295 = vmatpush.bf16.xpose.msra.mxu0 0
  %296 = vmatpush.bf16.xpose.msra.mxu0 0
  %297 = vmatpush.bf16.xpose.msra.mxu0 0
  %298 = vmatpush.bf16.xpose.msra.mxu0 %v290
  %299 = vmatpush.bf16.xpose.msra.mxu0 %v287
  %300 = vmatmul.bf16.gmra.mxu0 %v281
  %v301 = vpop.f32.mrf.mxu0
  %v302 = vadd.f32 0.0, %v301
  %v303 = vpop.f32.mrf.mxu0
  %v304 = vadd.f32 0.0, %v303
  %305 = vmatmul.bf16.gmra.mxu0 %v284
  %v306 = vpop.f32.mrf.mxu0
  %v307 = vadd.f32 0.0, %v306
  %v308 = vpop.f32.mrf.mxu0
  %v309 = vadd.f32 0.0, %v308
  %310 = vdwg.mxu0
  %v311 = vmul.f32 %v302, 0.35355338
  %v312 = vmul.f32 %v304, 0.35355338
  %v313 = vmul.f32 %v307, 0.35355338
  %v314 = vmul.f32 %v309, 0.35355338
  %v315 = vsel %vm105, %v311, -inf
  %316 = vmax.xlane.f32.xlu0 %v315
  %v317 = vpop.xlane.xlu0 %316
  %v318 = vsel %vm105, %v312, -inf
  %319 = vmax.xlane.f32.xlu0 %v318
  %v320 = vpop.xlane.xlu0 %319
  %v321 = vsel %vm105, %v313, -inf
  %322 = vmax.xlane.f32.xlu0 %v321
  %v323 = vpop.xlane.xlu0 %322
  %v324 = vsel %vm115, %v314, -inf
  %325 = vmax.xlane.f32.xlu0 %v324
  %v326 = vpop.xlane.xlu0 %325
  %v327 = vsub.f32 %v311, %v317
  %v328 = vsub.f32 %v312, %v320
  %v329 = vsub.f32 %v313, %v323
  %v330 = vsub.f32 %v314, %v326
  %v331 = vmul.f32 %v327, 1.442695
  %v332 = vpow.pop %v331
  %v333 = vmul.f32 %v328, 1.442695
  %v334 = vpow.pop %v333
  %v335 = vmul.f32 %v329, 1.442695
  %v336 = vpow.pop %v335
  %v337 = vmul.f32 %v330, 1.442695
  %v338 = vpow.pop %v337
  %v339 = vsel %vm105, %v332, 0.0
  %340 = vadd.xlane.f32.xlu0 %v339
  %v341 = vpop.xlane.xlu0 %340
  %v342 = vsel %vm105, %v334, 0.0
  %343 = vadd.xlane.f32.xlu0 %v342
  %v344 = vpop.xlane.xlu0 %343
  %v345 = vsel %vm105, %v336, 0.0
  %346 = vadd.xlane.f32.xlu0 %v345
  %v347 = vpop.xlane.xlu0 %346
  %v348 = vsel %vm115, %v338, 0.0
  %349 = vadd.xlane.f32.xlu0 %v348
  %v350 = vpop.xlane.xlu0 %349
  %v351 = vrcp.pop %v341
  %v352 = vrcp.pop %v344
  %v353 = vrcp.pop %v347
  %v354 = vrcp.pop %v350
  %v355 = vmul.f32 %v332, %v351
  %v356 = vmul.f32 %v334, %v352
  %v357 = vmul.f32 %v336, %v353
  %v358 = vmul.f32 %v338, %v354
  %v359 = vpack.c.bf16 %v356, %v355
  %v360 = vpack.c.bf16 %v358, %v357
  %361 = vrot.lane.b32.xlu0 %v272, 112
  %v362 = vpop.permute.xlu0 %361
  %363 = vrot.lane.b32.xlu0 %v273, 112
  %v364 = vpop.permute.xlu0 %363
  %v367 = vsel %vm105, %v359, 0
  %v370 = vsel %vm105, %v360, 0
  %v373 = vand.u32 %v364, %v166
  %375 = vmatpush.bf16.msra.mxu0 0
  %376 = vmatpush.bf16.msra.mxu0 0
  %377 = vmatpush.bf16.msra.mxu0 0
  %378 = vmatpush.bf16.msra.mxu0 0
  %379 = vmatpush.bf16.msra.mxu0 0
  %380 = vmatpush.bf16.msra.mxu0 0
  %381 = vmatpush.bf16.msra.mxu0 %v373
  %382 = vmatpush.bf16.msra.mxu0 %v362
  %383 = vmatmul.bf16.gmra.mxu0 %v367
  %v384 = vpop.f32.mrf.mxu0
  %v385 = vadd.f32 0.0, %v384
  %v386 = vpop.f32.mrf.mxu0
  %v387 = vadd.f32 0.0, %v386
  %388 = vmatmul.bf16.gmra.mxu0 %v370
  %v389 = vpop.f32.mrf.mxu0
  %v390 = vadd.f32 0.0, %v389
  %v391 = vpop.f32.mrf.mxu0
  %v392 = vadd.f32 0.0, %v391
  %393 = vdwg.mxu0
  %v394 = vld [vmem:[%s3] sm:$0xf]
  %v395 = vpack.c.bf16 %v387, %v385
  %v396 = vpack.c.bf16 %v392, %v390
  %v397 = vld [vmem:[%s4] sm:$0x1]
  %v399 = vperm.slane %v397, 0
  %v402 = vsel %vm32, %v395, 0
  %v405 = vsel %vm32, %v396, 0
  %v408 = vsel %vm39, %v394, 0
  %410 = vmatpush.bf16.msra.mxu0 0
  %411 = vmatpush.bf16.msra.mxu0 0
  %412 = vmatpush.bf16.msra.mxu0 0
  %413 = vmatpush.bf16.msra.mxu0 0
  %414 = vmatpush.bf16.msra.mxu0 0
  %415 = vmatpush.bf16.msra.mxu0 0
  %416 = vmatpush.bf16.msra.mxu0 0
  %417 = vmatpush.bf16.msra.mxu0 %v408
  %418 = vmatmul.bf16.gmra.mxu0 %v402
  %v419 = vpop.f32.mrf.mxu0
  %v420 = vadd.f32 %v399, %v419
  %v421 = vpop.f32.mrf.mxu0
  %v422 = vadd.f32 %v399, %v421
  %423 = vmatmul.bf16.gmra.mxu0 %v405
  %v424 = vpop.f32.mrf.mxu0
  %v425 = vadd.f32 %v399, %v424
  %v426 = vpop.f32.mrf.mxu0
  %v427 = vadd.f32 %v399, %v426
  %428 = vdwg.mxu0
  %v429 = vadd.f32 %v233, %v420
  %v430 = vadd.f32 %v234, %v422
  %v431 = vadd.f32 %v235, %v425
  %v432 = vadd.f32 %v236, %v427
  %433 = vst.msk [vmem:[%s5 + $0x19] sm:$0xff] %vm32, %v429
  %434 = vst.msk [vmem:[%s5 + $0x21] sm:$0xff] %vm32, %v430
  %435 = vst.msk [vmem:[%s5 + $0x29] sm:$0xff] %vm32, %v431
  %436 = vst.msk [vmem:[%s5 + $0x31] sm:$0x1] %vm231, %v432
  // Predicated region
  $region22: #{unet_forward.29} parent=0 // pred_check
    _
  $region23: #{unet_forward.29} parent=0 // pred_check_branch
    %438 = sbr.rel (0) target = $region25
  $region24: #{unet_forward.29} parent=0 // pred_region
    _
  $region25: #{unet_forward.29} parent=0 // pred_fallthru
    _
  // Predicated region
  $region26: #{unet_forward.29} parent=0 // pred_check
    _
  $region27: #{unet_forward.29} parent=0 // pred_check_branch
    %440 = sbr.rel (0) target = $region29
  $region28: #{unet_forward.29} parent=0 // pred_region
    _
  $region29: #{unet_forward.29} parent=0 // pred_fallthru
    _

// kernel: unet_forward.30
$region0: #{unet_forward.30}
  #allocation0 [shape = 'u32[]', space=smem, size = 0x4, offset = 0x4, fixed_abs, tag = 'smem constant byte address 0x4 - core index']
  #allocation1 [shape = 'u32[72,128]{1,0:T(1,128)}', space=vmem, size = 0x9000, scoped, tag = 'internal scratch']
  %s0 = inlined_call_operand.vmem [shape: bf16[8,72], index: 0, kind: input, shape index: {}]
  %s1 = inlined_call_operand.vmem [shape: bf16[72,50], index: 1, kind: input, shape index: {}]
  %s2 = inlined_call_operand.vmem [shape: f32[8,1], index: 2, kind: input, shape index: {}]
  %s3 = inlined_call_operand.vmem [shape: f32[1,50], index: 3, kind: input, shape index: {}]
  %s4 = inlined_call_operand.vmem [shape: f32[8,50], index: 4, kind: output, shape index: {}]
  %s5 = sld [smem:[#allocation0]]
  $region26: #{unet_forward.30} parent=0
    _
  %s7 = ssub.s32 1, %s5
  %s8 = scalar_select 0, %s7, %s5
  // Predicated region
  $region2: #{unet_forward.30} parent=0 // pred_check
    _
  $region3: #{unet_forward.30} parent=0 // pred_check_branch
    %10 = sbr.rel (0) target = $region5
  $region4: #{unet_forward.30} parent=0 // pred_region
    _
  $region5: #{unet_forward.30} parent=0 // pred_fallthru
    _
  // Predicated region
  $region6: #{unet_forward.30} parent=0 // pred_check
    _
  $region7: #{unet_forward.30} parent=0 // pred_check_branch
    %12 = sbr.rel (0) target = $region9
  $region8: #{unet_forward.30} parent=0 // pred_region
    _
  $region9: #{unet_forward.30} parent=0 // pred_fallthru
    _
  // Predicated region
  $region10: #{unet_forward.30} parent=0 // pred_check
    _
  $region11: #{unet_forward.30} parent=0 // pred_check_branch
    %14 = sbr.rel (0) target = $region13
  $region12: #{unet_forward.30} parent=0 // pred_region
    _
  $region13: #{unet_forward.30} parent=0 // pred_fallthru
    _
  // Predicated region
  $region14: #{unet_forward.30} parent=0 // pred_check
    _
  $region15: #{unet_forward.30} parent=0 // pred_check_branch
    %16 = sbr.rel (0) target = $region17
  $region16: #{unet_forward.30} parent=0 // pred_region
    _
  $region17: #{unet_forward.30} parent=0 // pred_fallthru
    _
  %v18 = vld [vmem:[%s0] sm:$0xf]
  %v19 = vld [vmem:[%s1] sm:$0xf]
  %v20 = vld [vmem:[%s1 + $0x4] sm:$0xf]
  %v21 = vld [vmem:[%s1 + $0x8] sm:$0xf]
  %v22 = vld [vmem:[%s1 + $0xc] sm:$0xf]
  %v23 = vld [vmem:[%s1 + $0x10] sm:$0xf]
  %v24 = vld [vmem:[%s1 + $0x14] sm:$0xf]
  %v25 = vld [vmem:[%s1 + $0x18] sm:$0xf]
  %v26 = vld [vmem:[%s1 + $0x1c] sm:$0xf]
  %v27 = vld [vmem:[%s1 + $0x20] sm:$0xf]
  %v28 = vld [vmem:[%s2] sm:$0xff]
  %30 = vset.pattern.permute.xlu0 0
  %31 = vperm.xlu0 %30, %v28
  %v32 = vpop.permute.xlu0 %31
  %v43 = vunpack.c.l.b16 %v19
  %v44 = vunpack.c.l.b16 %v20
  %v45 = vunpack.c.l.b16 %v21
  %v46 = vunpack.c.l.b16 %v22
  %v47 = vunpack.c.l.b16 %v23
  %v48 = vunpack.c.l.b16 %v24
  %v49 = vunpack.c.l.b16 %v25
  %v50 = vunpack.c.l.b16 %v26
  %v51 = vunpack.c.l.b16 %v27
  %v52 = vpack.c.b16 %v44, %v43
  %v53 = vpack.c.b16 %v46, %v45
  %v54 = vpack.c.b16 %v48, %v47
  %v55 = vpack.c.b16 %v50, %v49
  %v56 = vpack.c.b16 %v51, %v51
  %vm61 = vcmask 588800
  %v63 = vsel %vm61, %v18, 0
  %vm65 = vcmask 1043456
  %v67 = vsel %vm65, %v56, 0
  %69 = vmatpush.bf16.msra.mxu0 0
  %70 = vmatpush.bf16.msra.mxu0 0
  %71 = vmatpush.bf16.msra.mxu0 0
  %72 = vmatpush.bf16.msra.mxu0 %v67
  %73 = vmatpush.bf16.msra.mxu0 %v55
  %74 = vmatpush.bf16.msra.mxu0 %v54
  %75 = vmatpush.bf16.msra.mxu0 %v53
  %76 = vmatpush.bf16.msra.mxu0 %v52
  %77 = vmatmul.bf16.gmra.mxu0 %v63
  %v78 = vpop.f32.mrf.mxu0
  %v79 = vadd.f32 %v32, %v78
  %v80 = vpop.f32.mrf.mxu0
  %81 = vdwg.mxu0
  %v82 = vsub.f32 0.0, %v79
  %v83 = vmul.f32 %v82, 1.442695
  %v84 = vpow.pop %v83
  %v85 = vadd.f32 %v84, 1.0
  %v86 = vrcp.pop %v85
  %v87 = vmul.f32 %v79, %v86
  %v88 = vld [vmem:[%s3] sm:$0x1]
  %v90 = vperm.slane %v88, 0
  %v92 = vadd.f32 %v87, %v90
  %vm93 = vcmask 408576
  %94 = vst.msk [vmem:[%s4] sm:$0xff] %vm93, %v92
  // Predicated region
  $region18: #{unet_forward.30} parent=0 // pred_check
    _
  $region19: #{unet_forward.30} parent=0 // pred_check_branch
    %96 = sbr.rel (0) target = $region21
  $region20: #{unet_forward.30} parent=0 // pred_region
    _
  $region21: #{unet_forward.30} parent=0 // pred_fallthru
    _
  // Predicated region
  $region22: #{unet_forward.30} parent=0 // pred_check
    _
  $region23: #{unet_forward.30} parent=0 // pred_check_branch
    %98 = sbr.rel (0) target = $region25
  $region24: #{unet_forward.30} parent=0 // pred_region
    _
  $region25: #{unet_forward.30} parent=0 // pred_fallthru
    _

// kernel: unet_forward.31
$region0: #{unet_forward.31}
  #allocation0 [shape = 'u32[]', space=smem, size = 0x4, offset = 0x4, fixed_abs, tag = 'smem constant byte address 0x4 - core index']
  #allocation1 [shape = 'u32[72,128]{1,0:T(1,128)}', space=vmem, size = 0x9000, scoped, tag = 'internal scratch']
  %s0 = inlined_call_operand.vmem [shape: bf16[8,72], index: 0, kind: input, shape index: {}]
  %s1 = inlined_call_operand.vmem [shape: bf16[72,50], index: 1, kind: input, shape index: {}]
  %s2 = inlined_call_operand.vmem [shape: f32[8,1], index: 2, kind: input, shape index: {}]
  %s3 = inlined_call_operand.vmem [shape: f32[8,50], index: 3, kind: input, shape index: {}]
  %s4 = inlined_call_operand.vmem [shape: f32[8,50], index: 4, kind: output, shape index: {}]
  %s5 = sld [smem:[#allocation0]]
  $region26: #{unet_forward.31} parent=0
    _
  %s7 = ssub.s32 1, %s5
  %s8 = scalar_select 0, %s7, %s5
  // Predicated region
  $region2: #{unet_forward.31} parent=0 // pred_check
    _
  $region3: #{unet_forward.31} parent=0 // pred_check_branch
    %10 = sbr.rel (0) target = $region5
  $region4: #{unet_forward.31} parent=0 // pred_region
    _
  $region5: #{unet_forward.31} parent=0 // pred_fallthru
    _
  // Predicated region
  $region6: #{unet_forward.31} parent=0 // pred_check
    _
  $region7: #{unet_forward.31} parent=0 // pred_check_branch
    %12 = sbr.rel (0) target = $region9
  $region8: #{unet_forward.31} parent=0 // pred_region
    _
  $region9: #{unet_forward.31} parent=0 // pred_fallthru
    _
  // Predicated region
  $region10: #{unet_forward.31} parent=0 // pred_check
    _
  $region11: #{unet_forward.31} parent=0 // pred_check_branch
    %14 = sbr.rel (0) target = $region13
  $region12: #{unet_forward.31} parent=0 // pred_region
    _
  $region13: #{unet_forward.31} parent=0 // pred_fallthru
    _
  // Predicated region
  $region14: #{unet_forward.31} parent=0 // pred_check
    _
  $region15: #{unet_forward.31} parent=0 // pred_check_branch
    %16 = sbr.rel (0) target = $region17
  $region16: #{unet_forward.31} parent=0 // pred_region
    _
  $region17: #{unet_forward.31} parent=0 // pred_fallthru
    _
  %v18 = vld [vmem:[%s0] sm:$0xf]
  %v19 = vld [vmem:[%s1] sm:$0xf]
  %v20 = vld [vmem:[%s1 + $0x4] sm:$0xf]
  %v21 = vld [vmem:[%s1 + $0x8] sm:$0xf]
  %v22 = vld [vmem:[%s1 + $0xc] sm:$0xf]
  %v23 = vld [vmem:[%s1 + $0x10] sm:$0xf]
  %v24 = vld [vmem:[%s1 + $0x14] sm:$0xf]
  %v25 = vld [vmem:[%s1 + $0x18] sm:$0xf]
  %v26 = vld [vmem:[%s1 + $0x1c] sm:$0xf]
  %v27 = vld [vmem:[%s1 + $0x20] sm:$0xf]
  %v28 = vld [vmem:[%s2] sm:$0xff]
  %30 = vset.pattern.permute.xlu0 0
  %31 = vperm.xlu0 %30, %v28
  %v32 = vpop.permute.xlu0 %31
  %v43 = vunpack.c.l.b16 %v19
  %v44 = vunpack.c.l.b16 %v20
  %v45 = vunpack.c.l.b16 %v21
  %v46 = vunpack.c.l.b16 %v22
  %v47 = vunpack.c.l.b16 %v23
  %v48 = vunpack.c.l.b16 %v24
  %v49 = vunpack.c.l.b16 %v25
  %v50 = vunpack.c.l.b16 %v26
  %v51 = vunpack.c.l.b16 %v27
  %v52 = vpack.c.b16 %v44, %v43
  %v53 = vpack.c.b16 %v46, %v45
  %v54 = vpack.c.b16 %v48, %v47
  %v55 = vpack.c.b16 %v50, %v49
  %v56 = vpack.c.b16 %v51, %v51
  %vm61 = vcmask 588800
  %v63 = vsel %vm61, %v18, 0
  %vm65 = vcmask 1043456
  %v67 = vsel %vm65, %v56, 0
  %69 = vmatpush.bf16.msra.mxu0 0
  %70 = vmatpush.bf16.msra.mxu0 0
  %71 = vmatpush.bf16.msra.mxu0 0
  %72 = vmatpush.bf16.msra.mxu0 %v67
  %73 = vmatpush.bf16.msra.mxu0 %v55
  %74 = vmatpush.bf16.msra.mxu0 %v54
  %75 = vmatpush.bf16.msra.mxu0 %v53
  %76 = vmatpush.bf16.msra.mxu0 %v52
  %77 = vmatmul.bf16.gmra.mxu0 %v63
  %v78 = vpop.f32.mrf.mxu0
  %v79 = vadd.f32 %v32, %v78
  %v80 = vpop.f32.mrf.mxu0
  %81 = vdwg.mxu0
  %v82 = vsub.f32 0.0, %v79
  %v83 = vmul.f32 %v82, 1.442695
  %v84 = vpow.pop %v83
  %v85 = vadd.f32 %v84, 1.0
  %v86 = vrcp.pop %v85
  %v87 = vmul.f32 %v79, %v86
  %v88 = vld [vmem:[%s3] sm:$0xff]
  %v89 = vadd.f32 %v87, %v88
  %vm90 = vcmask 408576
  %91 = vst.msk [vmem:[%s4] sm:$0xff] %vm90, %v89
  // Predicated region
  $region18: #{unet_forward.31} parent=0 // pred_check
    _
  $region19: #{unet_forward.31} parent=0 // pred_check_branch
    %93 = sbr.rel (0) target = $region21
  $region20: #{unet_forward.31} parent=0 // pred_region
    _
  $region21: #{unet_forward.31} parent=0 // pred_fallthru
    _
  // Predicated region
  $region22: #{unet_forward.31} parent=0 // pred_check
    _
  $region23: #{unet_forward.31} parent=0 // pred_check_branch
    %95 = sbr.rel (0) target = $region25
  $region24: #{unet_forward.31} parent=0 // pred_region
    _
  $region25: #{unet_forward.31} parent=0 // pred_fallthru
    _

// kernel: unet_forward.33
$region0: #{unet_forward.33}
  #allocation0 [shape = 'u32[]', space=smem, size = 0x4, offset = 0x4, fixed_abs, tag = 'smem constant byte address 0x4 - core index']
  #allocation1 [shape = 'u32[72,128]{1,0:T(1,128)}', space=vmem, size = 0x9000, scoped, tag = 'internal scratch']
  %s0 = inlined_call_operand.vmem [shape: bf16[4,32], index: 0, kind: input, shape index: {}]
  %s1 = inlined_call_operand.vmem [shape: bf16[32,338], index: 1, kind: input, shape index: {}]
  %s2 = inlined_call_operand.vmem [shape: f32[4,1], index: 2, kind: input, shape index: {}]
  %s3 = inlined_call_operand.vmem [shape: f32[4,338], index: 3, kind: output, shape index: {}]
  %s4 = sld [smem:[#allocation0]]
  $region22: #{unet_forward.33} parent=0
    _
  %s6 = ssub.s32 1, %s4
  %s7 = scalar_select 0, %s6, %s4
  // Predicated region
  $region2: #{unet_forward.33} parent=0 // pred_check
    _
  $region3: #{unet_forward.33} parent=0 // pred_check_branch
    %9 = sbr.rel (0) target = $region5
  $region4: #{unet_forward.33} parent=0 // pred_region
    _
  $region5: #{unet_forward.33} parent=0 // pred_fallthru
    _
  // Predicated region
  $region6: #{unet_forward.33} parent=0 // pred_check
    _
  $region7: #{unet_forward.33} parent=0 // pred_check_branch
    %11 = sbr.rel (0) target = $region9
  $region8: #{unet_forward.33} parent=0 // pred_region
    _
  $region9: #{unet_forward.33} parent=0 // pred_fallthru
    _
  // Predicated region
  $region10: #{unet_forward.33} parent=0 // pred_check
    _
  $region11: #{unet_forward.33} parent=0 // pred_check_branch
    %13 = sbr.rel (0) target = $region13
  $region12: #{unet_forward.33} parent=0 // pred_region
    _
  $region13: #{unet_forward.33} parent=0 // pred_fallthru
    _
  %v15 = vld [vmem:[%s0] sm:$0x3]
  %v16 = vld [vmem:[%s1] sm:$0xff]
  %v17 = vld [vmem:[%s1 + $0x8] sm:$0xf]
  %v18 = vld [vmem:[%s1 + $0xc] sm:$0xff]
  %v19 = vld [vmem:[%s1 + $0x14] sm:$0xf]
  %v20 = vld [vmem:[%s1 + $0x18] sm:$0xff]
  %v21 = vld [vmem:[%s1 + $0x20] sm:$0xf]
  %v22 = vld [vmem:[%s1 + $0x24] sm:$0xff]
  %v23 = vld [vmem:[%s1 + $0x2c] sm:$0xf]
  %v24 = vld [vmem:[%s2] sm:$0xf]
  %26 = vset.pattern.permute.xlu0 0
  %27 = vperm.xlu0 %26, %v24
  %v28 = vpop.permute.xlu0 %27
  %v38 = vunpack.c.l.b16 %v16
  %v39 = vunpack.c.h.b16 %v16
  %v40 = vunpack.c.l.b16 %v17
  %v41 = vunpack.c.l.b16 %v18
  %v42 = vunpack.c.h.b16 %v18
  %v43 = vunpack.c.l.b16 %v19
  %v44 = vunpack.c.l.b16 %v20
  %v45 = vunpack.c.h.b16 %v20
  %v46 = vunpack.c.l.b16 %v21
  %v47 = vunpack.c.l.b16 %v22
  %v48 = vunpack.c.h.b16 %v22
  %v49 = vunpack.c.l.b16 %v23
  %v50 = vpack.c.b16 %v41, %v38
  %v51 = vpack.c.b16 %v42, %v39
  %v52 = vpack.c.b16 %v43, %v40
  %v53 = vpack.c.b16 %v47, %v44
  %v54 = vpack.c.b16 %v48, %v45
  %v55 = vpack.c.b16 %v49, %v46
  %vm62 = vcmask 261120
  %v64 = vsel %vm62, %v15, 0
  %66 = vmatpush.bf16.msra.mxu0 0
  %67 = vmatpush.bf16.msra.mxu0 0
  %68 = vmatpush.bf16.msra.mxu0 0
  %69 = vmatpush.bf16.msra.mxu0 0
  %70 = vmatpush.bf16.msra.mxu0 0
  %71 = vmatpush.bf16.msra.mxu0 0
  %72 = vmatpush.bf16.msra.mxu0 %v53
  %73 = vmatpush.bf16.msra.mxu0 %v50
  %74 = vmatmul.bf16.gmra.mxu0 %v64
  %v75 = vpop.f32.mrf.mxu0
  %v76 = vadd.f32 %v28, %v75
  %v77 = vpop.f32.mrf.mxu0
  %78 = vdwg.mxu0
  %79 = vmatpush.bf16.msra.mxu0 0
  %80 = vmatpush.bf16.msra.mxu0 0
  %81 = vmatpush.bf16.msra.mxu0 0
  %82 = vmatpush.bf16.msra.mxu0 0
  %83 = vmatpush.bf16.msra.mxu0 0
  %84 = vmatpush.bf16.msra.mxu0 0
  %85 = vmatpush.bf16.msra.mxu0 %v54
  %86 = vmatpush.bf16.msra.mxu0 %v51
  %87 = vmatmul.bf16.gmra.mxu0 %v64
  %v88 = vpop.f32.mrf.mxu0
  %v89 = vadd.f32 %v28, %v88
  %v90 = vpop.f32.mrf.mxu0
  %91 = vdwg.mxu0
  %92 = vmatpush.bf16.msra.mxu0 0
  %93 = vmatpush.bf16.msra.mxu0 0
  %94 = vmatpush.bf16.msra.mxu0 0
  %95 = vmatpush.bf16.msra.mxu0 0
  %96 = vmatpush.bf16.msra.mxu0 0
  %97 = vmatpush.bf16.msra.mxu0 0
  %98 = vmatpush.bf16.msra.mxu0 %v55
  %99 = vmatpush.bf16.msra.mxu0 %v52
  %100 = vmatmul.bf16.gmra.mxu0 %v64
  %v101 = vpop.f32.mrf.mxu0
  %v102 = vadd.f32 %v28, %v101
  %v103 = vpop.f32.mrf.mxu0
  %104 = vdwg.mxu0
  %v107 = vrot.slane %v89, 4
  %vm108 = vcmask 1043456
  %v109 = vsel %vm108, %v76, %v107
  %111 = vst [vmem:[%s3] sm:$0xff] %v109
  %vm112 = vcmask 666624
  %113 = vst.msk [vmem:[%s3 + $0x8] sm:$0xf] %vm112, %v102
  // Predicated region
  $region14: #{unet_forward.33} parent=0 // pred_check
    _
  $region15: #{unet_forward.33} parent=0 // pred_check_branch
    %115 = sbr.rel (0) target = $region17
  $region16: #{unet_forward.33} parent=0 // pred_region
    _
  $region17: #{unet_forward.33} parent=0 // pred_fallthru
    _
  // Predicated region
  $region18: #{unet_forward.33} parent=0 // pred_check
    _
  $region19: #{unet_forward.33} parent=0 // pred_check_branch
    %117 = sbr.rel (0) target = $region21
  $region20: #{unet_forward.33} parent=0 // pred_region
    _
  $region21: #{unet_forward.33} parent=0 // pred_fallthru
    _

// kernel: unet_forward.34
$region0: #{unet_forward.34}
  #allocation0 [shape = 'u32[]', space=smem, size = 0x4, offset = 0x4, fixed_abs, tag = 'smem constant byte address 0x4 - core index']
  #allocation1 [shape = 'u32[72,128]{1,0:T(1,128)}', space=vmem, size = 0x9000, scoped, tag = 'internal scratch']
  %s0 = inlined_call_operand.vmem [shape: bf16[4,36], index: 0, kind: input, shape index: {}]
  %s1 = inlined_call_operand.vmem [shape: bf16[36,338], index: 1, kind: input, shape index: {}]
  %s2 = inlined_call_operand.vmem [shape: f32[4,1], index: 2, kind: input, shape index: {}]
  %s3 = inlined_call_operand.vmem [shape: f32[1,338], index: 3, kind: input, shape index: {}]
  %s4 = inlined_call_operand.vmem [shape: f32[4,338], index: 4, kind: output, shape index: {}]
  %s5 = sld [smem:[#allocation0]]
  $region26: #{unet_forward.34} parent=0
    _
  %s7 = ssub.s32 1, %s5
  %s8 = scalar_select 0, %s7, %s5
  // Predicated region
  $region2: #{unet_forward.34} parent=0 // pred_check
    _
  $region3: #{unet_forward.34} parent=0 // pred_check_branch
    %10 = sbr.rel (0) target = $region5
  $region4: #{unet_forward.34} parent=0 // pred_region
    _
  $region5: #{unet_forward.34} parent=0 // pred_fallthru
    _
  // Predicated region
  $region6: #{unet_forward.34} parent=0 // pred_check
    _
  $region7: #{unet_forward.34} parent=0 // pred_check_branch
    %12 = sbr.rel (0) target = $region9
  $region8: #{unet_forward.34} parent=0 // pred_region
    _
  $region9: #{unet_forward.34} parent=0 // pred_fallthru
    _
  // Predicated region
  $region10: #{unet_forward.34} parent=0 // pred_check
    _
  $region11: #{unet_forward.34} parent=0 // pred_check_branch
    %14 = sbr.rel (0) target = $region13
  $region12: #{unet_forward.34} parent=0 // pred_region
    _
  $region13: #{unet_forward.34} parent=0 // pred_fallthru
    _
  // Predicated region
  $region14: #{unet_forward.34} parent=0 // pred_check
    _
  $region15: #{unet_forward.34} parent=0 // pred_check_branch
    %16 = sbr.rel (0) target = $region17
  $region16: #{unet_forward.34} parent=0 // pred_region
    _
  $region17: #{unet_forward.34} parent=0 // pred_fallthru
    _
  %v18 = vld [vmem:[%s0] sm:$0x3]
  %v19 = vld [vmem:[%s1] sm:$0xff]
  %v20 = vld [vmem:[%s1 + $0x8] sm:$0xf]
  %v21 = vld [vmem:[%s1 + $0xc] sm:$0xff]
  %v22 = vld [vmem:[%s1 + $0x14] sm:$0xf]
  %v23 = vld [vmem:[%s1 + $0x18] sm:$0xff]
  %v24 = vld [vmem:[%s1 + $0x20] sm:$0xf]
  %v25 = vld [vmem:[%s1 + $0x24] sm:$0xff]
  %v26 = vld [vmem:[%s1 + $0x2c] sm:$0xf]
  %v27 = vld [vmem:[%s1 + $0x30] sm:$0x33]
  %v28 = vld [vmem:[%s1 + $0x38] sm:$0x3]
  %v29 = vld [vmem:[%s2] sm:$0xf]
  %31 = vset.pattern.permute.xlu0 0
  %32 = vperm.xlu0 %31, %v29
  %v33 = vpop.permute.xlu0 %32
  %v45 = vunpack.c.l.b16 %v19
  %v46 = vunpack.c.h.b16 %v19
  %v47 = vunpack.c.l.b16 %v20
  %v48 = vunpack.c.l.b16 %v21
  %v49 = vunpack.c.h.b16 %v21
  %v50 = vunpack.c.l.b16 %v22
  %v51 = vunpack.c.l.b16 %v23
  %v52 = vunpack.c.h.b16 %v23
  %v53 = vunpack.c.l.b16 %v24
  %v54 = vunpack.c.l.b16 %v25
  %v55 = vunpack.c.h.b16 %v25
  %v56 = vunpack.c.l.b16 %v26
  %v57 = vunpack.c.l.b16 %v27
  %v58 = vunpack.c.h.b16 %v27
  %v59 = vunpack.c.l.b16 %v28
  %v60 = vpack.c.b16 %v48, %v45
  %v61 = vpack.c.b16 %v49, %v46
  %v62 = vpack.c.b16 %v50, %v47
  %v63 = vpack.c.b16 %v54, %v51
  %v64 = vpack.c.b16 %v55, %v52
  %v65 = vpack.c.b16 %v56, %v53
  %v66 = vpack.c.b16 %v57, %v57
  %v67 = vpack.c.b16 %v58, %v58
  %v68 = vpack.c.b16 %v59, %v59
  %vm75 = vcmask 293888
  %v77 = vsel %vm75, %v18, 0
  %vm79 = vcmask 1041408
  %v81 = vsel %vm79, %v66, 0
  %v84 = vsel %vm79, %v67, 0
  %v87 = vsel %vm79, %v68, 0
  %89 = vmatpush.bf16.msra.mxu0 0
  %90 = vmatpush.bf16.msra.mxu0 0
  %91 = vmatpush.bf16.msra.mxu0 0
  %92 = vmatpush.bf16.msra.mxu0 0
  %93 = vmatpush.bf16.msra.mxu0 0
  %94 = vmatpush.bf16.msra.mxu0 %v81
  %95 = vmatpush.bf16.msra.mxu0 %v63
  %96 = vmatpush.bf16.msra.mxu0 %v60
  %97 = vmatmul.bf16.gmra.mxu0 %v77
  %v98 = vpop.f32.mrf.mxu0
  %v99 = vadd.f32 %v33, %v98
  %v100 = vpop.f32.mrf.mxu0
  %101 = vdwg.mxu0
  %102 = vmatpush.bf16.msra.mxu0 0
  %103 = vmatpush.bf16.msra.mxu0 0
  %104 = vmatpush.bf16.msra.mxu0 0
  %105 = vmatpush.bf16.msra.mxu0 0
  %106 = vmatpush.bf16.msra.mxu0 0
  %107 = vmatpush.bf16.msra.mxu0 %v84
  %108 = vmatpush.bf16.msra.mxu0 %v64
  %109 = vmatpush.bf16.msra.mxu0 %v61
  %110 = vmatmul.bf16.gmra.mxu0 %v77
  %v111 = vpop.f32.mrf.mxu0
  %v112 = vadd.f32 %v33, %v111
  %v113 = vpop.f32.mrf.mxu0
  %114 = vdwg.mxu0
  %115 = vmatpush.bf16.msra.mxu0 0
  %116 = vmatpush.bf16.msra.mxu0 0
  %117 = vmatpush.bf16.msra.mxu0 0
  %118 = vmatpush.bf16.msra.mxu0 0
  %119 = vmatpush.bf16.msra.mxu0 0
  %120 = vmatpush.bf16.msra.mxu0 %v87
  %121 = vmatpush.bf16.msra.mxu0 %v65
  %122 = vmatpush.bf16.msra.mxu0 %v62
  %123 = vmatmul.bf16.gmra.mxu0 %v77
  %v124 = vpop.f32.mrf.mxu0
  %v125 = vadd.f32 %v33, %v124
  %v126 = vpop.f32.mrf.mxu0
  %127 = vdwg.mxu0
  %v128 = vsub.f32 0.0, %v99
  %v129 = vsub.f32 0.0, %v112
  %v130 = vsub.f32 0.0, %v125
  %v131 = vmul.f32 %v128, 1.442695
  %v132 = vpow.pop %v131
  %v133 = vmul.f32 %v129, 1.442695
  %v134 = vpow.pop %v133
  %v135 = vmul.f32 %v130, 1.442695
  %v136 = vpow.pop %v135
  %v137 = vadd.f32 %v132, 1.0
  %v138 = vadd.f32 %v134, 1.0
  %v139 = vadd.f32 %v136, 1.0
  %v140 = vrcp.pop %v137
  %v141 = vrcp.pop %v138
  %v142 = vrcp.pop %v139
  %v143 = vmul.f32 %v99, %v140
  %v144 = vmul.f32 %v112, %v141
  %v145 = vmul.f32 %v125, %v142
  %v146 = vld [vmem:[%s3] sm:$0x7]
  %v148 = vperm.slane %v146, 0
  %v149 = vperm.slane %v146, 1
  %v150 = vperm.slane %v146, 2
  %v154 = vadd.f32 %v143, %v148
  %v155 = vadd.f32 %v144, %v149
  %v156 = vadd.f32 %v145, %v150
  %v159 = vrot.slane %v155, 4
  %vm160 = vcmask 1043456
  %v161 = vsel %vm160, %v154, %v159
  %163 = vst [vmem:[%s4] sm:$0xff] %v161
  %vm164 = vcmask 666624
  %165 = vst.msk [vmem:[%s4 + $0x8] sm:$0xf] %vm164, %v156
  // Predicated region
  $region18: #{unet_forward.34} parent=0 // pred_check
    _
  $region19: #{unet_forward.34} parent=0 // pred_check_branch
    %167 = sbr.rel (0) target = $region21
  $region20: #{unet_forward.34} parent=0 // pred_region
    _
  $region21: #{unet_forward.34} parent=0 // pred_fallthru
    _
  // Predicated region
  $region22: #{unet_forward.34} parent=0 // pred_check
    _
  $region23: #{unet_forward.34} parent=0 // pred_check_branch
    %169 = sbr.rel (0) target = $region25
  $region24: #{unet_forward.34} parent=0 // pred_region
    _
  $region25: #{unet_forward.34} parent=0 // pred_fallthru
    _

// kernel: unet_forward.35
$region0: #{unet_forward.35}
  #allocation0 [shape = 'u32[]', space=smem, size = 0x4, offset = 0x4, fixed_abs, tag = 'smem constant byte address 0x4 - core index']
  #allocation1 [shape = 'u32[72,128]{1,0:T(1,128)}', space=vmem, size = 0x9000, scoped, tag = 'internal scratch']
  %s0 = inlined_call_operand.vmem [shape: bf16[4,36], index: 0, kind: input, shape index: {}]
  %s1 = inlined_call_operand.vmem [shape: bf16[36,338], index: 1, kind: input, shape index: {}]
  %s2 = inlined_call_operand.vmem [shape: f32[4,1], index: 2, kind: input, shape index: {}]
  %s3 = inlined_call_operand.vmem [shape: f32[4,338], index: 3, kind: input, shape index: {}]
  %s4 = inlined_call_operand.vmem [shape: f32[4,338], index: 4, kind: output, shape index: {}]
  %s5 = sld [smem:[#allocation0]]
  $region26: #{unet_forward.35} parent=0
    _
  %s7 = ssub.s32 1, %s5
  %s8 = scalar_select 0, %s7, %s5
  // Predicated region
  $region2: #{unet_forward.35} parent=0 // pred_check
    _
  $region3: #{unet_forward.35} parent=0 // pred_check_branch
    %10 = sbr.rel (0) target = $region5
  $region4: #{unet_forward.35} parent=0 // pred_region
    _
  $region5: #{unet_forward.35} parent=0 // pred_fallthru
    _
  // Predicated region
  $region6: #{unet_forward.35} parent=0 // pred_check
    _
  $region7: #{unet_forward.35} parent=0 // pred_check_branch
    %12 = sbr.rel (0) target = $region9
  $region8: #{unet_forward.35} parent=0 // pred_region
    _
  $region9: #{unet_forward.35} parent=0 // pred_fallthru
    _
  // Predicated region
  $region10: #{unet_forward.35} parent=0 // pred_check
    _
  $region11: #{unet_forward.35} parent=0 // pred_check_branch
    %14 = sbr.rel (0) target = $region13
  $region12: #{unet_forward.35} parent=0 // pred_region
    _
  $region13: #{unet_forward.35} parent=0 // pred_fallthru
    _
  // Predicated region
  $region14: #{unet_forward.35} parent=0 // pred_check
    _
  $region15: #{unet_forward.35} parent=0 // pred_check_branch
    %16 = sbr.rel (0) target = $region17
  $region16: #{unet_forward.35} parent=0 // pred_region
    _
  $region17: #{unet_forward.35} parent=0 // pred_fallthru
    _
  %v18 = vld [vmem:[%s0] sm:$0x3]
  %v19 = vld [vmem:[%s1] sm:$0xff]
  %v20 = vld [vmem:[%s1 + $0x8] sm:$0xf]
  %v21 = vld [vmem:[%s1 + $0xc] sm:$0xff]
  %v22 = vld [vmem:[%s1 + $0x14] sm:$0xf]
  %v23 = vld [vmem:[%s1 + $0x18] sm:$0xff]
  %v24 = vld [vmem:[%s1 + $0x20] sm:$0xf]
  %v25 = vld [vmem:[%s1 + $0x24] sm:$0xff]
  %v26 = vld [vmem:[%s1 + $0x2c] sm:$0xf]
  %v27 = vld [vmem:[%s1 + $0x30] sm:$0x33]
  %v28 = vld [vmem:[%s1 + $0x38] sm:$0x3]
  %v29 = vld [vmem:[%s2] sm:$0xf]
  %31 = vset.pattern.permute.xlu0 0
  %32 = vperm.xlu0 %31, %v29
  %v33 = vpop.permute.xlu0 %32
  %v45 = vunpack.c.l.b16 %v19
  %v46 = vunpack.c.h.b16 %v19
  %v47 = vunpack.c.l.b16 %v20
  %v48 = vunpack.c.l.b16 %v21
  %v49 = vunpack.c.h.b16 %v21
  %v50 = vunpack.c.l.b16 %v22
  %v51 = vunpack.c.l.b16 %v23
  %v52 = vunpack.c.h.b16 %v23
  %v53 = vunpack.c.l.b16 %v24
  %v54 = vunpack.c.l.b16 %v25
  %v55 = vunpack.c.h.b16 %v25
  %v56 = vunpack.c.l.b16 %v26
  %v57 = vunpack.c.l.b16 %v27
  %v58 = vunpack.c.h.b16 %v27
  %v59 = vunpack.c.l.b16 %v28
  %v60 = vpack.c.b16 %v48, %v45
  %v61 = vpack.c.b16 %v49, %v46
  %v62 = vpack.c.b16 %v50, %v47
  %v63 = vpack.c.b16 %v54, %v51
  %v64 = vpack.c.b16 %v55, %v52
  %v65 = vpack.c.b16 %v56, %v53
  %v66 = vpack.c.b16 %v57, %v57
  %v67 = vpack.c.b16 %v58, %v58
  %v68 = vpack.c.b16 %v59, %v59
  %vm75 = vcmask 293888
  %v77 = vsel %vm75, %v18, 0
  %vm79 = vcmask 1041408
  %v81 = vsel %vm79, %v66, 0
  %v84 = vsel %vm79, %v67, 0
  %v87 = vsel %vm79, %v68, 0
  %89 = vmatpush.bf16.msra.mxu0 0
  %90 = vmatpush.bf16.msra.mxu0 0
  %91 = vmatpush.bf16.msra.mxu0 0
  %92 = vmatpush.bf16.msra.mxu0 0
  %93 = vmatpush.bf16.msra.mxu0 0
  %94 = vmatpush.bf16.msra.mxu0 %v81
  %95 = vmatpush.bf16.msra.mxu0 %v63
  %96 = vmatpush.bf16.msra.mxu0 %v60
  %97 = vmatmul.bf16.gmra.mxu0 %v77
  %v98 = vpop.f32.mrf.mxu0
  %v99 = vadd.f32 %v33, %v98
  %v100 = vpop.f32.mrf.mxu0
  %101 = vdwg.mxu0
  %102 = vmatpush.bf16.msra.mxu0 0
  %103 = vmatpush.bf16.msra.mxu0 0
  %104 = vmatpush.bf16.msra.mxu0 0
  %105 = vmatpush.bf16.msra.mxu0 0
  %106 = vmatpush.bf16.msra.mxu0 0
  %107 = vmatpush.bf16.msra.mxu0 %v84
  %108 = vmatpush.bf16.msra.mxu0 %v64
  %109 = vmatpush.bf16.msra.mxu0 %v61
  %110 = vmatmul.bf16.gmra.mxu0 %v77
  %v111 = vpop.f32.mrf.mxu0
  %v112 = vadd.f32 %v33, %v111
  %v113 = vpop.f32.mrf.mxu0
  %114 = vdwg.mxu0
  %115 = vmatpush.bf16.msra.mxu0 0
  %116 = vmatpush.bf16.msra.mxu0 0
  %117 = vmatpush.bf16.msra.mxu0 0
  %118 = vmatpush.bf16.msra.mxu0 0
  %119 = vmatpush.bf16.msra.mxu0 0
  %120 = vmatpush.bf16.msra.mxu0 %v87
  %121 = vmatpush.bf16.msra.mxu0 %v65
  %122 = vmatpush.bf16.msra.mxu0 %v62
  %123 = vmatmul.bf16.gmra.mxu0 %v77
  %v124 = vpop.f32.mrf.mxu0
  %v125 = vadd.f32 %v33, %v124
  %v126 = vpop.f32.mrf.mxu0
  %127 = vdwg.mxu0
  %v128 = vsub.f32 0.0, %v99
  %v129 = vsub.f32 0.0, %v112
  %v130 = vsub.f32 0.0, %v125
  %v131 = vmul.f32 %v128, 1.442695
  %v132 = vpow.pop %v131
  %v133 = vmul.f32 %v129, 1.442695
  %v134 = vpow.pop %v133
  %v135 = vmul.f32 %v130, 1.442695
  %v136 = vpow.pop %v135
  %v137 = vadd.f32 %v132, 1.0
  %v138 = vadd.f32 %v134, 1.0
  %v139 = vadd.f32 %v136, 1.0
  %v140 = vrcp.pop %v137
  %v141 = vrcp.pop %v138
  %v142 = vrcp.pop %v139
  %v143 = vmul.f32 %v99, %v140
  %v144 = vmul.f32 %v112, %v141
  %v145 = vmul.f32 %v125, %v142
  %v146 = vld [vmem:[%s3] sm:$0xff]
  %v147 = vld [vmem:[%s3 + $0x8] sm:$0xf]
  %150 = vst [vmem:[#allocation1] ss:$2 sm:$0xff] %v146
  %s151 = scalar_lea.vmem [#allocation1], 16
  %152 = vst [vmem:[%s151] ss:$2 sm:$0xff] %v147
  %v153 = vld.sshfl [vmem:[#allocation1] sm:$0xff pattern:$0x75316420]
  %v154 = vld.sshfl [vmem:[#allocation1 + $0x8] sm:$0xff pattern:$0x75316420]
  %v155 = vld.sshfl [vmem:[#allocation1 + $0x10] sm:$0xff pattern:$0x75316420]
  %v159 = vadd.f32 %v143, %v153
  %v160 = vadd.f32 %v144, %v154
  %v161 = vadd.f32 %v145, %v155
  %v164 = vrot.slane %v160, 4
  %vm165 = vcmask 1043456
  %v166 = vsel %vm165, %v159, %v164
  %168 = vst [vmem:[%s4] sm:$0xff] %v166
  %vm169 = vcmask 666624
  %170 = vst.msk [vmem:[%s4 + $0x8] sm:$0xf] %vm169, %v161
  // Predicated region
  $region18: #{unet_forward.35} parent=0 // pred_check
    _
  $region19: #{unet_forward.35} parent=0 // pred_check_branch
    %172 = sbr.rel (0) target = $region21
  $region20: #{unet_forward.35} parent=0 // pred_region
    _
  $region21: #{unet_forward.35} parent=0 // pred_fallthru
    _
  // Predicated region
  $region22: #{unet_forward.35} parent=0 // pred_check
    _
  $region23: #{unet_forward.35} parent=0 // pred_check_branch
    %174 = sbr.rel (0) target = $region25
  $region24: #{unet_forward.35} parent=0 // pred_region
    _
  $region25: #{unet_forward.35} parent=0 // pred_fallthru
    _

// kernel: unet_forward.36
$region0: #{unet_forward.36}
  #allocation0 [shape = 'u32[]', space=smem, size = 0x4, offset = 0x4, fixed_abs, tag = 'smem constant byte address 0x4 - core index']
  #allocation1 [shape = 'u32[72,128]{1,0:T(1,128)}', space=vmem, size = 0x9000, scoped, tag = 'internal scratch']
  #allocation2 [shape = 'f32[1,1]{1,0:T(1,128)S(1)}', space=vmem, size = 0x200, scoped, tag = 'scoped memory for unet_forward.36']
  %s0 = inlined_call_operand.vmem [shape: bf16[1,100], index: 0, kind: input, shape index: {}]
  %s1 = inlined_call_operand.vmem [shape: bf16[100,1568], index: 1, kind: input, shape index: {}]
  %s2 = inlined_call_operand.<no memory space> [shape: f32[1,1], index: 2, kind: input, shape index: {}]
  %s3 = inlined_call_operand.vmem [shape: f32[1,1568], index: 3, kind: output, shape index: {}]
  %s4 = sld [smem:[#allocation0]]
  $region22: #{unet_forward.36} parent=0
    _
  %s6 = ssub.s32 1, %s4
  %s7 = scalar_select 0, %s6, %s4
  %v8 = vstv %s2
  %9 = vst [vmem:[#allocation2] sm:$0x1] %v8
  // Predicated region
  $region2: #{unet_forward.36} parent=0 // pred_check
    _
  $region3: #{unet_forward.36} parent=0 // pred_check_branch
    %11 = sbr.rel (0) target = $region5
  $region4: #{unet_forward.36} parent=0 // pred_region
    _
  $region5: #{unet_forward.36} parent=0 // pred_fallthru
    _
  // Predicated region
  $region6: #{unet_forward.36} parent=0 // pred_check
    _
  $region7: #{unet_forward.36} parent=0 // pred_check_branch
    %13 = sbr.rel (0) target = $region9
  $region8: #{unet_forward.36} parent=0 // pred_region
    _
  $region9: #{unet_forward.36} parent=0 // pred_fallthru
    _
  // Predicated region
  $region10: #{unet_forward.36} parent=0 // pred_check
    _
  $region11: #{unet_forward.36} parent=0 // pred_check_branch
    %15 = sbr.rel (0) target = $region13
  $region12: #{unet_forward.36} parent=0 // pred_region
    _
  $region13: #{unet_forward.36} parent=0 // pred_fallthru
    _
  %v17 = vld [vmem:[%s0] sm:$0x1]
  %v18 = vld [vmem:[%s1] sm:$0xff]
  %v19 = vld [vmem:[%s1 + $0x8] sm:$0xff]
  %v20 = vld [vmem:[%s1 + $0x10] sm:$0xff]
  %v21 = vld [vmem:[%s1 + $0x18] sm:$0xff]
  %v22 = vld [vmem:[%s1 + $0x20] sm:$0xff]
  %v23 = vld [vmem:[%s1 + $0x28] sm:$0xff]
  %v24 = vld [vmem:[%s1 + $0x30] sm:$0xf]
  %v25 = vld [vmem:[%s1 + $0x34] sm:$0xff]
  %v26 = vld [vmem:[%s1 + $0x3c] sm:$0xff]
  %v27 = vld [vmem:[%s1 + $0x44] sm:$0xff]
  %v28 = vld [vmem:[%s1 + $0x4c] sm:$0xff]
  %v29 = vld [vmem:[%s1 + $0x54] sm:$0xff]
  %v30 = vld [vmem:[%s1 + $0x5c] sm:$0xff]
  %v31 = vld [vmem:[%s1 + $0x64] sm:$0xf]
  %v32 = vld [vmem:[%s1 + $0x68] sm:$0xff]
  %v33 = vld [vmem:[%s1 + $0x70] sm:$0xff]
  %v34 = vld [vmem:[%s1 + $0x78] sm:$0xff]
  %v35 = vld [vmem:[%s1 + $0x80] sm:$0xff]
  %v36 = vld [vmem:[%s1 + $0x88] sm:$0xff]
  %v37 = vld [vmem:[%s1 + $0x90] sm:$0xff]
  %v38 = vld [vmem:[%s1 + $0x98] sm:$0xf]
  %v39 = vld [vmem:[%s1 + $0x9c] sm:$0xff]
  %v40 = vld [vmem:[%s1 + $0xa4] sm:$0xff]
  %v41 = vld [vmem:[%s1 + $0xac] sm:$0xff]
  %v42 = vld [vmem:[%s1 + $0xb4] sm:$0xff]
  %v43 = vld [vmem:[%s1 + $0xbc] sm:$0xff]
  %v44 = vld [vmem:[%s1 + $0xc4] sm:$0xff]
  %v45 = vld [vmem:[%s1 + $0xcc] sm:$0xf]
  %v46 = vld [vmem:[%s1 + $0xd0] sm:$0xff]
  %v47 = vld [vmem:[%s1 + $0xd8] sm:$0xff]
  %v48 = vld [vmem:[%s1 + $0xe0] sm:$0xff]
  %v49 = vld [vmem:[%s1 + $0xe8] sm:$0xff]
  %v50 = vld [vmem:[%s1 + $0xf0] sm:$0xff]
  %v51 = vld [vmem:[%s1 + $0xf8] sm:$0xff]
  %v52 = vld [vmem:[%s1 + $0x100] sm:$0xf]
  %v53 = vld [vmem:[%s1 + $0x104] sm:$0xff]
  %v54 = vld [vmem:[%s1 + $0x10c] sm:$0xff]
  %v55 = vld [vmem:[%s1 + $0x114] sm:$0xff]
  %v56 = vld [vmem:[%s1 + $0x11c] sm:$0xff]
  %v57 = vld [vmem:[%s1 + $0x124] sm:$0xff]
  %v58 = vld [vmem:[%s1 + $0x12c] sm:$0xff]
  %v59 = vld [vmem:[%s1 + $0x134] sm:$0xf]
  %v60 = vld [vmem:[%s1 + $0x138] sm:$0xff]
  %v61 = vld [vmem:[%s1 + $0x140] sm:$0xff]
  %v62 = vld [vmem:[%s1 + $0x148] sm:$0xff]
  %v63 = vld [vmem:[%s1 + $0x150] sm:$0xff]
  %v64 = vld [vmem:[%s1 + $0x158] sm:$0xff]
  %v65 = vld [vmem:[%s1 + $0x160] sm:$0xff]
  %v66 = vld [vmem:[%s1 + $0x168] sm:$0xf]
  %v67 = vld [vmem:[%s1 + $0x16c] sm:$0xff]
  %v68 = vld [vmem:[%s1 + $0x174] sm:$0xff]
  %v69 = vld [vmem:[%s1 + $0x17c] sm:$0xff]
  %v70 = vld [vmem:[%s1 + $0x184] sm:$0xff]
  %v71 = vld [vmem:[%s1 + $0x18c] sm:$0xff]
  %v72 = vld [vmem:[%s1 + $0x194] sm:$0xff]
  %v73 = vld [vmem:[%s1 + $0x19c] sm:$0xf]
  %v74 = vld [vmem:[%s1 + $0x1a0] sm:$0xff]
  %v75 = vld [vmem:[%s1 + $0x1a8] sm:$0xff]
  %v76 = vld [vmem:[%s1 + $0x1b0] sm:$0xff]
  %v77 = vld [vmem:[%s1 + $0x1b8] sm:$0xff]
  %v78 = vld [vmem:[%s1 + $0x1c0] sm:$0xff]
  %v79 = vld [vmem:[%s1 + $0x1c8] sm:$0xff]
  %v80 = vld [vmem:[%s1 + $0x1d0] sm:$0xf]
  %v81 = vld [vmem:[%s1 + $0x1d4] sm:$0xff]
  %v82 = vld [vmem:[%s1 + $0x1dc] sm:$0xff]
  %v83 = vld [vmem:[%s1 + $0x1e4] sm:$0xff]
  %v84 = vld [vmem:[%s1 + $0x1ec] sm:$0xff]
  %v85 = vld [vmem:[%s1 + $0x1f4] sm:$0xff]
  %v86 = vld [vmem:[%s1 + $0x1fc] sm:$0xff]
  %v87 = vld [vmem:[%s1 + $0x204] sm:$0xf]
  %v88 = vld [vmem:[%s1 + $0x208] sm:$0xff]
  %v89 = vld [vmem:[%s1 + $0x210] sm:$0xff]
  %v90 = vld [vmem:[%s1 + $0x218] sm:$0xff]
  %v91 = vld [vmem:[%s1 + $0x220] sm:$0xff]
  %v92 = vld [vmem:[%s1 + $0x228] sm:$0xff]
  %v93 = vld [vmem:[%s1 + $0x230] sm:$0xff]
  %v94 = vld [vmem:[%s1 + $0x238] sm:$0xf]
  %v95 = vld [vmem:[%s1 + $0x23c] sm:$0xff]
  %v96 = vld [vmem:[%s1 + $0x244] sm:$0xff]
  %v97 = vld [vmem:[%s1 + $0x24c] sm:$0xff]
  %v98 = vld [vmem:[%s1 + $0x254] sm:$0xff]
  %v99 = vld [vmem:[%s1 + $0x25c] sm:$0xff]
  %v100 = vld [vmem:[%s1 + $0x264] sm:$0xff]
  %v101 = vld [vmem:[%s1 + $0x26c] sm:$0xf]
  %v102 = vld [vmem:[%s1 + $0x270] sm:$0x33]
  %v103 = vld [vmem:[%s1 + $0x278] sm:$0x33]
  %v104 = vld [vmem:[%s1 + $0x280] sm:$0x33]
  %v105 = vld [vmem:[%s1 + $0x288] sm:$0x33]
  %v106 = vld [vmem:[%s1 + $0x290] sm:$0x33]
  %v107 = vld [vmem:[%s1 + $0x298] sm:$0x33]
  %v108 = vld [vmem:[%s1 + $0x2a0] sm:$0x3]
  %v109 = vld [vmem:[#allocation2] sm:$0x1]
  %111 = vset.pattern.permute.xlu0 0
  %112 = vperm.xlu0 %111, %v109
  %v113 = vpop.permute.xlu0 %112
  %v115 = vperm.slane %v113, 0
  %v207 = vunpack.c.l.b16 %v18
  %v208 = vunpack.c.h.b16 %v18
  %v209 = vunpack.c.l.b16 %v19
  %v210 = vunpack.c.h.b16 %v19
  %v211 = vunpack.c.l.b16 %v20
  %v212 = vunpack.c.h.b16 %v20
  %v213 = vunpack.c.l.b16 %v21
  %v214 = vunpack.c.h.b16 %v21
  %v215 = vunpack.c.l.b16 %v22
  %v216 = vunpack.c.h.b16 %v22
  %v217 = vunpack.c.l.b16 %v23
  %v218 = vunpack.c.h.b16 %v23
  %v219 = vunpack.c.l.b16 %v24
  %v220 = vunpack.c.l.b16 %v25
  %v221 = vunpack.c.h.b16 %v25
  %v222 = vunpack.c.l.b16 %v26
  %v223 = vunpack.c.h.b16 %v26
  %v224 = vunpack.c.l.b16 %v27
  %v225 = vunpack.c.h.b16 %v27
  %v226 = vunpack.c.l.b16 %v28
  %v227 = vunpack.c.h.b16 %v28
  %v228 = vunpack.c.l.b16 %v29
  %v229 = vunpack.c.h.b16 %v29
  %v230 = vunpack.c.l.b16 %v30
  %v231 = vunpack.c.h.b16 %v30
  %v232 = vunpack.c.l.b16 %v31
  %v233 = vunpack.c.l.b16 %v32
  %v234 = vunpack.c.h.b16 %v32
  %v235 = vunpack.c.l.b16 %v33
  %v236 = vunpack.c.h.b16 %v33
  %v237 = vunpack.c.l.b16 %v34
  %v238 = vunpack.c.h.b16 %v34
  %v239 = vunpack.c.l.b16 %v35
  %v240 = vunpack.c.h.b16 %v35
  %v241 = vunpack.c.l.b16 %v36
  %v242 = vunpack.c.h.b16 %v36
  %v243 = vunpack.c.l.b16 %v37
  %v244 = vunpack.c.h.b16 %v37
  %v245 = vunpack.c.l.b16 %v38
  %v246 = vunpack.c.l.b16 %v39
  %v247 = vunpack.c.h.b16 %v39
  %v248 = vunpack.c.l.b16 %v40
  %v249 = vunpack.c.h.b16 %v40
  %v250 = vunpack.c.l.b16 %v41
  %v251 = vunpack.c.h.b16 %v41
  %v252 = vunpack.c.l.b16 %v42
  %v253 = vunpack.c.h.b16 %v42
  %v254 = vunpack.c.l.b16 %v43
  %v255 = vunpack.c.h.b16 %v43
  %v256 = vunpack.c.l.b16 %v44
  %v257 = vunpack.c.h.b16 %v44
  %v258 = vunpack.c.l.b16 %v45
  %v259 = vunpack.c.l.b16 %v46
  %v260 = vunpack.c.h.b16 %v46
  %v261 = vunpack.c.l.b16 %v47
  %v262 = vunpack.c.h.b16 %v47
  %v263 = vunpack.c.l.b16 %v48
  %v264 = vunpack.c.h.b16 %v48
  %v265 = vunpack.c.l.b16 %v49
  %v266 = vunpack.c.h.b16 %v49
  %v267 = vunpack.c.l.b16 %v50
  %v268 = vunpack.c.h.b16 %v50
  %v269 = vunpack.c.l.b16 %v51
  %v270 = vunpack.c.h.b16 %v51
  %v271 = vunpack.c.l.b16 %v52
  %v272 = vunpack.c.l.b16 %v53
  %v273 = vunpack.c.h.b16 %v53
  %v274 = vunpack.c.l.b16 %v54
  %v275 = vunpack.c.h.b16 %v54
  %v276 = vunpack.c.l.b16 %v55
  %v277 = vunpack.c.h.b16 %v55
  %v278 = vunpack.c.l.b16 %v56
  %v279 = vunpack.c.h.b16 %v56
  %v280 = vunpack.c.l.b16 %v57
  %v281 = vunpack.c.h.b16 %v57
  %v282 = vunpack.c.l.b16 %v58
  %v283 = vunpack.c.h.b16 %v58
  %v284 = vunpack.c.l.b16 %v59
  %v285 = vunpack.c.l.b16 %v60
  %v286 = vunpack.c.h.b16 %v60
  %v287 = vunpack.c.l.b16 %v61
  %v288 = vunpack.c.h.b16 %v61
  %v289 = vunpack.c.l.b16 %v62
  %v290 = vunpack.c.h.b16 %v62
  %v291 = vunpack.c.l.b16 %v63
  %v292 = vunpack.c.h.b16 %v63
  %v293 = vunpack.c.l.b16 %v64
  %v294 = vunpack.c.h.b16 %v64
  %v295 = vunpack.c.l.b16 %v65
  %v296 = vunpack.c.h.b16 %v65
  %v297 = vunpack.c.l.b16 %v66
  %v298 = vunpack.c.l.b16 %v67
  %v299 = vunpack.c.h.b16 %v67
  %v300 = vunpack.c.l.b16 %v68
  %v301 = vunpack.c.h.b16 %v68
  %v302 = vunpack.c.l.b16 %v69
  %v303 = vunpack.c.h.b16 %v69
  %v304 = vunpack.c.l.b16 %v70
  %v305 = vunpack.c.h.b16 %v70
  %v306 = vunpack.c.l.b16 %v71
  %v307 = vunpack.c.h.b16 %v71
  %v308 = vunpack.c.l.b16 %v72
  %v309 = vunpack.c.h.b16 %v72
  %v310 = vunpack.c.l.b16 %v73
  %v311 = vunpack.c.l.b16 %v74
  %v312 = vunpack.c.h.b16 %v74
  %v313 = vunpack.c.l.b16 %v75
  %v314 = vunpack.c.h.b16 %v75
  %v315 = vunpack.c.l.b16 %v76
  %v316 = vunpack.c.h.b16 %v76
  %v317 = vunpack.c.l.b16 %v77
  %v318 = vunpack.c.h.b16 %v77
  %v319 = vunpack.c.l.b16 %v78
  %v320 = vunpack.c.h.b16 %v78
  %v321 = vunpack.c.l.b16 %v79
  %v322 = vunpack.c.h.b16 %v79
  %v323 = vunpack.c.l.b16 %v80
  %v324 = vunpack.c.l.b16 %v81
  %v325 = vunpack.c.h.b16 %v81
  %v326 = vunpack.c.l.b16 %v82
  %v327 = vunpack.c.h.b16 %v82
  %v328 = vunpack.c.l.b16 %v83
  %v329 = vunpack.c.h.b16 %v83
  %v330 = vunpack.c.l.b16 %v84
  %v331 = vunpack.c.h.b16 %v84
  %v332 = vunpack.c.l.b16 %v85
  %v333 = vunpack.c.h.b16 %v85
  %v334 = vunpack.c.l.b16 %v86
  %v335 = vunpack.c.h.b16 %v86
  %v336 = vunpack.c.l.b16 %v87
  %v337 = vunpack.c.l.b16 %v88
  %v338 = vunpack.c.h.b16 %v88
  %v339 = vunpack.c.l.b16 %v89
  %v340 = vunpack.c.h.b16 %v89
  %v341 = vunpack.c.l.b16 %v90
  %v342 = vunpack.c.h.b16 %v90
  %v343 = vunpack.c.l.b16 %v91
  %v344 = vunpack.c.h.b16 %v91
  %v345 = vunpack.c.l.b16 %v92
  %v346 = vunpack.c.h.b16 %v92
  %v347 = vunpack.c.l.b16 %v93
  %v348 = vunpack.c.h.b16 %v93
  %v349 = vunpack.c.l.b16 %v94
  %v350 = vunpack.c.l.b16 %v95
  %v351 = vunpack.c.h.b16 %v95
  %v352 = vunpack.c.l.b16 %v96
  %v353 = vunpack.c.h.b16 %v96
  %v354 = vunpack.c.l.b16 %v97
  %v355 = vunpack.c.h.b16 %v97
  %v356 = vunpack.c.l.b16 %v98
  %v357 = vunpack.c.h.b16 %v98
  %v358 = vunpack.c.l.b16 %v99
  %v359 = vunpack.c.h.b16 %v99
  %v360 = vunpack.c.l.b16 %v100
  %v361 = vunpack.c.h.b16 %v100
  %v362 = vunpack.c.l.b16 %v101
  %v363 = vunpack.c.l.b16 %v102
  %v364 = vunpack.c.h.b16 %v102
  %v365 = vunpack.c.l.b16 %v103
  %v366 = vunpack.c.h.b16 %v103
  %v367 = vunpack.c.l.b16 %v104
  %v368 = vunpack.c.h.b16 %v104
  %v369 = vunpack.c.l.b16 %v105
  %v370 = vunpack.c.h.b16 %v105
  %v371 = vunpack.c.l.b16 %v106
  %v372 = vunpack.c.h.b16 %v106
  %v373 = vunpack.c.l.b16 %v107
  %v374 = vunpack.c.h.b16 %v107
  %v375 = vunpack.c.l.b16 %v108
  %v376 = vpack.c.b16 %v220, %v207
  %v377 = vpack.c.b16 %v221, %v208
  %v378 = vpack.c.b16 %v222, %v209
  %v379 = vpack.c.b16 %v223, %v210
  %v380 = vpack.c.b16 %v224, %v211
  %v381 = vpack.c.b16 %v225, %v212
  %v382 = vpack.c.b16 %v226, %v213
  %v383 = vpack.c.b16 %v227, %v214
  %v384 = vpack.c.b16 %v228, %v215
  %v385 = vpack.c.b16 %v229, %v216
  %v386 = vpack.c.b16 %v230, %v217
  %v387 = vpack.c.b16 %v231, %v218
  %v388 = vpack.c.b16 %v232, %v219
  %v389 = vpack.c.b16 %v246, %v233
  %v390 = vpack.c.b16 %v247, %v234
  %v391 = vpack.c.b16 %v248, %v235
  %v392 = vpack.c.b16 %v249, %v236
  %v393 = vpack.c.b16 %v250, %v237
  %v394 = vpack.c.b16 %v251, %v238
  %v395 = vpack.c.b16 %v252, %v239
  %v396 = vpack.c.b16 %v253, %v240
  %v397 = vpack.c.b16 %v254, %v241
  %v398 = vpack.c.b16 %v255, %v242
  %v399 = vpack.c.b16 %v256, %v243
  %v400 = vpack.c.b16 %v257, %v244
  %v401 = vpack.c.b16 %v258, %v245
  %v402 = vpack.c.b16 %v272, %v259
  %v403 = vpack.c.b16 %v273, %v260
  %v404 = vpack.c.b16 %v274, %v261
  %v405 = vpack.c.b16 %v275, %v262
  %v406 = vpack.c.b16 %v276, %v263
  %v407 = vpack.c.b16 %v277, %v264
  %v408 = vpack.c.b16 %v278, %v265
  %v409 = vpack.c.b16 %v279, %v266
  %v410 = vpack.c.b16 %v280, %v267
  %v411 = vpack.c.b16 %v281, %v268
  %v412 = vpack.c.b16 %v282, %v269
  %v413 = vpack.c.b16 %v283, %v270
  %v414 = vpack.c.b16 %v284, %v271
  %v415 = vpack.c.b16 %v298, %v285
  %v416 = vpack.c.b16 %v299, %v286
  %v417 = vpack.c.b16 %v300, %v287
  %v418 = vpack.c.b16 %v301, %v288
  %v419 = vpack.c.b16 %v302, %v289
  %v420 = vpack.c.b16 %v303, %v290
  %v421 = vpack.c.b16 %v304, %v291
  %v422 = vpack.c.b16 %v305, %v292
  %v423 = vpack.c.b16 %v306, %v293
  %v424 = vpack.c.b16 %v307, %v294
  %v425 = vpack.c.b16 %v308, %v295
  %v426 = vpack.c.b16 %v309, %v296
  %v427 = vpack.c.b16 %v310, %v297
  %v428 = vpack.c.b16 %v324, %v311
  %v429 = vpack.c.b16 %v325, %v312
  %v430 = vpack.c.b16 %v326, %v313
  %v431 = vpack.c.b16 %v327, %v314
  %v432 = vpack.c.b16 %v328, %v315
  %v433 = vpack.c.b16 %v329, %v316
  %v434 = vpack.c.b16 %v330, %v317
  %v435 = vpack.c.b16 %v331, %v318
  %v436 = vpack.c.b16 %v332, %v319
  %v437 = vpack.c.b16 %v333, %v320
  %v438 = vpack.c.b16 %v334, %v321
  %v439 = vpack.c.b16 %v335, %v322
  %v440 = vpack.c.b16 %v336, %v323
  %v441 = vpack.c.b16 %v350, %v337
  %v442 = vpack.c.b16 %v351, %v338
  %v443 = vpack.c.b16 %v352, %v339
  %v444 = vpack.c.b16 %v353, %v340
  %v445 = vpack.c.b16 %v354, %v341
  %v446 = vpack.c.b16 %v355, %v342
  %v447 = vpack.c.b16 %v356, %v343
  %v448 = vpack.c.b16 %v357, %v344
  %v449 = vpack.c.b16 %v358, %v345
  %v450 = vpack.c.b16 %v359, %v346
  %v451 = vpack.c.b16 %v360, %v347
  %v452 = vpack.c.b16 %v361, %v348
  %v453 = vpack.c.b16 %v362, %v349
  %v454 = vpack.c.b16 %v363, %v363
  %v455 = vpack.c.b16 %v364, %v364
  %v456 = vpack.c.b16 %v365, %v365
  %v457 = vpack.c.b16 %v366, %v366
  %v458 = vpack.c.b16 %v367, %v367
  %v459 = vpack.c.b16 %v368, %v368
  %v460 = vpack.c.b16 %v369, %v369
  %v461 = vpack.c.b16 %v370, %v370
  %v462 = vpack.c.b16 %v371, %v371
  %v463 = vpack.c.b16 %v372, %v372
  %v464 = vpack.c.b16 %v373, %v373
  %v465 = vpack.c.b16 %v374, %v374
  %v466 = vpack.c.b16 %v375, %v375
  %vm545 = vcmask 818176
  %v547 = vsel %vm545, %v17, 0
  %vm549 = vcmask 1041408
  %v551 = vsel %vm549, %v454, 0
  %v554 = vsel %vm549, %v455, 0
  %v557 = vsel %vm549, %v456, 0
  %v560 = vsel %vm549, %v457, 0
  %v563 = vsel %vm549, %v458, 0
  %v566 = vsel %vm549, %v459, 0
  %v569 = vsel %vm549, %v460, 0
  %v572 = vsel %vm549, %v461, 0
  %v575 = vsel %vm549, %v462, 0
  %v578 = vsel %vm549, %v463, 0
  %v581 = vsel %vm549, %v464, 0
  %v584 = vsel %vm549, %v465, 0
  %v587 = vsel %vm549, %v466, 0
  %589 = vmatpush.bf16.msra.mxu0 0
  %590 = vmatpush.bf16.msra.mxu0 %v551
  %591 = vmatpush.bf16.msra.mxu0 %v441
  %592 = vmatpush.bf16.msra.mxu0 %v428
  %593 = vmatpush.bf16.msra.mxu0 %v415
  %594 = vmatpush.bf16.msra.mxu0 %v402
  %595 = vmatpush.bf16.msra.mxu0 %v389
  %596 = vmatpush.bf16.msra.mxu0 %v376
  %597 = vmatmul.bf16.gmra.mxu0 %v547
  %v598 = vpop.f32.mrf.mxu0
  %v599 = vadd.f32 %v115, %v598
  %v600 = vpop.f32.mrf.mxu0
  %601 = vdwg.mxu0
  %602 = vmatpush.bf16.msra.mxu0 0
  %603 = vmatpush.bf16.msra.mxu0 %v554
  %604 = vmatpush.bf16.msra.mxu0 %v442
  %605 = vmatpush.bf16.msra.mxu0 %v429
  %606 = vmatpush.bf16.msra.mxu0 %v416
  %607 = vmatpush.bf16.msra.mxu0 %v403
  %608 = vmatpush.bf16.msra.mxu0 %v390
  %609 = vmatpush.bf16.msra.mxu0 %v377
  %610 = vmatmul.bf16.gmra.mxu0 %v547
  %v611 = vpop.f32.mrf.mxu0
  %v612 = vadd.f32 %v115, %v611
  %v613 = vpop.f32.mrf.mxu0
  %614 = vdwg.mxu0
  %615 = vmatpush.bf16.msra.mxu0 0
  %616 = vmatpush.bf16.msra.mxu0 %v557
  %617 = vmatpush.bf16.msra.mxu0 %v443
  %618 = vmatpush.bf16.msra.mxu0 %v430
  %619 = vmatpush.bf16.msra.mxu0 %v417
  %620 = vmatpush.bf16.msra.mxu0 %v404
  %621 = vmatpush.bf16.msra.mxu0 %v391
  %622 = vmatpush.bf16.msra.mxu0 %v378
  %623 = vmatmul.bf16.gmra.mxu0 %v547
  %v624 = vpop.f32.mrf.mxu0
  %v625 = vadd.f32 %v115, %v624
  %v626 = vpop.f32.mrf.mxu0
  %627 = vdwg.mxu0
  %628 = vmatpush.bf16.msra.mxu0 0
  %629 = vmatpush.bf16.msra.mxu0 %v560
  %630 = vmatpush.bf16.msra.mxu0 %v444
  %631 = vmatpush.bf16.msra.mxu0 %v431
  %632 = vmatpush.bf16.msra.mxu0 %v418
  %633 = vmatpush.bf16.msra.mxu0 %v405
  %634 = vmatpush.bf16.msra.mxu0 %v392
  %635 = vmatpush.bf16.msra.mxu0 %v379
  %636 = vmatmul.bf16.gmra.mxu0 %v547
  %v637 = vpop.f32.mrf.mxu0
  %v638 = vadd.f32 %v115, %v637
  %v639 = vpop.f32.mrf.mxu0
  %640 = vdwg.mxu0
  %641 = vmatpush.bf16.msra.mxu0 0
  %642 = vmatpush.bf16.msra.mxu0 %v563
  %643 = vmatpush.bf16.msra.mxu0 %v445
  %644 = vmatpush.bf16.msra.mxu0 %v432
  %645 = vmatpush.bf16.msra.mxu0 %v419
  %646 = vmatpush.bf16.msra.mxu0 %v406
  %647 = vmatpush.bf16.msra.mxu0 %v393
  %648 = vmatpush.bf16.msra.mxu0 %v380
  %649 = vmatmul.bf16.gmra.mxu0 %v547
  %v650 = vpop.f32.mrf.mxu0
  %v651 = vadd.f32 %v115, %v650
  %v652 = vpop.f32.mrf.mxu0
  %653 = vdwg.mxu0
  %654 = vmatpush.bf16.msra.mxu0 0
  %655 = vmatpush.bf16.msra.mxu0 %v566
  %656 = vmatpush.bf16.msra.mxu0 %v446
  %657 = vmatpush.bf16.msra.mxu0 %v433
  %658 = vmatpush.bf16.msra.mxu0 %v420
  %659 = vmatpush.bf16.msra.mxu0 %v407
  %660 = vmatpush.bf16.msra.mxu0 %v394
  %661 = vmatpush.bf16.msra.mxu0 %v381
  %662 = vmatmul.bf16.gmra.mxu0 %v547
  %v663 = vpop.f32.mrf.mxu0
  %v664 = vadd.f32 %v115, %v663
  %v665 = vpop.f32.mrf.mxu0
  %666 = vdwg.mxu0
  %667 = vmatpush.bf16.msra.mxu0 0
  %668 = vmatpush.bf16.msra.mxu0 %v569
  %669 = vmatpush.bf16.msra.mxu0 %v447
  %670 = vmatpush.bf16.msra.mxu0 %v434
  %671 = vmatpush.bf16.msra.mxu0 %v421
  %672 = vmatpush.bf16.msra.mxu0 %v408
  %673 = vmatpush.bf16.msra.mxu0 %v395
  %674 = vmatpush.bf16.msra.mxu0 %v382
  %675 = vmatmul.bf16.gmra.mxu0 %v547
  %v676 = vpop.f32.mrf.mxu0
  %v677 = vadd.f32 %v115, %v676
  %v678 = vpop.f32.mrf.mxu0
  %679 = vdwg.mxu0
  %680 = vmatpush.bf16.msra.mxu0 0
  %681 = vmatpush.bf16.msra.mxu0 %v572
  %682 = vmatpush.bf16.msra.mxu0 %v448
  %683 = vmatpush.bf16.msra.mxu0 %v435
  %684 = vmatpush.bf16.msra.mxu0 %v422
  %685 = vmatpush.bf16.msra.mxu0 %v409
  %686 = vmatpush.bf16.msra.mxu0 %v396
  %687 = vmatpush.bf16.msra.mxu0 %v383
  %688 = vmatmul.bf16.gmra.mxu0 %v547
  %v689 = vpop.f32.mrf.mxu0
  %v690 = vadd.f32 %v115, %v689
  %v691 = vpop.f32.mrf.mxu0
  %692 = vdwg.mxu0
  %693 = vmatpush.bf16.msra.mxu0 0
  %694 = vmatpush.bf16.msra.mxu0 %v575
  %695 = vmatpush.bf16.msra.mxu0 %v449
  %696 = vmatpush.bf16.msra.mxu0 %v436
  %697 = vmatpush.bf16.msra.mxu0 %v423
  %698 = vmatpush.bf16.msra.mxu0 %v410
  %699 = vmatpush.bf16.msra.mxu0 %v397
  %700 = vmatpush.bf16.msra.mxu0 %v384
  %701 = vmatmul.bf16.gmra.mxu0 %v547
  %v702 = vpop.f32.mrf.mxu0
  %v703 = vadd.f32 %v115, %v702
  %v704 = vpop.f32.mrf.mxu0
  %705 = vdwg.mxu0
  %706 = vmatpush.bf16.msra.mxu0 0
  %707 = vmatpush.bf16.msra.mxu0 %v578
  %708 = vmatpush.bf16.msra.mxu0 %v450
  %709 = vmatpush.bf16.msra.mxu0 %v437
  %710 = vmatpush.bf16.msra.mxu0 %v424
  %711 = vmatpush.bf16.msra.mxu0 %v411
  %712 = vmatpush.bf16.msra.mxu0 %v398
  %713 = vmatpush.bf16.msra.mxu0 %v385
  %714 = vmatmul.bf16.gmra.mxu0 %v547
  %v715 = vpop.f32.mrf.mxu0
  %v716 = vadd.f32 %v115, %v715
  %v717 = vpop.f32.mrf.mxu0
  %718 = vdwg.mxu0
  %719 = vmatpush.bf16.msra.mxu0 0
  %720 = vmatpush.bf16.msra.mxu0 %v581
  %721 = vmatpush.bf16.msra.mxu0 %v451
  %722 = vmatpush.bf16.msra.mxu0 %v438
  %723 = vmatpush.bf16.msra.mxu0 %v425
  %724 = vmatpush.bf16.msra.mxu0 %v412
  %725 = vmatpush.bf16.msra.mxu0 %v399
  %726 = vmatpush.bf16.msra.mxu0 %v386
  %727 = vmatmul.bf16.gmra.mxu0 %v547
  %v728 = vpop.f32.mrf.mxu0
  %v729 = vadd.f32 %v115, %v728
  %v730 = vpop.f32.mrf.mxu0
  %731 = vdwg.mxu0
  %732 = vmatpush.bf16.msra.mxu0 0
  %733 = vmatpush.bf16.msra.mxu0 %v584
  %734 = vmatpush.bf16.msra.mxu0 %v452
  %735 = vmatpush.bf16.msra.mxu0 %v439
  %736 = vmatpush.bf16.msra.mxu0 %v426
  %737 = vmatpush.bf16.msra.mxu0 %v413
  %738 = vmatpush.bf16.msra.mxu0 %v400
  %739 = vmatpush.bf16.msra.mxu0 %v387
  %740 = vmatmul.bf16.gmra.mxu0 %v547
  %v741 = vpop.f32.mrf.mxu0
  %v742 = vadd.f32 %v115, %v741
  %v743 = vpop.f32.mrf.mxu0
  %744 = vdwg.mxu0
  %745 = vmatpush.bf16.msra.mxu0 0
  %746 = vmatpush.bf16.msra.mxu0 %v587
  %747 = vmatpush.bf16.msra.mxu0 %v453
  %748 = vmatpush.bf16.msra.mxu0 %v440
  %749 = vmatpush.bf16.msra.mxu0 %v427
  %750 = vmatpush.bf16.msra.mxu0 %v414
  %751 = vmatpush.bf16.msra.mxu0 %v401
  %752 = vmatpush.bf16.msra.mxu0 %v388
  %753 = vmatmul.bf16.gmra.mxu0 %v547
  %v754 = vpop.f32.mrf.mxu0
  %v755 = vadd.f32 %v115, %v754
  %v756 = vpop.f32.mrf.mxu0
  %757 = vdwg.mxu0
  %v771 = vrot.slane %v612, 7
  %v772 = vrot.slane %v625, 6
  %v773 = vrot.slane %v638, 5
  %v774 = vrot.slane %v651, 4
  %v775 = vrot.slane %v664, 3
  %v776 = vrot.slane %v677, 2
  %v777 = vrot.slane %v690, 1
  %v778 = vrot.slane %v716, 7
  %v779 = vrot.slane %v729, 6
  %v780 = vrot.slane %v742, 5
  %v781 = vrot.slane %v755, 4
  %vm782 = vcmask 1040384
  %v783 = vsel %vm782, %v599, %v771
  %vm784 = vcmask 1042434
  %v785 = vsel %vm784, %v772, %v773
  %v786 = vsel %vm549, %v783, %v785
  %vm787 = vcmask 1044484
  %v788 = vsel %vm787, %v774, %v775
  %vm789 = vcmask 1046534
  %v790 = vsel %vm789, %v776, %v777
  %vm791 = vcmask 1045508
  %v792 = vsel %vm791, %v788, %v790
  %vm793 = vcmask 1043456
  %v794 = vsel %vm793, %v786, %v792
  %v795 = vsel %vm782, %v703, %v778
  %v796 = vsel %vm549, %v795, %v779
  %vm797 = vcmask 1043459
  %v798 = vsel %vm797, %v780, %v781
  %vm799 = vcmask 1042432
  %v800 = vsel %vm799, %v796, %v798
  %803 = vst [vmem:[%s3] sm:$0xff] %v794
  %v804 = vlaneseq
  %vm805 = vcmp.ge.s32.totalorder %v804, 0
  %vm806 = vcmp.lt.s32.totalorder %v804, 544
  %vm807 = vmand %vm805, %vm806
  %808 = vst.msk [vmem:[%s3 + $0x8] sm:$0x1f] %vm807, %v800
  // Predicated region
  $region14: #{unet_forward.36} parent=0 // pred_check
    _
  $region15: #{unet_forward.36} parent=0 // pred_check_branch
    %810 = sbr.rel (0) target = $region17
  $region16: #{unet_forward.36} parent=0 // pred_region
    _
  $region17: #{unet_forward.36} parent=0 // pred_fallthru
    _
  // Predicated region
  $region18: #{unet_forward.36} parent=0 // pred_check
    _
  $region19: #{unet_forward.36} parent=0 // pred_check_branch
    %812 = sbr.rel (0) target = $region21
  $region20: #{unet_forward.36} parent=0 // pred_region
    _
  $region21: #{unet_forward.36} parent=0 // pred_fallthru
    _

// kernel: unet_forward.37
$region0: #{unet_forward.37}
  #allocation0 [shape = 'u32[]', space=smem, size = 0x4, offset = 0x4, fixed_abs, tag = 'smem constant byte address 0x4 - core index']
  #allocation1 [shape = 'u32[72,128]{1,0:T(1,128)}', space=vmem, size = 0x9000, scoped, tag = 'internal scratch']
  #allocation2 [shape = 'f32[1,1]{1,0:T(1,128)S(1)}', space=vmem, size = 0x200, scoped, tag = 'scoped memory for unet_forward.37']
  %s0 = inlined_call_operand.vmem [shape: bf16[1,9], index: 0, kind: input, shape index: {}]
  %s1 = inlined_call_operand.vmem [shape: bf16[9,1568], index: 1, kind: input, shape index: {}]
  %s2 = inlined_call_operand.<no memory space> [shape: f32[1,1], index: 2, kind: input, shape index: {}]
  %s3 = inlined_call_operand.vmem [shape: f32[1,1568], index: 3, kind: input, shape index: {}]
  %s4 = inlined_call_operand.vmem [shape: f32[1,1568], index: 4, kind: output, shape index: {}]
  %s5 = sld [smem:[#allocation0]]
  $region26: #{unet_forward.37} parent=0
    _
  %s7 = ssub.s32 1, %s5
  %s8 = scalar_select 0, %s7, %s5
  %v9 = vstv %s2
  %10 = vst [vmem:[#allocation2] sm:$0x1] %v9
  // Predicated region
  $region2: #{unet_forward.37} parent=0 // pred_check
    _
  $region3: #{unet_forward.37} parent=0 // pred_check_branch
    %12 = sbr.rel (0) target = $region5
  $region4: #{unet_forward.37} parent=0 // pred_region
    _
  $region5: #{unet_forward.37} parent=0 // pred_fallthru
    _
  // Predicated region
  $region6: #{unet_forward.37} parent=0 // pred_check
    _
  $region7: #{unet_forward.37} parent=0 // pred_check_branch
    %14 = sbr.rel (0) target = $region9
  $region8: #{unet_forward.37} parent=0 // pred_region
    _
  $region9: #{unet_forward.37} parent=0 // pred_fallthru
    _
  // Predicated region
  $region10: #{unet_forward.37} parent=0 // pred_check
    _
  $region11: #{unet_forward.37} parent=0 // pred_check_branch
    %16 = sbr.rel (0) target = $region13
  $region12: #{unet_forward.37} parent=0 // pred_region
    _
  $region13: #{unet_forward.37} parent=0 // pred_fallthru
    _
  // Predicated region
  $region14: #{unet_forward.37} parent=0 // pred_check
    _
  $region15: #{unet_forward.37} parent=0 // pred_check_branch
    %18 = sbr.rel (0) target = $region17
  $region16: #{unet_forward.37} parent=0 // pred_region
    _
  $region17: #{unet_forward.37} parent=0 // pred_fallthru
    _
  %v20 = vld [vmem:[%s0] sm:$0x1]
  %v21 = vld [vmem:[%s1] sm:$0xff]
  %v22 = vld [vmem:[%s1 + $0x8] sm:$0xff]
  %v23 = vld [vmem:[%s1 + $0x10] sm:$0xff]
  %v24 = vld [vmem:[%s1 + $0x18] sm:$0xff]
  %v25 = vld [vmem:[%s1 + $0x20] sm:$0xff]
  %v26 = vld [vmem:[%s1 + $0x28] sm:$0xff]
  %v27 = vld [vmem:[%s1 + $0x30] sm:$0xf]
  %v28 = vld [vmem:[%s1 + $0x34] sm:$0x11]
  %v29 = vld [vmem:[%s1 + $0x3c] sm:$0x11]
  %v30 = vld [vmem:[%s1 + $0x44] sm:$0x11]
  %v31 = vld [vmem:[%s1 + $0x4c] sm:$0x11]
  %v32 = vld [vmem:[%s1 + $0x54] sm:$0x11]
  %v33 = vld [vmem:[%s1 + $0x5c] sm:$0x11]
  %v34 = vld [vmem:[%s1 + $0x64] sm:$0x1]
  %v35 = vld [vmem:[#allocation2] sm:$0x1]
  %37 = vset.pattern.permute.xlu0 0
  %38 = vperm.xlu0 %37, %v35
  %v39 = vpop.permute.xlu0 %38
  %v41 = vperm.slane %v39, 0
  %v56 = vunpack.c.l.b16 %v21
  %v57 = vunpack.c.h.b16 %v21
  %v58 = vunpack.c.l.b16 %v22
  %v59 = vunpack.c.h.b16 %v22
  %v60 = vunpack.c.l.b16 %v23
  %v61 = vunpack.c.h.b16 %v23
  %v62 = vunpack.c.l.b16 %v24
  %v63 = vunpack.c.h.b16 %v24
  %v64 = vunpack.c.l.b16 %v25
  %v65 = vunpack.c.h.b16 %v25
  %v66 = vunpack.c.l.b16 %v26
  %v67 = vunpack.c.h.b16 %v26
  %v68 = vunpack.c.l.b16 %v27
  %v69 = vunpack.c.l.b16 %v28
  %v70 = vunpack.c.h.b16 %v28
  %v71 = vunpack.c.l.b16 %v29
  %v72 = vunpack.c.h.b16 %v29
  %v73 = vunpack.c.l.b16 %v30
  %v74 = vunpack.c.h.b16 %v30
  %v75 = vunpack.c.l.b16 %v31
  %v76 = vunpack.c.h.b16 %v31
  %v77 = vunpack.c.l.b16 %v32
  %v78 = vunpack.c.h.b16 %v32
  %v79 = vunpack.c.l.b16 %v33
  %v80 = vunpack.c.h.b16 %v33
  %v81 = vunpack.c.l.b16 %v34
  %v82 = vpack.c.b16 %v69, %v56
  %v83 = vpack.c.b16 %v70, %v57
  %v84 = vpack.c.b16 %v71, %v58
  %v85 = vpack.c.b16 %v72, %v59
  %v86 = vpack.c.b16 %v73, %v60
  %v87 = vpack.c.b16 %v74, %v61
  %v88 = vpack.c.b16 %v75, %v62
  %v89 = vpack.c.b16 %v76, %v63
  %v90 = vpack.c.b16 %v77, %v64
  %v91 = vpack.c.b16 %v78, %v65
  %v92 = vpack.c.b16 %v79, %v66
  %v93 = vpack.c.b16 %v80, %v67
  %v94 = vpack.c.b16 %v81, %v68
  %vm95 = vcmask 72704
  %v97 = vsel %vm95, %v20, 0
  %vm99 = vcmask 1043456
  %vm100 = vcmask 1044480
  %v101 = vsel %vm99, 4294967295, 65535
  %v102 = vsel %vm100, %v101, 0
  %v104 = vand.u32 %v82, %v102
  %v107 = vand.u32 %v83, %v102
  %v110 = vand.u32 %v84, %v102
  %v113 = vand.u32 %v85, %v102
  %v116 = vand.u32 %v86, %v102
  %v119 = vand.u32 %v87, %v102
  %v122 = vand.u32 %v88, %v102
  %v125 = vand.u32 %v89, %v102
  %v128 = vand.u32 %v90, %v102
  %v131 = vand.u32 %v91, %v102
  %v134 = vand.u32 %v92, %v102
  %v137 = vand.u32 %v93, %v102
  %v140 = vand.u32 %v94, %v102
  %142 = vmatpush.bf16.msra.mxu0 0
  %143 = vmatpush.bf16.msra.mxu0 0
  %144 = vmatpush.bf16.msra.mxu0 0
  %145 = vmatpush.bf16.msra.mxu0 0
  %146 = vmatpush.bf16.msra.mxu0 0
  %147 = vmatpush.bf16.msra.mxu0 0
  %148 = vmatpush.bf16.msra.mxu0 0
  %149 = vmatpush.bf16.msra.mxu0 %v104
  %150 = vmatmul.bf16.gmra.mxu0 %v97
  %v151 = vpop.f32.mrf.mxu0
  %v152 = vadd.f32 %v41, %v151
  %v153 = vpop.f32.mrf.mxu0
  %154 = vdwg.mxu0
  %155 = vmatpush.bf16.msra.mxu0 0
  %156 = vmatpush.bf16.msra.mxu0 0
  %157 = vmatpush.bf16.msra.mxu0 0
  %158 = vmatpush.bf16.msra.mxu0 0
  %159 = vmatpush.bf16.msra.mxu0 0
  %160 = vmatpush.bf16.msra.mxu0 0
  %161 = vmatpush.bf16.msra.mxu0 0
  %162 = vmatpush.bf16.msra.mxu0 %v107
  %163 = vmatmul.bf16.gmra.mxu0 %v97
  %v164 = vpop.f32.mrf.mxu0
  %v165 = vadd.f32 %v41, %v164
  %v166 = vpop.f32.mrf.mxu0
  %167 = vdwg.mxu0
  %168 = vmatpush.bf16.msra.mxu0 0
  %169 = vmatpush.bf16.msra.mxu0 0
  %170 = vmatpush.bf16.msra.mxu0 0
  %171 = vmatpush.bf16.msra.mxu0 0
  %172 = vmatpush.bf16.msra.mxu0 0
  %173 = vmatpush.bf16.msra.mxu0 0
  %174 = vmatpush.bf16.msra.mxu0 0
  %175 = vmatpush.bf16.msra.mxu0 %v110
  %176 = vmatmul.bf16.gmra.mxu0 %v97
  %v177 = vpop.f32.mrf.mxu0
  %v178 = vadd.f32 %v41, %v177
  %v179 = vpop.f32.mrf.mxu0
  %180 = vdwg.mxu0
  %181 = vmatpush.bf16.msra.mxu0 0
  %182 = vmatpush.bf16.msra.mxu0 0
  %183 = vmatpush.bf16.msra.mxu0 0
  %184 = vmatpush.bf16.msra.mxu0 0
  %185 = vmatpush.bf16.msra.mxu0 0
  %186 = vmatpush.bf16.msra.mxu0 0
  %187 = vmatpush.bf16.msra.mxu0 0
  %188 = vmatpush.bf16.msra.mxu0 %v113
  %189 = vmatmul.bf16.gmra.mxu0 %v97
  %v190 = vpop.f32.mrf.mxu0
  %v191 = vadd.f32 %v41, %v190
  %v192 = vpop.f32.mrf.mxu0
  %193 = vdwg.mxu0
  %194 = vmatpush.bf16.msra.mxu0 0
  %195 = vmatpush.bf16.msra.mxu0 0
  %196 = vmatpush.bf16.msra.mxu0 0
  %197 = vmatpush.bf16.msra.mxu0 0
  %198 = vmatpush.bf16.msra.mxu0 0
  %199 = vmatpush.bf16.msra.mxu0 0
  %200 = vmatpush.bf16.msra.mxu0 0
  %201 = vmatpush.bf16.msra.mxu0 %v116
  %202 = vmatmul.bf16.gmra.mxu0 %v97
  %v203 = vpop.f32.mrf.mxu0
  %v204 = vadd.f32 %v41, %v203
  %v205 = vpop.f32.mrf.mxu0
  %206 = vdwg.mxu0
  %207 = vmatpush.bf16.msra.mxu0 0
  %208 = vmatpush.bf16.msra.mxu0 0
  %209 = vmatpush.bf16.msra.mxu0 0
  %210 = vmatpush.bf16.msra.mxu0 0
  %211 = vmatpush.bf16.msra.mxu0 0
  %212 = vmatpush.bf16.msra.mxu0 0
  %213 = vmatpush.bf16.msra.mxu0 0
  %214 = vmatpush.bf16.msra.mxu0 %v119
  %215 = vmatmul.bf16.gmra.mxu0 %v97
  %v216 = vpop.f32.mrf.mxu0
  %v217 = vadd.f32 %v41, %v216
  %v218 = vpop.f32.mrf.mxu0
  %219 = vdwg.mxu0
  %220 = vmatpush.bf16.msra.mxu0 0
  %221 = vmatpush.bf16.msra.mxu0 0
  %222 = vmatpush.bf16.msra.mxu0 0
  %223 = vmatpush.bf16.msra.mxu0 0
  %224 = vmatpush.bf16.msra.mxu0 0
  %225 = vmatpush.bf16.msra.mxu0 0
  %226 = vmatpush.bf16.msra.mxu0 0
  %227 = vmatpush.bf16.msra.mxu0 %v122
  %228 = vmatmul.bf16.gmra.mxu0 %v97
  %v229 = vpop.f32.mrf.mxu0
  %v230 = vadd.f32 %v41, %v229
  %v231 = vpop.f32.mrf.mxu0
  %232 = vdwg.mxu0
  %233 = vmatpush.bf16.msra.mxu0 0
  %234 = vmatpush.bf16.msra.mxu0 0
  %235 = vmatpush.bf16.msra.mxu0 0
  %236 = vmatpush.bf16.msra.mxu0 0
  %237 = vmatpush.bf16.msra.mxu0 0
  %238 = vmatpush.bf16.msra.mxu0 0
  %239 = vmatpush.bf16.msra.mxu0 0
  %240 = vmatpush.bf16.msra.mxu0 %v125
  %241 = vmatmul.bf16.gmra.mxu0 %v97
  %v242 = vpop.f32.mrf.mxu0
  %v243 = vadd.f32 %v41, %v242
  %v244 = vpop.f32.mrf.mxu0
  %245 = vdwg.mxu0
  %246 = vmatpush.bf16.msra.mxu0 0
  %247 = vmatpush.bf16.msra.mxu0 0
  %248 = vmatpush.bf16.msra.mxu0 0
  %249 = vmatpush.bf16.msra.mxu0 0
  %250 = vmatpush.bf16.msra.mxu0 0
  %251 = vmatpush.bf16.msra.mxu0 0
  %252 = vmatpush.bf16.msra.mxu0 0
  %253 = vmatpush.bf16.msra.mxu0 %v128
  %254 = vmatmul.bf16.gmra.mxu0 %v97
  %v255 = vpop.f32.mrf.mxu0
  %v256 = vadd.f32 %v41, %v255
  %v257 = vpop.f32.mrf.mxu0
  %258 = vdwg.mxu0
  %259 = vmatpush.bf16.msra.mxu0 0
  %260 = vmatpush.bf16.msra.mxu0 0
  %261 = vmatpush.bf16.msra.mxu0 0
  %262 = vmatpush.bf16.msra.mxu0 0
  %263 = vmatpush.bf16.msra.mxu0 0
  %264 = vmatpush.bf16.msra.mxu0 0
  %265 = vmatpush.bf16.msra.mxu0 0
  %266 = vmatpush.bf16.msra.mxu0 %v131
  %267 = vmatmul.bf16.gmra.mxu0 %v97
  %v268 = vpop.f32.mrf.mxu0
  %v269 = vadd.f32 %v41, %v268
  %v270 = vpop.f32.mrf.mxu0
  %271 = vdwg.mxu0
  %272 = vmatpush.bf16.msra.mxu0 0
  %273 = vmatpush.bf16.msra.mxu0 0
  %274 = vmatpush.bf16.msra.mxu0 0
  %275 = vmatpush.bf16.msra.mxu0 0
  %276 = vmatpush.bf16.msra.mxu0 0
  %277 = vmatpush.bf16.msra.mxu0 0
  %278 = vmatpush.bf16.msra.mxu0 0
  %279 = vmatpush.bf16.msra.mxu0 %v134
  %280 = vmatmul.bf16.gmra.mxu0 %v97
  %v281 = vpop.f32.mrf.mxu0
  %v282 = vadd.f32 %v41, %v281
  %v283 = vpop.f32.mrf.mxu0
  %284 = vdwg.mxu0
  %285 = vmatpush.bf16.msra.mxu0 0
  %286 = vmatpush.bf16.msra.mxu0 0
  %287 = vmatpush.bf16.msra.mxu0 0
  %288 = vmatpush.bf16.msra.mxu0 0
  %289 = vmatpush.bf16.msra.mxu0 0
  %290 = vmatpush.bf16.msra.mxu0 0
  %291 = vmatpush.bf16.msra.mxu0 0
  %292 = vmatpush.bf16.msra.mxu0 %v137
  %293 = vmatmul.bf16.gmra.mxu0 %v97
  %v294 = vpop.f32.mrf.mxu0
  %v295 = vadd.f32 %v41, %v294
  %v296 = vpop.f32.mrf.mxu0
  %297 = vdwg.mxu0
  %298 = vmatpush.bf16.msra.mxu0 0
  %299 = vmatpush.bf16.msra.mxu0 0
  %300 = vmatpush.bf16.msra.mxu0 0
  %301 = vmatpush.bf16.msra.mxu0 0
  %302 = vmatpush.bf16.msra.mxu0 0
  %303 = vmatpush.bf16.msra.mxu0 0
  %304 = vmatpush.bf16.msra.mxu0 0
  %305 = vmatpush.bf16.msra.mxu0 %v140
  %306 = vmatmul.bf16.gmra.mxu0 %v97
  %v307 = vpop.f32.mrf.mxu0
  %v308 = vadd.f32 %v41, %v307
  %v309 = vpop.f32.mrf.mxu0
  %310 = vdwg.mxu0
  %v311 = vsub.f32 0.0, %v152
  %v312 = vsub.f32 0.0, %v165
  %v313 = vsub.f32 0.0, %v178
  %v314 = vsub.f32 0.0, %v191
  %v315 = vsub.f32 0.0, %v204
  %v316 = vsub.f32 0.0, %v217
  %v317 = vsub.f32 0.0, %v230
  %v318 = vsub.f32 0.0, %v243
  %v319 = vsub.f32 0.0, %v256
  %v320 = vsub.f32 0.0, %v269
  %v321 = vsub.f32 0.0, %v282
  %v322 = vsub.f32 0.0, %v295
  %v323 = vsub.f32 0.0, %v308
  %v324 = vmul.f32 %v311, 1.442695
  %v325 = vpow.pop %v324
  %v326 = vmul.f32 %v312, 1.442695
  %v327 = vpow.pop %v326
  %v328 = vmul.f32 %v313, 1.442695
  %v329 = vpow.pop %v328
  %v330 = vmul.f32 %v314, 1.442695
  %v331 = vpow.pop %v330
  %v332 = vmul.f32 %v315, 1.442695
  %v333 = vpow.pop %v332
  %v334 = vmul.f32 %v316, 1.442695
  %v335 = vpow.pop %v334
  %v336 = vmul.f32 %v317, 1.442695
  %v337 = vpow.pop %v336
  %v338 = vmul.f32 %v318, 1.442695
  %v339 = vpow.pop %v338
  %v340 = vmul.f32 %v319, 1.442695
  %v341 = vpow.pop %v340
  %v342 = vmul.f32 %v320, 1.442695
  %v343 = vpow.pop %v342
  %v344 = vmul.f32 %v321, 1.442695
  %v345 = vpow.pop %v344
  %v346 = vmul.f32 %v322, 1.442695
  %v347 = vpow.pop %v346
  %v348 = vmul.f32 %v323, 1.442695
  %v349 = vpow.pop %v348
  %v350 = vadd.f32 %v325, 1.0
  %v351 = vadd.f32 %v327, 1.0
  %v352 = vadd.f32 %v329, 1.0
  %v353 = vadd.f32 %v331, 1.0
  %v354 = vadd.f32 %v333, 1.0
  %v355 = vadd.f32 %v335, 1.0
  %v356 = vadd.f32 %v337, 1.0
  %v357 = vadd.f32 %v339, 1.0
  %v358 = vadd.f32 %v341, 1.0
  %v359 = vadd.f32 %v343, 1.0
  %v360 = vadd.f32 %v345, 1.0
  %v361 = vadd.f32 %v347, 1.0
  %v362 = vadd.f32 %v349, 1.0
  %v363 = vrcp.pop %v350
  %v364 = vrcp.pop %v351
  %v365 = vrcp.pop %v352
  %v366 = vrcp.pop %v353
  %v367 = vrcp.pop %v354
  %v368 = vrcp.pop %v355
  %v369 = vrcp.pop %v356
  %v370 = vrcp.pop %v357
  %v371 = vrcp.pop %v358
  %v372 = vrcp.pop %v359
  %v373 = vrcp.pop %v360
  %v374 = vrcp.pop %v361
  %v375 = vrcp.pop %v362
  %v376 = vmul.f32 %v152, %v363
  %v377 = vmul.f32 %v165, %v364
  %v378 = vmul.f32 %v178, %v365
  %v379 = vmul.f32 %v191, %v366
  %v380 = vmul.f32 %v204, %v367
  %v381 = vmul.f32 %v217, %v368
  %v382 = vmul.f32 %v230, %v369
  %v383 = vmul.f32 %v243, %v370
  %v384 = vmul.f32 %v256, %v371
  %v385 = vmul.f32 %v269, %v372
  %v386 = vmul.f32 %v282, %v373
  %v387 = vmul.f32 %v295, %v374
  %v388 = vmul.f32 %v308, %v375
  %v389 = vld [vmem:[%s3] sm:$0xff]
  %v390 = vld [vmem:[%s3 + $0x8] sm:$0x1f]
  %v393 = vperm.slane %v389, 0
  %v394 = vperm.slane %v389, 1
  %v395 = vperm.slane %v389, 2
  %v396 = vperm.slane %v389, 3
  %v397 = vperm.slane %v389, 4
  %v398 = vperm.slane %v389, 5
  %v399 = vperm.slane %v389, 6
  %v400 = vperm.slane %v389, 7
  %v401 = vperm.slane %v390, 0
  %v402 = vperm.slane %v390, 1
  %v403 = vperm.slane %v390, 2
  %v404 = vperm.slane %v390, 3
  %v405 = vperm.slane %v390, 4
  %v419 = vadd.f32 %v376, %v393
  %v420 = vadd.f32 %v377, %v394
  %v421 = vadd.f32 %v378, %v395
  %v422 = vadd.f32 %v379, %v396
  %v423 = vadd.f32 %v380, %v397
  %v424 = vadd.f32 %v381, %v398
  %v425 = vadd.f32 %v382, %v399
  %v426 = vadd.f32 %v383, %v400
  %v427 = vadd.f32 %v384, %v401
  %v428 = vadd.f32 %v385, %v402
  %v429 = vadd.f32 %v386, %v403
  %v430 = vadd.f32 %v387, %v404
  %v431 = vadd.f32 %v388, %v405
  %v445 = vrot.slane %v420, 7
  %v446 = vrot.slane %v421, 6
  %v447 = vrot.slane %v422, 5
  %v448 = vrot.slane %v423, 4
  %v449 = vrot.slane %v424, 3
  %v450 = vrot.slane %v425, 2
  %v451 = vrot.slane %v426, 1
  %v452 = vrot.slane %v428, 7
  %v453 = vrot.slane %v429, 6
  %v454 = vrot.slane %v430, 5
  %v455 = vrot.slane %v431, 4
  %vm456 = vcmask 1040384
  %v457 = vsel %vm456, %v419, %v445
  %vm458 = vcmask 1042434
  %v459 = vsel %vm458, %v446, %v447
  %vm460 = vcmask 1041408
  %v461 = vsel %vm460, %v457, %v459
  %vm462 = vcmask 1044484
  %v463 = vsel %vm462, %v448, %v449
  %vm464 = vcmask 1046534
  %v465 = vsel %vm464, %v450, %v451
  %vm466 = vcmask 1045508
  %v467 = vsel %vm466, %v463, %v465
  %v468 = vsel %vm99, %v461, %v467
  %v469 = vsel %vm456, %v427, %v452
  %v470 = vsel %vm460, %v469, %v453
  %vm471 = vcmask 1043459
  %v472 = vsel %vm471, %v454, %v455
  %vm473 = vcmask 1042432
  %v474 = vsel %vm473, %v470, %v472
  %477 = vst [vmem:[%s4] sm:$0xff] %v468
  %v478 = vlaneseq
  %vm479 = vcmp.ge.s32.totalorder %v478, 0
  %vm480 = vcmp.lt.s32.totalorder %v478, 544
  %vm481 = vmand %vm479, %vm480
  %482 = vst.msk [vmem:[%s4 + $0x8] sm:$0x1f] %vm481, %v474
  // Predicated region
  $region18: #{unet_forward.37} parent=0 // pred_check
    _
  $region19: #{unet_forward.37} parent=0 // pred_check_branch
    %484 = sbr.rel (0) target = $region21
  $region20: #{unet_forward.37} parent=0 // pred_region
    _
  $region21: #{unet_forward.37} parent=0 // pred_fallthru
    _
  // Predicated region
  $region22: #{unet_forward.37} parent=0 // pred_check
    _
  $region23: #{unet_forward.37} parent=0 // pred_check_branch
    %486 = sbr.rel (0) target = $region25
  $region24: #{unet_forward.37} parent=0 // pred_region
    _
  $region25: #{unet_forward.37} parent=0 // pred_fallthru
    _

// kernel: unet_forward.39
$region0: #{unet_forward.39}
  #allocation0 [shape = 'u32[]', space=smem, size = 0x4, offset = 0x4, fixed_abs, tag = 'smem constant byte address 0x4 - core index']
  #allocation1 [shape = 'u32[72,128]{1,0:T(1,128)}', space=vmem, size = 0x9000, scoped, tag = 'internal scratch']
  %s0 = inlined_call_operand.vmem [shape: f32[2,784], index: 0, kind: input, shape index: {}]
  %s1 = inlined_call_operand.vmem [shape: f32[1,784], index: 1, kind: input, shape index: {}]
  %s2 = inlined_call_operand.vmem [shape: f32[1,784], index: 2, kind: input, shape index: {}]
  %s3 = inlined_call_operand.vmem [shape: f32[2,784], index: 3, kind: output, shape index: {}]
  %s4 = sld [smem:[#allocation0]]
  $region22: #{unet_forward.39} parent=0
    _
  %s6 = ssub.s32 1, %s4
  %s7 = scalar_select 0, %s6, %s4
  // Predicated region
  $region2: #{unet_forward.39} parent=0 // pred_check
    _
  $region3: #{unet_forward.39} parent=0 // pred_check_branch
    %9 = sbr.rel (0) target = $region5
  $region4: #{unet_forward.39} parent=0 // pred_region
    _
  $region5: #{unet_forward.39} parent=0 // pred_fallthru
    _
  // Predicated region
  $region6: #{unet_forward.39} parent=0 // pred_check
    _
  $region7: #{unet_forward.39} parent=0 // pred_check_branch
    %11 = sbr.rel (0) target = $region9
  $region8: #{unet_forward.39} parent=0 // pred_region
    _
  $region9: #{unet_forward.39} parent=0 // pred_fallthru
    _
  // Predicated region
  $region10: #{unet_forward.39} parent=0 // pred_check
    _
  $region11: #{unet_forward.39} parent=0 // pred_check_branch
    %13 = sbr.rel (0) target = $region13
  $region12: #{unet_forward.39} parent=0 // pred_region
    _
  $region13: #{unet_forward.39} parent=0 // pred_fallthru
    _
  %v14 = vld [vmem:[%s0] sm:$0xff]
  %v15 = vld [vmem:[%s0 + $0x8] sm:$0x3f]
  %v16 = vsub.f32 0.0, %v14
  %v17 = vsub.f32 0.0, %v15
  %v18 = vmul.f32 %v16, 1.442695
  %v19 = vpow.pop %v18
  %v20 = vmul.f32 %v17, 1.442695
  %v21 = vpow.pop %v20
  %v22 = vadd.f32 %v19, 1.0
  %v23 = vadd.f32 %v21, 1.0
  %v24 = vrcp.pop %v22
  %v25 = vrcp.pop %v23
  %v26 = vmul.f32 %v14, %v24
  %v27 = vmul.f32 %v15, %v25
  %30 = vst [vmem:[#allocation1] ss:$4 sm:$0xff] %v26
  %s31 = scalar_lea.vmem [#allocation1], 32
  %32 = vst [vmem:[%s31] ss:$4 sm:$0xff] %v27
  %v33 = vld.sshfl [vmem:[#allocation1] sm:$0xff pattern:$0x73625140]
  %v34 = vld.sshfl [vmem:[#allocation1 + $0x8] sm:$0xff pattern:$0x73625140]
  %v35 = vld.sshfl [vmem:[#allocation1 + $0x10] sm:$0xff pattern:$0x73625140]
  %v36 = vld.sshfl [vmem:[#allocation1 + $0x18] sm:$0xff pattern:$0x73625140]
  %v37 = vld.sshfl [vmem:[#allocation1 + $0x20] sm:$0xff pattern:$0x73625140]
  %v38 = vld.sshfl [vmem:[#allocation1 + $0x28] sm:$0xff pattern:$0x73625140]
  %v39 = vld.sshfl [vmem:[#allocation1 + $0x30] sm:$0xff pattern:$0x73625140]
  %vm47 = vcmask 1041408
  %v48 = vsel %vm47, %v33, 0.0
  %v49 = vsel %vm47, %v34, 0.0
  %v50 = vadd.f32 %v48, %v49
  %v51 = vsel %vm47, %v35, 0.0
  %v52 = vadd.f32 %v50, %v51
  %v53 = vsel %vm47, %v36, 0.0
  %v54 = vadd.f32 %v52, %v53
  %v55 = vsel %vm47, %v37, 0.0
  %v56 = vadd.f32 %v54, %v55
  %v57 = vsel %vm47, %v38, 0.0
  %v58 = vadd.f32 %v56, %v57
  %vm59 = vcmask 123904
  %v60 = vsel %vm59, %v39, 0.0
  %v61 = vadd.f32 %v58, %v60
  %62 = vadd.xlane.f32.xlu0 %v61
  %v63 = vpop.xlane.xlu0 %62
  %v64 = vrcp.pop 784.0
  %v65 = vmul.f32 784.0, %v64
  %v66 = vsub.f32 1.0, %v65
  %v67 = vmul.f32 %v64, %v66
  %v68 = vadd.f32 %v64, %v67
  %vm69 = vweird.f32 %v64
  %v70 = vsel %vm69, %v64, %v68
  %v71 = vmul.f32 %v63, %v70
  %v74 = vunpack.c.l.s4 269488144
  %v75 = vunpack.c.0.s8 %v74
  %v76 = vperm.slane %v71, %v75
  %v78 = vsub.f32 %v26, %v76
  %v79 = vsub.f32 %v27, %v76
  %v80 = vmul.f32 %v78, %v78
  %v81 = vmul.f32 %v79, %v79
  %84 = vst [vmem:[#allocation1] ss:$4 sm:$0xff] %v80
  %s85 = scalar_lea.vmem [#allocation1], 32
  %86 = vst [vmem:[%s85] ss:$4 sm:$0xff] %v81
  %v87 = vld.sshfl [vmem:[#allocation1] sm:$0xff pattern:$0x73625140]
  %v88 = vld.sshfl [vmem:[#allocation1 + $0x8] sm:$0xff pattern:$0x73625140]
  %v89 = vld.sshfl [vmem:[#allocation1 + $0x10] sm:$0xff pattern:$0x73625140]
  %v90 = vld.sshfl [vmem:[#allocation1 + $0x18] sm:$0xff pattern:$0x73625140]
  %v91 = vld.sshfl [vmem:[#allocation1 + $0x20] sm:$0xff pattern:$0x73625140]
  %v92 = vld.sshfl [vmem:[#allocation1 + $0x28] sm:$0xff pattern:$0x73625140]
  %v93 = vld.sshfl [vmem:[#allocation1 + $0x30] sm:$0xff pattern:$0x73625140]
  %v101 = vsel %vm47, %v87, 0.0
  %v102 = vsel %vm47, %v88, 0.0
  %v103 = vadd.f32 %v101, %v102
  %v104 = vsel %vm47, %v89, 0.0
  %v105 = vadd.f32 %v103, %v104
  %v106 = vsel %vm47, %v90, 0.0
  %v107 = vadd.f32 %v105, %v106
  %v108 = vsel %vm47, %v91, 0.0
  %v109 = vadd.f32 %v107, %v108
  %v110 = vsel %vm47, %v92, 0.0
  %v111 = vadd.f32 %v109, %v110
  %v112 = vsel %vm59, %v93, 0.0
  %v113 = vadd.f32 %v111, %v112
  %114 = vadd.xlane.f32.xlu0 %v113
  %v115 = vpop.xlane.xlu0 %114
  %v116 = vmul.f32 %v115, %v70
  %v117 = vadd.f32 %v116, 1e-05
  %v118 = vrsqrt.pop %v117
  %v119 = vmul.f32 %v118, %v117
  %v120 = vmul.f32 %v119, %v118
  %v121 = vmul.f32 0.5, %v120
  %v122 = vsub.f32 1.5, %v121
  %v123 = vmul.f32 %v118, %v122
  %vm124 = vweird.f32 %v117
  %vm125 = vweird.f32 %v118
  %vm126 = vmor %vm124, %vm125
  %v127 = vsel %vm126, %v118, %v123
  %v130 = vunpack.c.l.s4 269488144
  %v131 = vunpack.c.0.s8 %v130
  %v132 = vperm.slane %v127, %v131
  %v134 = vmul.f32 %v78, %v132
  %v135 = vmul.f32 %v79, %v132
  %v136 = vld [vmem:[%s1] sm:$0x7f]
  %v138 = vperm.slane %v136, 0
  %v139 = vperm.slane %v136, 1
  %v140 = vperm.slane %v136, 2
  %v141 = vperm.slane %v136, 3
  %v142 = vperm.slane %v136, 4
  %v143 = vperm.slane %v136, 5
  %v144 = vperm.slane %v136, 6
  %v145 = vrot.slane %v139, 6
  %v146 = vrot.slane %v140, 4
  %v147 = vrot.slane %v141, 2
  %v148 = vrot.slane %v143, 6
  %v149 = vrot.slane %v144, 4
  %v150 = vsel %vm47, %v138, %v145
  %vm151 = vcmask 1045508
  %v152 = vsel %vm151, %v146, %v147
  %vm153 = vcmask 1043456
  %v154 = vsel %vm153, %v150, %v152
  %v155 = vsel %vm47, %v142, %v148
  %v156 = vsel %vm153, %v155, %v149
  %v159 = vmul.f32 %v134, %v154
  %v160 = vmul.f32 %v135, %v156
  %v161 = vld [vmem:[%s2] sm:$0x7f]
  %v163 = vperm.slane %v161, 0
  %v164 = vperm.slane %v161, 1
  %v165 = vperm.slane %v161, 2
  %v166 = vperm.slane %v161, 3
  %v167 = vperm.slane %v161, 4
  %v168 = vperm.slane %v161, 5
  %v169 = vperm.slane %v161, 6
  %v170 = vrot.slane %v164, 6
  %v171 = vrot.slane %v165, 4
  %v172 = vrot.slane %v166, 2
  %v173 = vrot.slane %v168, 6
  %v174 = vrot.slane %v169, 4
  %v175 = vsel %vm47, %v163, %v170
  %v176 = vsel %vm151, %v171, %v172
  %v177 = vsel %vm153, %v175, %v176
  %v178 = vsel %vm47, %v167, %v173
  %v179 = vsel %vm153, %v178, %v174
  %v182 = vadd.f32 %v159, %v177
  %v183 = vadd.f32 %v160, %v179
  %184 = vst [vmem:[%s3] sm:$0xff] %v182
  %vm185 = vcmask 1043458
  %vm186 = vmor %vm185, %vm47
  %vm187 = vcmask 128004
  %vm188 = vmor %vm187, %vm186
  %189 = vst.msk [vmem:[%s3 + $0x8] sm:$0x3f] %vm188, %v183
  // Predicated region
  $region14: #{unet_forward.39} parent=0 // pred_check
    _
  $region15: #{unet_forward.39} parent=0 // pred_check_branch
    %191 = sbr.rel (0) target = $region17
  $region16: #{unet_forward.39} parent=0 // pred_region
    _
  $region17: #{unet_forward.39} parent=0 // pred_fallthru
    _
  // Predicated region
  $region18: #{unet_forward.39} parent=0 // pred_check
    _
  $region19: #{unet_forward.39} parent=0 // pred_check_branch
    %193 = sbr.rel (0) target = $region21
  $region20: #{unet_forward.39} parent=0 // pred_region
    _
  $region21: #{unet_forward.39} parent=0 // pred_fallthru
    _

</llo_original>
